<compile_context>
chip_gen: v7x
topology: tpu7x:2x2x1
jax: 0.10.0
libtpu: 0.0.40
codegen_flags: <defaults>
</compile_context>

<pallas_src>
import functools

import jax
import jax.numpy as jnp
from jax import lax
from jax.experimental import pallas as pl
from jax.experimental.pallas import tpu as pltpu


def _affinity_kernel(x_ref, wq_ref, bq_ref, wk_ref, bk_ref, wv_ref, bv_ref,
                     gc_ref, out_ref,
                     q_sc, k_sc, v_sc, sab_sc, ca_sc, *, W, q_block):
    f32 = jnp.float32
    bf16 = jnp.bfloat16
    HW, C = x_ref.shape
    Cq = q_sc.shape[-1]
    qt = pl.program_id(1)
    n_qt = pl.num_programs(1)

    # ---- per-batch init: project q/k/v once, zero the channel Gram accum ----
    @pl.when(qt == 0)
    def _init():
        x = x_ref[...].astype(f32)
        xb = x.astype(bf16)                       # bf16 MXU operands (f32 acc)
        row = lax.broadcasted_iota(jnp.int32, (HW, Cq), 0)

        # query: Conv(1,3), padding (0,1).  Shift the projected taps (Cq wide,
        # ~8x cheaper than shifting x) with sublane rolls; zero wrapped rows.
        y_m = jnp.dot(xb, wq_ref[0], preferred_element_type=f32)
        y_0 = jnp.dot(xb, wq_ref[1], preferred_element_type=f32)
        y_p = jnp.dot(xb, wq_ref[2], preferred_element_type=f32)
        t_m = jnp.where((row % W) != 0, pltpu.roll(y_m, 1, 0), 0.0)
        t_p = jnp.where((row % W) != (W - 1), pltpu.roll(y_p, HW - 1, 0), 0.0)
        q = jnp.maximum(t_m + y_0 + t_p + bq_ref[...], 0.0)      # BN folded
        q_sc[...] = q.astype(bf16)

        # key: Conv(3,1), padding (1,0).
        z_m = jnp.dot(xb, wk_ref[0], preferred_element_type=f32)
        z_0 = jnp.dot(xb, wk_ref[1], preferred_element_type=f32)
        z_p = jnp.dot(xb, wk_ref[2], preferred_element_type=f32)
        s_m = jnp.where(row >= W, pltpu.roll(z_m, W, 0), 0.0)
        s_p = jnp.where(row < HW - W, pltpu.roll(z_p, HW - W, 0), 0.0)
        k = jnp.maximum(s_m + z_0 + s_p + bk_ref[...], 0.0)      # BN folded
        k_sc[...] = k.astype(bf16)

        # value: Conv(1,1); gamma_s pre-folded into wv/bv.  Kept f32: it feeds
        # sab and the near-one-hot channel softmax.
        v_sc[...] = (jnp.dot(x, wv_ref[...], preferred_element_type=f32)
                     + bv_ref[...])
        ca_sc[...] = jnp.zeros_like(ca_sc)

    # ---- spatial attention on one q-row tile (no full HWxHW in VMEM) ----
    r0 = pl.multiple_of(qt * q_block, q_block)
    q_t = q_sc[pl.ds(r0, q_block), :]                            # (tq, Cq) bf16
    logits = lax.dot_general(q_t, k_sc[...], (((1,), (1,)), ((), ())),
                             preferred_element_type=f32)         # (tq, HW)
    m = jnp.max(logits, axis=-1, keepdims=True)
    e = jnp.exp(logits - m)
    denom = jnp.sum(e, axis=-1, keepdims=True)                   # (tq, 1)
    inv = pl.reciprocal(denom, approx=True)
    inv = inv * (2.0 - denom * inv)           # one Newton step -> ~f32 exact
    p = e * inv
    w_sp = jnp.dot(p, v_sc[...], preferred_element_type=f32)     # (tq, C)
    sab_t = w_sp + x_ref[pl.ds(r0, q_block), :].astype(f32)      # gamma_s in v
    sab_sc[pl.ds(r0, q_block), :] = sab_t
    # accumulate channel Gram matrix: ca += sab_t^T @ sab_t
    ca_sc[...] += lax.dot_general(sab_t, sab_t, (((0,), (0,)), ((), ())),
                                  preferred_element_type=f32)

    # ---- finalize: channel attention + writeback at the last q tile ----
    @pl.when(qt == n_qt - 1)
    def _final():
        sab = sab_sc[...]
        ca = ca_sc[...]
        ca_new = jnp.max(ca, axis=-1, keepdims=True) - ca
        ee = jnp.exp(ca_new - jnp.max(ca_new, axis=-1, keepdims=True))
        ca_p = ee / jnp.sum(ee, axis=-1, keepdims=True)          # CxC exact div
        w_ch = lax.dot_general(sab, ca_p, (((1,), (1,)), ((), ())),
                               preferred_element_type=f32)       # (HW, C)
        # out = sab + cab = 2*sab + gamma_c * w_ch
        out_ref[...] = (2.0 * sab + gc_ref[0, 0] * w_ch).astype(out_ref.dtype)


def init_params(key, C):
    """Deterministic parameter init; shapes mirror the PyTorch __init__."""
    Cq = max(C // 8, 1)
    ks = jax.random.split(key, 6)
    p = {
        "wq": 0.1 * jax.random.normal(ks[0], (Cq, C, 1, 3), jnp.float32),
        "bq": 0.1 * jax.random.normal(ks[1], (Cq,), jnp.float32),
        "wk": 0.1 * jax.random.normal(ks[2], (Cq, C, 3, 1), jnp.float32),
        "bk": 0.1 * jax.random.normal(ks[3], (Cq,), jnp.float32),
        "wv": 0.1 * jax.random.normal(ks[4], (C, C, 1, 1), jnp.float32),
        "bv": 0.1 * jax.random.normal(ks[5], (C,), jnp.float32),
        # BatchNorm parameters / running stats (PyTorch defaults).
        # TODO(synk): training-mode batch statistics not implemented; BN is
        # applied in eval mode using running stats folded into the conv.
        "bn_q": dict(weight=jnp.ones((Cq,)), bias=jnp.zeros((Cq,)),
                     mean=jnp.zeros((Cq,)), var=jnp.ones((Cq,))),
        "bn_k": dict(weight=jnp.ones((Cq,)), bias=jnp.zeros((Cq,)),
                     mean=jnp.zeros((Cq,)), var=jnp.ones((Cq,))),
        # PyTorch inits gamma to 0 (attention becomes a no-op); use nonzero
        # values so the kernel path is actually exercised.
        "gamma_s": jnp.array([[0.5]], jnp.float32),
        "gamma_c": jnp.array([[0.3]], jnp.float32),
    }
    return p


def pack_params(p):
    """Fold BN + gamma_s and repack conv weights for the kernel layout."""
    eps = 1e-5
    Cq, C = p["wq"].shape[0], p["wq"].shape[1]
    sq = p["bn_q"]["weight"] / jnp.sqrt(p["bn_q"]["var"] + eps)
    tq = p["bn_q"]["bias"] - p["bn_q"]["mean"] * sq
    sk = p["bn_k"]["weight"] / jnp.sqrt(p["bn_k"]["var"] + eps)
    tk = p["bn_k"]["bias"] - p["bn_k"]["mean"] * sk
    gs = p["gamma_s"][0, 0]
    # taps stacked as (3, C_in, C_out): [w-1; w; w+1] and [h-1; h; h+1]
    wq = jnp.stack([p["wq"][:, :, 0, t].T * sq[None, :] for t in range(3)], 0)
    wk = jnp.stack([p["wk"][:, :, t, 0].T * sk[None, :] for t in range(3)], 0)
    return {
        "wq": wq.astype(jnp.bfloat16),                          # bf16 MXU ops
        "bq": (p["bq"] * sq + tq).reshape(1, Cq).astype(jnp.float32),
        "wk": wk.astype(jnp.bfloat16),
        "bk": (p["bk"] * sk + tk).reshape(1, Cq).astype(jnp.float32),
        "wv": (gs * p["wv"][:, :, 0, 0].T).astype(jnp.float32),  # gamma_s folded
        "bv": (gs * p["bv"]).reshape(1, C).astype(jnp.float32),
        "gamma_c": p["gamma_c"].astype(jnp.float32),
    }


def _tile_bytes(shape, dtype):
    """Rough VMEM footprint of a tile after (sublane, lane) padding."""
    it = jnp.dtype(dtype).itemsize
    s = list(shape)
    s[-1] = pl.cdiv(s[-1], 128) * 128
    sub = 8 if it >= 4 else 8 * (4 // it)
    s[-2] = pl.cdiv(s[-2], sub) * sub
    n = 1
    for d in s:
        n *= d
    return n * it


def _pick_q_block(HW, q_block):
    """Largest multiple-of-8 divisor of HW that is <= q_block (else HW)."""
    qb = min(q_block, HW)
    qb -= qb % 8 if qb > 8 else 0
    while qb >= 8 and HW % qb:
        qb -= 8
    if qb < 8 or HW % qb:
        qb = HW
    return qb


@functools.partial(jax.jit, static_argnames=("q_block",))
def affinity_attention2(x_nchw, packed, q_block=128):
    B, C, H, W = x_nchw.shape
    HW = H * W
    Cq = packed["wq"].shape[-1]

    qb = _pick_q_block(HW, q_block)
    n_qt = HW // qb

    xf = jnp.transpose(x_nchw, (0, 2, 3, 1)).reshape(B, HW, C)   # (B, HW, C)

    def pspec(shape):
        return pl.BlockSpec(shape, lambda b, qt: (0,) * len(shape))

    x_spec = pl.BlockSpec((None, HW, C), lambda b, qt: (b, 0, 0))
    smem_spec = pl.BlockSpec(memory_space=pltpu.MemorySpace.SMEM)

    # Explicit scoped-VMEM budget: blocks (double buffered) + scratch + slack.
    f32 = jnp.float32
    est = (4 * _tile_bytes((HW, C), f32)                # x + out blocks (x2 buf)
           + 2 * _tile_bytes((HW, Cq), jnp.bfloat16)    # q/k scratch
           + 2 * _tile_bytes((HW, C), f32)              # v / sab scratch
           + 2 * _tile_bytes((C, C), f32)               # Gram + softmax
           + 4 * _tile_bytes((qb, HW), f32)             # logits/exp/prob temps
           + 8 * _tile_bytes((HW, Cq), f32)             # projection temps
           + 4 * _tile_bytes((3, C, Cq), jnp.bfloat16)) # weights (x2 buf)
    vmem_limit = int(min(max(est + (8 << 20), 32 << 20), 60 << 20))

    kernel = functools.partial(_affinity_kernel, W=W, q_block=qb)

    # TODO(synk): with C << 128 the elementwise epilogue / store are lane-sparse;
    # a lane-dense repack (fold HW into lanes for the writeback) is not done here.
    out = pl.pallas_call(
        kernel,
        out_shape=jax.ShapeDtypeStruct((B, HW, C), x_nchw.dtype),
        grid=(B, n_qt),
        in_specs=[
            x_spec,
            pspec((3, C, Cq)), pspec((1, Cq)),
            pspec((3, C, Cq)), pspec((1, Cq)),
            pspec((C, C)), pspec((1, C)),
            smem_spec,
        ],
        out_specs=x_spec,
        scratch_shapes=[
            pltpu.VMEM((HW, Cq), jnp.bfloat16),   # q (BN+ReLU applied)
            pltpu.VMEM((HW, Cq), jnp.bfloat16),   # k (BN+ReLU applied)
            pltpu.VMEM((HW, C), jnp.float32),     # v (gamma_s folded)
            pltpu.VMEM((HW, C), jnp.float32),     # sab
            pltpu.VMEM((C, C), jnp.float32),      # channel Gram accumulator
        ],
        input_output_aliases={0: 0},              # x block fully consumed first
        compiler_params=pltpu.CompilerParams(
            dimension_semantics=("parallel", "arbitrary"),
            vmem_limit_bytes=vmem_limit),
    )(xf, packed["wq"], packed["bq"], packed["wk"], packed["bk"],
      packed["wv"], packed["bv"], packed["gamma_c"])

    return jnp.transpose(out.reshape(B, H, W, C), (0, 3, 1, 2))


@jax.jit
def reference(x_nchw, p):
    """Pure-JAX reference following the PyTorch forward (NCHW), f32-exact."""
    eps = 1e-5
    hi = lax.Precision.HIGHEST
    B, C, H, W = x_nchw.shape
    HW = H * W

    def bn(y, bnp):
        s = bnp["weight"] / jnp.sqrt(bnp["var"] + eps)
        t = bnp["bias"] - bnp["mean"] * s
        return y * s[None, :, None, None] + t[None, :, None, None]

    dn = ("NCHW", "OIHW", "NCHW")
    q = lax.conv_general_dilated(x_nchw, p["wq"], (1, 1), ((0, 0), (1, 1)),
                                 dimension_numbers=dn,
                                 precision=hi) + p["bq"][None, :, None, None]
    q = jnp.maximum(bn(q, p["bn_q"]), 0.0)
    k = lax.conv_general_dilated(x_nchw, p["wk"], (1, 1), ((1, 1), (0, 0)),
                                 dimension_numbers=dn,
                                 precision=hi) + p["bk"][None, :, None, None]
    k = jnp.maximum(bn(k, p["bn_k"]), 0.0)
    v = lax.conv_general_dilated(x_nchw, p["wv"], (1, 1), ((0, 0), (0, 0)),
                                 dimension_numbers=dn,
                                 precision=hi) + p["bv"][None, :, None, None]

    pq = q.reshape(B, -1, HW).transpose(0, 2, 1)     # (B, HW, Cq)
    pk = k.reshape(B, -1, HW)                        # (B, Cq, HW)
    aff = jax.nn.softmax(jnp.matmul(pq, pk, precision=hi), axis=-1)
    pv = v.reshape(B, C, HW)
    w = jnp.matmul(pv, aff.transpose(0, 2, 1), precision=hi).reshape(B, C, H, W)
    sab = p["gamma_s"][0, 0] * w + x_nchw

    pq2 = sab.reshape(B, C, HW)
    aff2 = jnp.matmul(pq2, pq2.transpose(0, 2, 1), precision=hi)   # (B, C, C)
    aff2n = jnp.max(aff2, axis=-1, keepdims=True) - aff2
    aff2n = jax.nn.softmax(aff2n, axis=-1)
    w2 = jnp.matmul(aff2n, pq2, precision=hi).reshape(B, C, H, W)
    cab = p["gamma_c"][0, 0] * w2 + sab
    return sab + cab


if __name__ == "__main__":
    B, C, H, W = 2, 16, 16, 16        # in_channels must be >= 8 (C // 8 heads)
    key = jax.random.PRNGKey(0)
    kx, kp = jax.random.split(key)
    x = jax.random.normal(kx, (B, C, H, W), jnp.float32)

    params = init_params(kp, C)
    packed = pack_params(params)

    out = jax.block_until_ready(affinity_attention2(x, packed))  # HW=256 -> 2 q tiles
    ref = jax.block_until_ready(reference(x, params))

    assert out.shape == (B, C, H, W)
    max_err = float(jnp.max(jnp.abs(out - ref)))
    rel_fro = float(jnp.linalg.norm(out - ref) / jnp.linalg.norm(ref))
    # bf16 q/k + a near-one-hot channel softmax make element-wise error spiky
    # around Gram near-ties; the Frobenius check keeps the test tight overall.
    assert rel_fro < 2e-2, (rel_fro, max_err)
    assert bool(jnp.allclose(out, ref, atol=1e-1, rtol=1e-1)), (rel_fro, max_err)

    print("KERNEL_OK")
</pallas_src>

<mosaic_0001>
module attributes {stable_mosaic.version = 11 : i64} {
  func.func @_affinity_kernel(%arg0: i32, %arg1: i32, %arg2: memref<1x256x16xf32, #tpu.memory_space<vmem>>, %arg3: memref<3x16x2xbf16, #tpu.memory_space<vmem>>, %arg4: memref<1x2xf32, #tpu.memory_space<vmem>>, %arg5: memref<3x16x2xbf16, #tpu.memory_space<vmem>>, %arg6: memref<1x2xf32, #tpu.memory_space<vmem>>, %arg7: memref<16x16xf32, #tpu.memory_space<vmem>>, %arg8: memref<1x16xf32, #tpu.memory_space<vmem>>, %arg9: memref<1x1xf32, #tpu.memory_space<smem>>, %arg10: memref<1x256x16xf32, #tpu.memory_space<vmem>>, %arg11: memref<256x2xbf16, #tpu.memory_space<vmem>>, %arg12: memref<256x2xbf16, #tpu.memory_space<vmem>>, %arg13: memref<256x16xf32, #tpu.memory_space<vmem>>, %arg14: memref<256x16xf32, #tpu.memory_space<vmem>>, %arg15: memref<16x16xf32, #tpu.memory_space<vmem>>) attributes {dimension_semantics = [#tpu.dimension_semantics<parallel>, #tpu.dimension_semantics<arbitrary>], iteration_bounds = array<i64: 2, 2>, scalar_prefetch = 0 : i64, scratch_operands = 5 : i64, tpu.core_type = #tpu.core_type<tc>, window_params = [{transform_indices = @transform_0, window_bounds = array<i64: 1, 256, 16>}, {pipeline_mode = #tpu.pipeline_mode<synchronous>, transform_indices = @transform_1, window_bounds = array<i64: 3, 16, 2>}, {pipeline_mode = #tpu.pipeline_mode<synchronous>, transform_indices = @transform_2, window_bounds = array<i64: 1, 2>}, {pipeline_mode = #tpu.pipeline_mode<synchronous>, transform_indices = @transform_3, window_bounds = array<i64: 3, 16, 2>}, {pipeline_mode = #tpu.pipeline_mode<synchronous>, transform_indices = @transform_4, window_bounds = array<i64: 1, 2>}, {pipeline_mode = #tpu.pipeline_mode<synchronous>, transform_indices = @transform_5, window_bounds = array<i64: 16, 16>}, {pipeline_mode = #tpu.pipeline_mode<synchronous>, transform_indices = @transform_6, window_bounds = array<i64: 1, 16>}, {transform_indices = @transform_7, window_bounds = array<i64: 1, 1>}, {transform_indices = @transform_8, window_bounds = array<i64: 1, 256, 16>}]} {
    %c0_i32 = arith.constant 0 : i32
    %0 = arith.cmpi eq, %arg1, %c0_i32 : i32
    %1 = arith.extui %0 : i1 to i32
    %c0_i32_0 = arith.constant 0 : i32
    %2 = arith.cmpi ne, %1, %c0_i32_0 : i32
    scf.if %2 {
      %c0_18 = arith.constant 0 : index
      %c0_19 = arith.constant 0 : index
      %c0_20 = arith.constant 0 : index
      %38 = vector.load %arg2[%c0_18, %c0_19, %c0_20] : memref<1x256x16xf32, #tpu.memory_space<vmem>>, vector<1x256x16xf32>
      %39 = vector.shape_cast %38 : vector<1x256x16xf32> to vector<256x16xf32>
      %40 = arith.truncf %39 : vector<256x16xf32> to vector<256x16xbf16>
      %41 = tpu.iota {dimensions = array<i32: 0>} : vector<256x2xi32>
      %c0_21 = arith.constant 0 : index
      %c0_22 = arith.constant 0 : index
      %c0_23 = arith.constant 0 : index
      %42 = vector.load %arg3[%c0_21, %c0_22, %c0_23] : memref<3x16x2xbf16, #tpu.memory_space<vmem>>, vector<1x16x2xbf16>
      %43 = vector.shape_cast %42 : vector<1x16x2xbf16> to vector<16x2xbf16>
      %cst_24 = arith.constant dense<0.000000e+00> : vector<256x2xf32>
      %44 = tpu.matmul %40, %43, %cst_24 {dimension_numbers = #tpu.dot_dimension_numbers<[1], [0], [0], [1], [0, 0, 1, 1], [], []>} : vector<256x16xbf16>, vector<16x2xbf16>, vector<256x2xf32> -> vector<256x2xf32>
      %c1 = arith.constant 1 : index
      %c0_25 = arith.constant 0 : index
      %c0_26 = arith.constant 0 : index
      %45 = vector.load %arg3[%c1, %c0_25, %c0_26] : memref<3x16x2xbf16, #tpu.memory_space<vmem>>, vector<1x16x2xbf16>
      %46 = vector.shape_cast %45 : vector<1x16x2xbf16> to vector<16x2xbf16>
      %cst_27 = arith.constant dense<0.000000e+00> : vector<256x2xf32>
      %47 = tpu.matmul %40, %46, %cst_27 {dimension_numbers = #tpu.dot_dimension_numbers<[1], [0], [0], [1], [0, 0, 1, 1], [], []>} : vector<256x16xbf16>, vector<16x2xbf16>, vector<256x2xf32> -> vector<256x2xf32>
      %c2 = arith.constant 2 : index
      %c0_28 = arith.constant 0 : index
      %c0_29 = arith.constant 0 : index
      %48 = vector.load %arg3[%c2, %c0_28, %c0_29] : memref<3x16x2xbf16, #tpu.memory_space<vmem>>, vector<1x16x2xbf16>
      %49 = vector.shape_cast %48 : vector<1x16x2xbf16> to vector<16x2xbf16>
      %cst_30 = arith.constant dense<0.000000e+00> : vector<256x2xf32>
      %50 = tpu.matmul %40, %49, %cst_30 {dimension_numbers = #tpu.dot_dimension_numbers<[1], [0], [0], [1], [0, 0, 1, 1], [], []>} : vector<256x16xbf16>, vector<16x2xbf16>, vector<256x2xf32> -> vector<256x2xf32>
      %c16_i32 = arith.constant 16 : i32
      %c0_i32_31 = arith.constant 0 : i32
      %51 = arith.cmpi eq, %c16_i32, %c0_i32_31 : i32
      %c1_i32_32 = arith.constant 1 : i32
      %52 = arith.select %51, %c1_i32_32, %c16_i32 : i32
      %53 = vector.broadcast %52 : i32 to vector<256x2xi32>
      %54 = arith.remsi %41, %53 : vector<256x2xi32>
      %c0_i32_33 = arith.constant 0 : i32
      %55 = vector.broadcast %c0_i32_33 : i32 to vector<256x2xi32>
      %56 = arith.cmpi ne, %54, %55 : vector<256x2xi32>
      %c0_i32_34 = arith.constant 0 : i32
      %57 = vector.broadcast %c0_i32_34 : i32 to vector<256x2xi32>
      %58 = arith.cmpi slt, %54, %57 : vector<256x2xi32>
      %c0_i32_35 = arith.constant 0 : i32
      %59 = arith.cmpi slt, %52, %c0_i32_35 : i32
      %60 = vector.broadcast %59 : i1 to vector<256x2xi1>
      %61 = vector.broadcast %60 : vector<256x2xi1> to vector<256x2xi1>
      %62 = arith.xori %58, %61 : vector<256x2xi1>
      %63 = arith.andi %62, %56 : vector<256x2xi1>
      %64 = vector.broadcast %52 : i32 to vector<256x2xi32>
      %65 = arith.addi %54, %64 : vector<256x2xi32>
      %66 = arith.select %63, %65, %54 : vector<256x2xi1>, vector<256x2xi32>
      %c0_i32_36 = arith.constant 0 : i32
      %67 = vector.broadcast %c0_i32_36 : i32 to vector<256x2xi32>
      %68 = arith.cmpi ne, %66, %67 : vector<256x2xi32>
      %c1_i32_37 = arith.constant 1 : i32
      %69 = tpu.dynamic_rotate %44 by %c1_i32_37 dim 0 : vector<256x2xf32>, i32 -> vector<256x2xf32>
      %cst_38 = arith.constant 0.000000e+00 : f32
      %70 = vector.broadcast %cst_38 : f32 to vector<256x2xf32>
      %71 = arith.select %68, %69, %70 : vector<256x2xi1>, vector<256x2xf32>
      %c16_i32_39 = arith.constant 16 : i32
      %c0_i32_40 = arith.constant 0 : i32
      %72 = arith.cmpi eq, %c16_i32_39, %c0_i32_40 : i32
      %c1_i32_41 = arith.constant 1 : i32
      %73 = arith.select %72, %c1_i32_41, %c16_i32_39 : i32
      %74 = vector.broadcast %73 : i32 to vector<256x2xi32>
      %75 = arith.remsi %41, %74 : vector<256x2xi32>
      %c0_i32_42 = arith.constant 0 : i32
      %76 = vector.broadcast %c0_i32_42 : i32 to vector<256x2xi32>
      %77 = arith.cmpi ne, %75, %76 : vector<256x2xi32>
      %c0_i32_43 = arith.constant 0 : i32
      %78 = vector.broadcast %c0_i32_43 : i32 to vector<256x2xi32>
      %79 = arith.cmpi slt, %75, %78 : vector<256x2xi32>
      %c0_i32_44 = arith.constant 0 : i32
      %80 = arith.cmpi slt, %73, %c0_i32_44 : i32
      %81 = vector.broadcast %80 : i1 to vector<256x2xi1>
      %82 = vector.broadcast %81 : vector<256x2xi1> to vector<256x2xi1>
      %83 = arith.xori %79, %82 : vector<256x2xi1>
      %84 = arith.andi %83, %77 : vector<256x2xi1>
      %85 = vector.broadcast %73 : i32 to vector<256x2xi32>
      %86 = arith.addi %75, %85 : vector<256x2xi32>
      %87 = arith.select %84, %86, %75 : vector<256x2xi1>, vector<256x2xi32>
      %c15_i32 = arith.constant 15 : i32
      %88 = vector.broadcast %c15_i32 : i32 to vector<256x2xi32>
      %89 = arith.cmpi ne, %87, %88 : vector<256x2xi32>
      %c255_i32 = arith.constant 255 : i32
      %90 = tpu.dynamic_rotate %50 by %c255_i32 dim 0 : vector<256x2xf32>, i32 -> vector<256x2xf32>
      %cst_45 = arith.constant 0.000000e+00 : f32
      %91 = vector.broadcast %cst_45 : f32 to vector<256x2xf32>
      %92 = arith.select %89, %90, %91 : vector<256x2xi1>, vector<256x2xf32>
      %93 = arith.addf %71, %47 : vector<256x2xf32>
      %94 = arith.addf %93, %92 : vector<256x2xf32>
      %c0_46 = arith.constant 0 : index
      %c0_47 = arith.constant 0 : index
      %95 = vector.load %arg4[%c0_46, %c0_47] : memref<1x2xf32, #tpu.memory_space<vmem>>, vector<1x2xf32>
      %96 = vector.broadcast %95 : vector<1x2xf32> to vector<256x2xf32>
      %97 = arith.addf %94, %96 : vector<256x2xf32>
      %cst_48 = arith.constant 0.000000e+00 : f32
      %98 = vector.broadcast %cst_48 : f32 to vector<256x2xf32>
      %99 = arith.maximumf %97, %98 : vector<256x2xf32>
      %100 = arith.truncf %99 : vector<256x2xf32> to vector<256x2xbf16>
      %c0_49 = arith.constant 0 : index
      %c0_50 = arith.constant 0 : index
      %101 = vector.load %arg11[%c0_49, %c0_50] : memref<256x2xbf16, #tpu.memory_space<vmem>>, vector<256x2xbf16>
      tpu.vector_store %arg11[%c0_49, %c0_50], %100 {strides = array<i32>} : memref<256x2xbf16, #tpu.memory_space<vmem>>, vector<256x2xbf16>,
      %c0_51 = arith.constant 0 : index
      %c0_52 = arith.constant 0 : index
      %c0_53 = arith.constant 0 : index
      %102 = vector.load %arg5[%c0_51, %c0_52, %c0_53] : memref<3x16x2xbf16, #tpu.memory_space<vmem>>, vector<1x16x2xbf16>
      %103 = vector.shape_cast %102 : vector<1x16x2xbf16> to vector<16x2xbf16>
      %cst_54 = arith.constant dense<0.000000e+00> : vector<256x2xf32>
      %104 = tpu.matmul %40, %103, %cst_54 {dimension_numbers = #tpu.dot_dimension_numbers<[1], [0], [0], [1], [0, 0, 1, 1], [], []>} : vector<256x16xbf16>, vector<16x2xbf16>, vector<256x2xf32> -> vector<256x2xf32>
      %c1_55 = arith.constant 1 : index
      %c0_56 = arith.constant 0 : index
      %c0_57 = arith.constant 0 : index
      %105 = vector.load %arg5[%c1_55, %c0_56, %c0_57] : memref<3x16x2xbf16, #tpu.memory_space<vmem>>, vector<1x16x2xbf16>
      %106 = vector.shape_cast %105 : vector<1x16x2xbf16> to vector<16x2xbf16>
      %cst_58 = arith.constant dense<0.000000e+00> : vector<256x2xf32>
      %107 = tpu.matmul %40, %106, %cst_58 {dimension_numbers = #tpu.dot_dimension_numbers<[1], [0], [0], [1], [0, 0, 1, 1], [], []>} : vector<256x16xbf16>, vector<16x2xbf16>, vector<256x2xf32> -> vector<256x2xf32>
      %c2_59 = arith.constant 2 : index
      %c0_60 = arith.constant 0 : index
      %c0_61 = arith.constant 0 : index
      %108 = vector.load %arg5[%c2_59, %c0_60, %c0_61] : memref<3x16x2xbf16, #tpu.memory_space<vmem>>, vector<1x16x2xbf16>
      %109 = vector.shape_cast %108 : vector<1x16x2xbf16> to vector<16x2xbf16>
      %cst_62 = arith.constant dense<0.000000e+00> : vector<256x2xf32>
      %110 = tpu.matmul %40, %109, %cst_62 {dimension_numbers = #tpu.dot_dimension_numbers<[1], [0], [0], [1], [0, 0, 1, 1], [], []>} : vector<256x16xbf16>, vector<16x2xbf16>, vector<256x2xf32> -> vector<256x2xf32>
      %c16_i32_63 = arith.constant 16 : i32
      %111 = vector.broadcast %c16_i32_63 : i32 to vector<256x2xi32>
      %112 = arith.cmpi sge, %41, %111 : vector<256x2xi32>
      %c16_i32_64 = arith.constant 16 : i32
      %113 = tpu.dynamic_rotate %104 by %c16_i32_64 dim 0 : vector<256x2xf32>, i32 -> vector<256x2xf32>
      %cst_65 = arith.constant 0.000000e+00 : f32
      %114 = vector.broadcast %cst_65 : f32 to vector<256x2xf32>
      %115 = arith.select %112, %113, %114 : vector<256x2xi1>, vector<256x2xf32>
      %c240_i32 = arith.constant 240 : i32
      %116 = vector.broadcast %c240_i32 : i32 to vector<256x2xi32>
      %117 = arith.cmpi slt, %41, %116 : vector<256x2xi32>
      %c240_i32_66 = arith.constant 240 : i32
      %118 = tpu.dynamic_rotate %110 by %c240_i32_66 dim 0 : vector<256x2xf32>, i32 -> vector<256x2xf32>
      %cst_67 = arith.constant 0.000000e+00 : f32
      %119 = vector.broadcast %cst_67 : f32 to vector<256x2xf32>
      %120 = arith.select %117, %118, %119 : vector<256x2xi1>, vector<256x2xf32>
      %121 = arith.addf %115, %107 : vector<256x2xf32>
      %122 = arith.addf %121, %120 : vector<256x2xf32>
      %c0_68 = arith.constant 0 : index
      %c0_69 = arith.constant 0 : index
      %123 = vector.load %arg6[%c0_68, %c0_69] : memref<1x2xf32, #tpu.memory_space<vmem>>, vector<1x2xf32>
      %124 = vector.broadcast %123 : vector<1x2xf32> to vector<256x2xf32>
      %125 = arith.addf %122, %124 : vector<256x2xf32>
      %cst_70 = arith.constant 0.000000e+00 : f32
      %126 = vector.broadcast %cst_70 : f32 to vector<256x2xf32>
      %127 = arith.maximumf %125, %126 : vector<256x2xf32>
      %128 = arith.truncf %127 : vector<256x2xf32> to vector<256x2xbf16>
      %c0_71 = arith.constant 0 : index
      %c0_72 = arith.constant 0 : index
      %129 = vector.load %arg12[%c0_71, %c0_72] : memref<256x2xbf16, #tpu.memory_space<vmem>>, vector<256x2xbf16>
      tpu.vector_store %arg12[%c0_71, %c0_72], %128 {strides = array<i32>} : memref<256x2xbf16, #tpu.memory_space<vmem>>, vector<256x2xbf16>,
      %c0_73 = arith.constant 0 : index
      %c0_74 = arith.constant 0 : index
      %130 = vector.load %arg7[%c0_73, %c0_74] : memref<16x16xf32, #tpu.memory_space<vmem>>, vector<16x16xf32>
      %cst_75 = arith.constant dense<0.000000e+00> : vector<256x16xf32>
      %131 = tpu.matmul %39, %130, %cst_75 {dimension_numbers = #tpu.dot_dimension_numbers<[1], [0], [0], [1], [0, 0, 1, 1], [], []>} : vector<256x16xf32>, vector<16x16xf32>, vector<256x16xf32> -> vector<256x16xf32>
      %c0_76 = arith.constant 0 : index
      %c0_77 = arith.constant 0 : index
      %132 = vector.load %arg8[%c0_76, %c0_77] : memref<1x16xf32, #tpu.memory_space<vmem>>, vector<1x16xf32>
      %133 = vector.broadcast %132 : vector<1x16xf32> to vector<256x16xf32>
      %134 = arith.addf %131, %133 : vector<256x16xf32>
      %c0_78 = arith.constant 0 : index
      %c0_79 = arith.constant 0 : index
      %135 = vector.load %arg13[%c0_78, %c0_79] : memref<256x16xf32, #tpu.memory_space<vmem>>, vector<256x16xf32>
      tpu.vector_store %arg13[%c0_78, %c0_79], %134 {strides = array<i32>} : memref<256x16xf32, #tpu.memory_space<vmem>>, vector<256x16xf32>,
      %cst_80 = arith.constant 0.000000e+00 : f32
      %136 = vector.broadcast %cst_80 : f32 to vector<16x16xf32>
      %c0_81 = arith.constant 0 : index
      %c0_82 = arith.constant 0 : index
      %137 = vector.load %arg15[%c0_81, %c0_82] : memref<16x16xf32, #tpu.memory_space<vmem>>, vector<16x16xf32>
      tpu.vector_store %arg15[%c0_81, %c0_82], %136 {strides = array<i32>} : memref<16x16xf32, #tpu.memory_space<vmem>>, vector<16x16xf32>,
    } else {
    }
    %c128_i32 = arith.constant 128 : i32
    %3 = arith.muli %arg1, %c128_i32 : i32
    %4 = tpu.assume_multiple %3, 128 : i32
    %5 = arith.index_cast %4 : i32 to index
    %c0 = arith.constant 0 : index
    %6 = vector.load %arg11[%5, %c0] : memref<256x2xbf16, #tpu.memory_space<vmem>>, vector<128x2xbf16>
    %c0_1 = arith.constant 0 : index
    %c0_2 = arith.constant 0 : index
    %7 = vector.load %arg12[%c0_1, %c0_2] : memref<256x2xbf16, #tpu.memory_space<vmem>>, vector<256x2xbf16>
    %cst = arith.constant dense<0.000000e+00> : vector<128x256xf32>
    %8 = tpu.matmul %6, %7, %cst {dimension_numbers = #tpu.dot_dimension_numbers<[1], [1], [0], [0], [0, 0, 1, 0], [], []>} : vector<128x2xbf16>, vector<256x2xbf16>, vector<128x256xf32> -> vector<128x256xf32>
    %cst_3 = arith.constant dense<0xFF800000> : vector<128xf32>
    %9 = vector.multi_reduction <maximumf>, %8, %cst_3 [1] : vector<128x256xf32> to vector<128xf32>
    %10 = vector.shape_cast %9 : vector<128xf32> to vector<128x1xf32>
    %11 = vector.broadcast %10 : vector<128x1xf32> to vector<128x256xf32>
    %12 = arith.subf %8, %11 : vector<128x256xf32>
    %13 = math.exp %12 : vector<128x256xf32>
    %cst_4 = arith.constant dense<0.000000e+00> : vector<128xf32>
    %14 = vector.multi_reduction <add>, %13, %cst_4 [1] : vector<128x256xf32> to vector<128xf32>
    %15 = vector.shape_cast %14 : vector<128xf32> to vector<128x1xf32>
    %16 = tpu.reciprocal %15 {approx = true} : vector<128x1xf32> -> vector<128x1xf32>
    %17 = arith.mulf %15, %16 : vector<128x1xf32>
    %cst_5 = arith.constant 2.000000e+00 : f32
    %18 = vector.broadcast %cst_5 : f32 to vector<128x1xf32>
    %19 = arith.subf %18, %17 : vector<128x1xf32>
    %20 = arith.mulf %16, %19 : vector<128x1xf32>
    %21 = vector.broadcast %20 : vector<128x1xf32> to vector<128x256xf32>
    %22 = arith.mulf %13, %21 : vector<128x256xf32>
    %c0_6 = arith.constant 0 : index
    %c0_7 = arith.constant 0 : index
    %23 = vector.load %arg13[%c0_6, %c0_7] : memref<256x16xf32, #tpu.memory_space<vmem>>, vector<256x16xf32>
    %cst_8 = arith.constant dense<0.000000e+00> : vector<128x16xf32>
    %24 = tpu.matmul %22, %23, %cst_8 {dimension_numbers = #tpu.dot_dimension_numbers<[1], [0], [0], [1], [0, 0, 1, 1], [], []>} : vector<128x256xf32>, vector<256x16xf32>, vector<128x16xf32> -> vector<128x16xf32>
    %c0_9 = arith.constant 0 : index
    %25 = arith.index_cast %4 : i32 to index
    %c0_10 = arith.constant 0 : index
    %26 = vector.load %arg2[%c0_9, %25, %c0_10] : memref<1x256x16xf32, #tpu.memory_space<vmem>>, vector<1x128x16xf32>
    %27 = vector.shape_cast %26 : vector<1x128x16xf32> to vector<128x16xf32>
    %28 = arith.addf %24, %27 : vector<128x16xf32>
    %29 = arith.index_cast %4 : i32 to index
    %c0_11 = arith.constant 0 : index
    %30 = vector.load %arg14[%29, %c0_11] : memref<256x16xf32, #tpu.memory_space<vmem>>, vector<128x16xf32>
    tpu.vector_store %arg14[%29, %c0_11], %28 {strides = array<i32>} : memref<256x16xf32, #tpu.memory_space<vmem>>, vector<128x16xf32>,
    %c0_12 = arith.constant 0 : index
    %c0_13 = arith.constant 0 : index
    %31 = vector.load %arg15[%c0_12, %c0_13] : memref<16x16xf32, #tpu.memory_space<vmem>>, vector<16x16xf32>
    %cst_14 = arith.constant dense<0.000000e+00> : vector<16x16xf32>
    %32 = tpu.matmul %28, %28, %cst_14 {dimension_numbers = #tpu.dot_dimension_numbers<[0], [0], [1], [1], [0, 1, 1, 1], [], []>} : vector<128x16xf32>, vector<128x16xf32>, vector<16x16xf32> -> vector<16x16xf32>
    %33 = arith.addf %31, %32 : vector<16x16xf32>
    %c0_15 = arith.constant 0 : index
    %c0_16 = arith.constant 0 : index
    %34 = vector.load %arg15[%c0_15, %c0_16] : memref<16x16xf32, #tpu.memory_space<vmem>>, vector<16x16xf32>
    tpu.vector_store %arg15[%c0_15, %c0_16], %33 {strides = array<i32>} : memref<16x16xf32, #tpu.memory_space<vmem>>, vector<16x16xf32>,
    %c1_i32 = arith.constant 1 : i32
    %35 = arith.cmpi eq, %arg1, %c1_i32 : i32
    %36 = arith.extui %35 : i1 to i32
    %c0_i32_17 = arith.constant 0 : i32
    %37 = arith.cmpi ne, %36, %c0_i32_17 : i32
    scf.if %37 {
      %c0_18 = arith.constant 0 : index
      %c0_19 = arith.constant 0 : index
      %38 = vector.load %arg14[%c0_18, %c0_19] : memref<256x16xf32, #tpu.memory_space<vmem>>, vector<256x16xf32>
      %c0_20 = arith.constant 0 : index
      %c0_21 = arith.constant 0 : index
      %39 = vector.load %arg15[%c0_20, %c0_21] : memref<16x16xf32, #tpu.memory_space<vmem>>, vector<16x16xf32>
      %cst_22 = arith.constant dense<0xFF800000> : vector<16xf32>
      %40 = vector.multi_reduction <maximumf>, %39, %cst_22 [1] : vector<16x16xf32> to vector<16xf32>
      %41 = vector.shape_cast %40 : vector<16xf32> to vector<16x1xf32>
      %42 = vector.broadcast %41 : vector<16x1xf32> to vector<16x16xf32>
      %43 = arith.subf %42, %39 : vector<16x16xf32>
      %cst_23 = arith.constant dense<0xFF800000> : vector<16xf32>
      %44 = vector.multi_reduction <maximumf>, %43, %cst_23 [1] : vector<16x16xf32> to vector<16xf32>
      %45 = vector.shape_cast %44 : vector<16xf32> to vector<16x1xf32>
      %46 = vector.broadcast %45 : vector<16x1xf32> to vector<16x16xf32>
      %47 = arith.subf %43, %46 : vector<16x16xf32>
      %48 = math.exp %47 : vector<16x16xf32>
      %cst_24 = arith.constant dense<0.000000e+00> : vector<16xf32>
      %49 = vector.multi_reduction <add>, %48, %cst_24 [1] : vector<16x16xf32> to vector<16xf32>
      %50 = vector.shape_cast %49 : vector<16xf32> to vector<16x1xf32>
      %51 = vector.broadcast %50 : vector<16x1xf32> to vector<16x16xf32>
      %52 = arith.divf %48, %51 : vector<16x16xf32>
      %cst_25 = arith.constant dense<0.000000e+00> : vector<256x16xf32>
      %53 = tpu.matmul %38, %52, %cst_25 {dimension_numbers = #tpu.dot_dimension_numbers<[1], [1], [0], [0], [0, 0, 1, 0], [], []>} : vector<256x16xf32>, vector<16x16xf32>, vector<256x16xf32> -> vector<256x16xf32>
      %cst_26 = arith.constant 2.000000e+00 : f32
      %54 = vector.broadcast %cst_26 : f32 to vector<256x16xf32>
      %55 = arith.mulf %54, %38 : vector<256x16xf32>
      %c0_27 = arith.constant 0 : index
      %c0_28 = arith.constant 0 : index
      %56 = memref.load %arg9[%c0_27, %c0_28] : memref<1x1xf32, #tpu.memory_space<smem>>
      %57 = vector.broadcast %56 : f32 to vector<256x16xf32>
      %58 = arith.mulf %57, %53 : vector<256x16xf32>
      %59 = arith.addf %55, %58 : vector<256x16xf32>
      %c0_29 = arith.constant 0 : index
      %c0_30 = arith.constant 0 : index
      %c0_31 = arith.constant 0 : index
      %60 = vector.load %arg10[%c0_29, %c0_30, %c0_31] : memref<1x256x16xf32, #tpu.memory_space<vmem>>, vector<1x256x16xf32>
      %61 = vector.shape_cast %60 : vector<1x256x16xf32> to vector<256x16xf32>
      %62 = vector.shape_cast %59 : vector<256x16xf32> to vector<1x256x16xf32>
      tpu.vector_store %arg10[%c0_29, %c0_30, %c0_31], %62 {strides = array<i32>} : memref<1x256x16xf32, #tpu.memory_space<vmem>>, vector<1x256x16xf32>,
    } else {
    }
    return
  }
  func.func @transform_0(%arg0: i32, %arg1: i32) -> (i32, i32, i32) {
    %c0_i32 = arith.constant 0 : i32
    %c0_i32_0 = arith.constant 0 : i32
    %c0_i32_1 = arith.constant 0 : i32
    return %arg0, %c0_i32, %c0_i32_0 : i32, i32, i32
  }
  func.func @transform_1(%arg0: i32, %arg1: i32) -> (i32, i32, i32) {
    %c0_i32 = arith.constant 0 : i32
    %c0_i32_0 = arith.constant 0 : i32
    %c0_i32_1 = arith.constant 0 : i32
    %c0_i32_2 = arith.constant 0 : i32
    return %c0_i32, %c0_i32_0, %c0_i32_1 : i32, i32, i32
  }
  func.func @transform_2(%arg0: i32, %arg1: i32) -> (i32, i32) {
    %c0_i32 = arith.constant 0 : i32
    %c0_i32_0 = arith.constant 0 : i32
    %c0_i32_1 = arith.constant 0 : i32
    return %c0_i32, %c0_i32_0 : i32, i32
  }
  func.func @transform_3(%arg0: i32, %arg1: i32) -> (i32, i32, i32) {
    %c0_i32 = arith.constant 0 : i32
    %c0_i32_0 = arith.constant 0 : i32
    %c0_i32_1 = arith.constant 0 : i32
    %c0_i32_2 = arith.constant 0 : i32
    return %c0_i32, %c0_i32_0, %c0_i32_1 : i32, i32, i32
  }
  func.func @transform_4(%arg0: i32, %arg1: i32) -> (i32, i32) {
    %c0_i32 = arith.constant 0 : i32
    %c0_i32_0 = arith.constant 0 : i32
    %c0_i32_1 = arith.constant 0 : i32
    return %c0_i32, %c0_i32_0 : i32, i32
  }
  func.func @transform_5(%arg0: i32, %arg1: i32) -> (i32, i32) {
    %c0_i32 = arith.constant 0 : i32
    %c0_i32_0 = arith.constant 0 : i32
    %c0_i32_1 = arith.constant 0 : i32
    return %c0_i32, %c0_i32_0 : i32, i32
  }
  func.func @transform_6(%arg0: i32, %arg1: i32) -> (i32, i32) {
    %c0_i32 = arith.constant 0 : i32
    %c0_i32_0 = arith.constant 0 : i32
    %c0_i32_1 = arith.constant 0 : i32
    return %c0_i32, %c0_i32_0 : i32, i32
  }
  func.func @transform_7(%arg0: i32, %arg1: i32) -> (i32, i32) {
    %c0_i32 = arith.constant 0 : i32
    %c0_i32_0 = arith.constant 0 : i32
    %c0_i32_1 = arith.constant 0 : i32
    return %c0_i32, %c0_i32_0 : i32, i32
  }
  func.func @transform_8(%arg0: i32, %arg1: i32) -> (i32, i32, i32) {
    %c0_i32 = arith.constant 0 : i32
    %c0_i32_0 = arith.constant 0 : i32
    %c0_i32_1 = arith.constant 0 : i32
    return %arg0, %c0_i32, %c0_i32_0 : i32, i32, i32
  }
}

</mosaic_0001>

<llo_original>
// kernel: affinity_attention2.1
$region0: #{affinity_attention2.1}
  #allocation0 [shape = 'u32[]', space=smem, size = 0x4, offset = 0x4, fixed_abs, tag = 'smem constant byte address 0x4 - core index']
  #allocation1 [shape = 'u32[144,128]{1,0:T(1,128)}', space=vmem, size = 0x12000, scoped, tag = 'internal scratch']
  #allocation2 [shape = 'bf16[256,2]{1,0:T(16,128)(2,1)}', space=vmem, size = 0x10000, scoped, tag = 'scratch operand']
  #allocation3 [shape = 'bf16[256,2]{1,0:T(16,128)(2,1)}', space=vmem, size = 0x10000, scoped, tag = 'scratch operand']
  #allocation4 [shape = 'f32[256,16]{1,0:T(8,128)}', space=vmem, size = 0x20000, scoped, tag = 'scratch operand']
  #allocation5 [shape = 'f32[256,16]{1,0:T(8,128)}', space=vmem, size = 0x20000, scoped, tag = 'scratch operand']
  #allocation6 [shape = 'f32[16,16]{1,0:T(8,128)}', space=vmem, size = 0x2000, scoped, tag = 'scratch operand']
  #allocation7 [shape = 'f32[1,1]{1,0:T(1,128)S(6)}', space=smem, size = 0x200, scoped, tag = 'scoped memory for affinity_attention2.1']
  %s0 = inlined_call_operand.vmem [shape: f32[2,256,16], index: 0, kind: input, shape index: {}, may-alias: {0,8}]
  %s1 = inlined_call_operand.vmem [shape: bf16[3,16,2], index: 1, kind: input, shape index: {}]
  %s2 = inlined_call_operand.vmem [shape: f32[1,2], index: 2, kind: input, shape index: {}]
  %s3 = inlined_call_operand.vmem [shape: bf16[3,16,2], index: 3, kind: input, shape index: {}]
  %s4 = inlined_call_operand.vmem [shape: f32[1,2], index: 4, kind: input, shape index: {}]
  %s5 = inlined_call_operand.vmem [shape: f32[16,16], index: 5, kind: input, shape index: {}]
  %s6 = inlined_call_operand.vmem [shape: f32[1,16], index: 6, kind: input, shape index: {}]
  %s7 = inlined_call_operand.<no memory space> [shape: f32[1,1], index: 7, kind: input, shape index: {}]
  %s8 = inlined_call_operand.vmem [shape: f32[2,256,16], index: 8, kind: output, shape index: {}, may-alias: {0,8}]
  %s9 = sld [smem:[#allocation0]]
  $region73: #{affinity_attention2.1} parent=0
    _
  %s11 = ssub.s32 1, %s9
  %s12 = scalar_select 0, %s11, %s9
  %13 = sst [smem:[#allocation7]] %s7
  loop: start=0, step=1, limit=6
  $region2: #{affinity_attention2.1} parent=0 // loop_pre_header
    _
  $region3: #{affinity_attention2.1} parent=0 // loop_header
    %s15 = sphi 0, %s19
    %p16 = scmp.ge.s32.totalorder %s15, 6
    %s22 = sphi 0, %s34
    %s23 = sphi 0, %s30
    %s24 = sphi 0, %s22
    %s25 = sphi 0, %s23
    %s26 = sphi 0, %s24
    %s27 = sphi 0, %s25
    %s37 = sphi 0, %s39
    %s40 = sphi 0, %s37
    %s41 = sphi 0, %s40
    %s57 = sphi 0, %s41
    %s61 = sphi 0, %s61
    %s63 = sphi 0, %s61
    %s64 = sphi 0, %s63
    %s78 = sphi 0, %s64
    %s82 = sphi 0, %s82
    %s84 = sphi 0, %s82
    %s85 = sphi 0, %s84
    %s99 = sphi 0, %s85
    %s103 = sphi 0, %s103
    %s105 = sphi 0, %s103
    %s106 = sphi 0, %s105
    %s120 = sphi 0, %s106
    %s124 = sphi 0, %s124
    %s126 = sphi 0, %s124
    %s127 = sphi 0, %s126
    %s141 = sphi 0, %s127
    %s145 = sphi 0, %s145
    %s147 = sphi 0, %s145
    %s148 = sphi 0, %s147
    %s162 = sphi 0, %s148
    %s166 = sphi 0, %s166
    %s168 = sphi 0, %s166
    %s169 = sphi 0, %s168
    %s183 = sphi 0, %s169
    %s187 = sphi 0, %s187
    %s189 = sphi 0, %s187
    %s190 = sphi 0, %s189
    %s204 = sphi 0, %s190
    %s210 = sphi 0, %s212
    %s213 = sphi 0, %s210
    %s214 = sphi 0, %s213
    %s230 = sphi 0, %s214
  $region4: #{affinity_attention2.1} parent=0 // loop_header_branch
    %18 = sbr.rel (%p16) target = $region8
  $region5: #{affinity_attention2.1} parent=0 // loop_body
    %s20 = ssub.s32 %s15, 1
    %s21 = ssub.s32 %s15, 2
    %s28 = sadd.s32 1, %s23
    %p29 = scmp.ge.s32.totalorder %s28, 2
    %s30 = scalar_select %p29, 0, %s28
    %s31 = sadd.s32 1, %s22
    %s32 = scalar_select %p29, %s31, %s22
    %p33 = scmp.ge.s32.totalorder %s32, 2
    %s34 = scalar_select %p33, 0, %s32
    %s35 = ssub.s32 %s22, %s34
    %p36 = scmp.eq.s32.totalorder %s35, 0
    %s38 = sadd.s32 %s37, 1
    %s39 = scalar_select %p36, %s37, %s38
    %p42 = pneg %p36
    %p43 = scmp.eq.s32.totalorder %s15, 3
    %p44 = por %p42, %p43
    %p45 = scmp.ne.s32.totalorder %s37, %s40
    %p46 = scmp.eq.s32.totalorder %s15, 0
    %p47 = por %p45, %p46
    %p48 = scmp.ne.s32.totalorder %s37, %s40
    %p49 = scmp.eq.s32.totalorder %s20, 3
    %p50 = por %p48, %p49
    %p51 = scmp.ne.s32.totalorder %s40, %s41
    %p52 = scmp.eq.s32.totalorder %s20, 0
    %p53 = por %p51, %p52
    %p54 = scmp.ne.s32.totalorder %s40, %s41
    %p55 = scmp.eq.s32.totalorder %s21, 3
    %p56 = por %p54, %p55
    %p58 = scmp.ne.s32.totalorder %s41, %s57
    %p59 = scmp.eq.s32.totalorder %s21, 0
    %p60 = por %p58, %p59
    %s62 = sadd.s32 %s61, 1
    %p65 = scmp.eq.s32.totalorder %s15, 3
    %p66 = scmp.ne.s32.totalorder %s61, %s63
    %p67 = scmp.eq.s32.totalorder %s15, 0
    %p68 = por %p66, %p67
    %p69 = scmp.ne.s32.totalorder %s61, %s63
    %p70 = scmp.eq.s32.totalorder %s20, 3
    %p71 = por %p69, %p70
    %p72 = scmp.ne.s32.totalorder %s63, %s64
    %p73 = scmp.eq.s32.totalorder %s20, 0
    %p74 = por %p72, %p73
    %p75 = scmp.ne.s32.totalorder %s63, %s64
    %p76 = scmp.eq.s32.totalorder %s21, 3
    %p77 = por %p75, %p76
    %p79 = scmp.ne.s32.totalorder %s64, %s78
    %p80 = scmp.eq.s32.totalorder %s21, 0
    %p81 = por %p79, %p80
    %s83 = sadd.s32 %s82, 1
    %p86 = scmp.eq.s32.totalorder %s15, 3
    %p87 = scmp.ne.s32.totalorder %s82, %s84
    %p88 = scmp.eq.s32.totalorder %s15, 0
    %p89 = por %p87, %p88
    %p90 = scmp.ne.s32.totalorder %s82, %s84
    %p91 = scmp.eq.s32.totalorder %s20, 3
    %p92 = por %p90, %p91
    %p93 = scmp.ne.s32.totalorder %s84, %s85
    %p94 = scmp.eq.s32.totalorder %s20, 0
    %p95 = por %p93, %p94
    %p96 = scmp.ne.s32.totalorder %s84, %s85
    %p97 = scmp.eq.s32.totalorder %s21, 3
    %p98 = por %p96, %p97
    %p100 = scmp.ne.s32.totalorder %s85, %s99
    %p101 = scmp.eq.s32.totalorder %s21, 0
    %p102 = por %p100, %p101
    %s104 = sadd.s32 %s103, 1
    %p107 = scmp.eq.s32.totalorder %s15, 3
    %p108 = scmp.ne.s32.totalorder %s103, %s105
    %p109 = scmp.eq.s32.totalorder %s15, 0
    %p110 = por %p108, %p109
    %p111 = scmp.ne.s32.totalorder %s103, %s105
    %p112 = scmp.eq.s32.totalorder %s20, 3
    %p113 = por %p111, %p112
    %p114 = scmp.ne.s32.totalorder %s105, %s106
    %p115 = scmp.eq.s32.totalorder %s20, 0
    %p116 = por %p114, %p115
    %p117 = scmp.ne.s32.totalorder %s105, %s106
    %p118 = scmp.eq.s32.totalorder %s21, 3
    %p119 = por %p117, %p118
    %p121 = scmp.ne.s32.totalorder %s106, %s120
    %p122 = scmp.eq.s32.totalorder %s21, 0
    %p123 = por %p121, %p122
    %s125 = sadd.s32 %s124, 1
    %p128 = scmp.eq.s32.totalorder %s15, 3
    %p129 = scmp.ne.s32.totalorder %s124, %s126
    %p130 = scmp.eq.s32.totalorder %s15, 0
    %p131 = por %p129, %p130
    %p132 = scmp.ne.s32.totalorder %s124, %s126
    %p133 = scmp.eq.s32.totalorder %s20, 3
    %p134 = por %p132, %p133
    %p135 = scmp.ne.s32.totalorder %s126, %s127
    %p136 = scmp.eq.s32.totalorder %s20, 0
    %p137 = por %p135, %p136
    %p138 = scmp.ne.s32.totalorder %s126, %s127
    %p139 = scmp.eq.s32.totalorder %s21, 3
    %p140 = por %p138, %p139
    %p142 = scmp.ne.s32.totalorder %s127, %s141
    %p143 = scmp.eq.s32.totalorder %s21, 0
    %p144 = por %p142, %p143
    %s146 = sadd.s32 %s145, 1
    %p149 = scmp.eq.s32.totalorder %s15, 3
    %p150 = scmp.ne.s32.totalorder %s145, %s147
    %p151 = scmp.eq.s32.totalorder %s15, 0
    %p152 = por %p150, %p151
    %p153 = scmp.ne.s32.totalorder %s145, %s147
    %p154 = scmp.eq.s32.totalorder %s20, 3
    %p155 = por %p153, %p154
    %p156 = scmp.ne.s32.totalorder %s147, %s148
    %p157 = scmp.eq.s32.totalorder %s20, 0
    %p158 = por %p156, %p157
    %p159 = scmp.ne.s32.totalorder %s147, %s148
    %p160 = scmp.eq.s32.totalorder %s21, 3
    %p161 = por %p159, %p160
    %p163 = scmp.ne.s32.totalorder %s148, %s162
    %p164 = scmp.eq.s32.totalorder %s21, 0
    %p165 = por %p163, %p164
    %s167 = sadd.s32 %s166, 1
    %p170 = scmp.eq.s32.totalorder %s15, 3
    %p171 = scmp.ne.s32.totalorder %s166, %s168
    %p172 = scmp.eq.s32.totalorder %s15, 0
    %p173 = por %p171, %p172
    %p174 = scmp.ne.s32.totalorder %s166, %s168
    %p175 = scmp.eq.s32.totalorder %s20, 3
    %p176 = por %p174, %p175
    %p177 = scmp.ne.s32.totalorder %s168, %s169
    %p178 = scmp.eq.s32.totalorder %s20, 0
    %p179 = por %p177, %p178
    %p180 = scmp.ne.s32.totalorder %s168, %s169
    %p181 = scmp.eq.s32.totalorder %s21, 3
    %p182 = por %p180, %p181
    %p184 = scmp.ne.s32.totalorder %s169, %s183
    %p185 = scmp.eq.s32.totalorder %s21, 0
    %p186 = por %p184, %p185
    %s188 = sadd.s32 %s187, 1
    %p191 = scmp.eq.s32.totalorder %s15, 3
    %p192 = scmp.ne.s32.totalorder %s187, %s189
    %p193 = scmp.eq.s32.totalorder %s15, 0
    %p194 = por %p192, %p193
    %p195 = scmp.ne.s32.totalorder %s187, %s189
    %p196 = scmp.eq.s32.totalorder %s20, 3
    %p197 = por %p195, %p196
    %p198 = scmp.ne.s32.totalorder %s189, %s190
    %p199 = scmp.eq.s32.totalorder %s20, 0
    %p200 = por %p198, %p199
    %p201 = scmp.ne.s32.totalorder %s189, %s190
    %p202 = scmp.eq.s32.totalorder %s21, 3
    %p203 = por %p201, %p202
    %p205 = scmp.ne.s32.totalorder %s190, %s204
    %p206 = scmp.eq.s32.totalorder %s21, 0
    %p207 = por %p205, %p206
    %s208 = ssub.s32 %s22, %s34
    %p209 = scmp.eq.s32.totalorder %s208, 0
    %s211 = sadd.s32 %s210, 1
    %s212 = scalar_select %p209, %s210, %s211
    %p215 = pneg %p209
    %p216 = scmp.eq.s32.totalorder %s15, 3
    %p217 = por %p215, %p216
    %p218 = scmp.ne.s32.totalorder %s210, %s213
    %p219 = scmp.eq.s32.totalorder %s15, 0
    %p220 = por %p218, %p219
    %p221 = scmp.ne.s32.totalorder %s210, %s213
    %p222 = scmp.eq.s32.totalorder %s20, 3
    %p223 = por %p221, %p222
    %p224 = scmp.ne.s32.totalorder %s213, %s214
    %p225 = scmp.eq.s32.totalorder %s20, 0
    %p226 = por %p224, %p225
    %p227 = scmp.ne.s32.totalorder %s213, %s214
    %p228 = scmp.eq.s32.totalorder %s21, 3
    %p229 = por %p227, %p228
    %p231 = scmp.ne.s32.totalorder %s214, %s230
    %p232 = scmp.eq.s32.totalorder %s21, 0
    %p233 = por %p231, %p232
    %p234 = scmp.le.s32.totalorder 1, %s15
    %p235 = scmp.lt.s32.totalorder %s15, 5
    %p236 = pnand %p234, %p235
    %p237 = pneg %p236
    // Predicated region
    $region9: #{affinity_attention2.1} parent=5 // pred_check
      _
    $region10: #{affinity_attention2.1} parent=5 // pred_check_branch
      %239 = sbr.rel (%p236) target = $region12
    $region11: #{affinity_attention2.1} parent=5 // pred_region
      %s240 = ssub.s32 %s15, 1
      // Predicated region
      $region13: #{affinity_attention2.1} parent=11 // pred_check
        %p241 = pneg %p74
      $region14: #{affinity_attention2.1} parent=11 // pred_check_branch
        %243 = sbr.rel (%p241) target = $region16
      $region15: #{affinity_attention2.1} parent=11 // pred_region
        _
      $region16: #{affinity_attention2.1} parent=11 // pred_fallthru
        _
      // Predicated region
      $region17: #{affinity_attention2.1} parent=11 // pred_check
        %p244 = pneg %p95
      $region18: #{affinity_attention2.1} parent=11 // pred_check_branch
        %246 = sbr.rel (%p244) target = $region20
      $region19: #{affinity_attention2.1} parent=11 // pred_region
        _
      $region20: #{affinity_attention2.1} parent=11 // pred_fallthru
        _
      // Predicated region
      $region21: #{affinity_attention2.1} parent=11 // pred_check
        %p247 = pneg %p116
      $region22: #{affinity_attention2.1} parent=11 // pred_check_branch
        %249 = sbr.rel (%p247) target = $region24
      $region23: #{affinity_attention2.1} parent=11 // pred_region
        _
      $region24: #{affinity_attention2.1} parent=11 // pred_fallthru
        _
      // Predicated region
      $region25: #{affinity_attention2.1} parent=11 // pred_check
        %p250 = pneg %p137
      $region26: #{affinity_attention2.1} parent=11 // pred_check_branch
        %252 = sbr.rel (%p250) target = $region28
      $region27: #{affinity_attention2.1} parent=11 // pred_region
        _
      $region28: #{affinity_attention2.1} parent=11 // pred_fallthru
        _
      // Predicated region
      $region29: #{affinity_attention2.1} parent=11 // pred_check
        %p253 = pneg %p158
      $region30: #{affinity_attention2.1} parent=11 // pred_check_branch
        %255 = sbr.rel (%p253) target = $region32
      $region31: #{affinity_attention2.1} parent=11 // pred_region
        _
      $region32: #{affinity_attention2.1} parent=11 // pred_fallthru
        _
      // Predicated region
      $region33: #{affinity_attention2.1} parent=11 // pred_check
        %p256 = pneg %p179
      $region34: #{affinity_attention2.1} parent=11 // pred_check_branch
        %258 = sbr.rel (%p256) target = $region36
      $region35: #{affinity_attention2.1} parent=11 // pred_region
        _
      $region36: #{affinity_attention2.1} parent=11 // pred_fallthru
        _
      // Predicated region
      $region37: #{affinity_attention2.1} parent=11 // pred_check
        %p259 = pneg %p200
      $region38: #{affinity_attention2.1} parent=11 // pred_check_branch
        %261 = sbr.rel (%p259) target = $region40
      $region39: #{affinity_attention2.1} parent=11 // pred_region
        _
      $region40: #{affinity_attention2.1} parent=11 // pred_fallthru
        _
    $region12: #{affinity_attention2.1} parent=5 // pred_fallthru
      _
    %p262 = scmp.lt.s32.totalorder %s15, 4
    // Predicated region
    $region41: #{affinity_attention2.1} parent=5 // pred_check
      %p263 = pneg %p262
    $region42: #{affinity_attention2.1} parent=5 // pred_check_branch
      %265 = sbr.rel (%p263) target = $region44
    $region43: #{affinity_attention2.1} parent=5 // pred_region
      // Predicated region
      $region45: #{affinity_attention2.1} parent=43 // pred_check
        %p266 = pneg %p47
      $region46: #{affinity_attention2.1} parent=43 // pred_check_branch
        %268 = sbr.rel (%p266) target = $region48
      $region47: #{affinity_attention2.1} parent=43 // pred_region
        %p269 = scmp.lt.s32.totalorder %s22, 1
        %s270 = scalar_select %p269, %s22, 1
        %s271 = smul.addr %s270, 32
        %s272 = smul.addr %s271, 8
        %s273 = scalar_lea.vmem %s0, %s272
      $region48: #{affinity_attention2.1} parent=43 // pred_fallthru
        _
    $region44: #{affinity_attention2.1} parent=5 // pred_fallthru
      _
    %p274 = scmp.le.s32.totalorder 1, %s15
    %p275 = scmp.lt.s32.totalorder %s15, 5
    %p276 = pnand %p274, %p275
    %p277 = pneg %p276
    // Predicated region
    $region49: #{affinity_attention2.1} parent=5 // pred_check
      _
    $region50: #{affinity_attention2.1} parent=5 // pred_check_branch
      %279 = sbr.rel (%p276) target = $region52
    $region51: #{affinity_attention2.1} parent=5 // pred_region
      %s280 = ssub.s32 %s15, 1
      %p281 = scmp.lt.s32.totalorder %s24, 1
      %s282 = scalar_select %p281, %s24, 1
      %s283 = smul.addr %s282, 32
      %s284 = smul.addr %s283, 8
      %s285 = scalar_lea.vmem %s0, %s284
      %p286 = pneg %p53
      %p287 = pneg %p50
      %p288 = pneg %p74
      %p289 = pneg %p71
      %p290 = pneg %p95
      %p291 = pneg %p92
      %p292 = pneg %p116
      %p293 = pneg %p113
      %p294 = pneg %p137
      %p295 = pneg %p134
      %p296 = pneg %p158
      %p297 = pneg %p155
      %p298 = pneg %p179
      %p299 = pneg %p176
      %p300 = pneg %p200
      %p301 = pneg %p197
      %p302 = pneg %p226
      %p303 = pneg %p223
      %p304 = scmp.lt.s32.totalorder %s24, 1
      %s305 = scalar_select %p304, %s24, 1
      %s306 = smul.addr %s305, 32
      %s307 = smul.addr %s306, 8
      %s308 = scalar_lea.vmem %s8, %s307
      %p309 = scmp.lt.s32.totalorder %s24, 1
      %s310 = scalar_select %p309, %s24, 1
      %s311 = smul.addr %s310, 32
      %s312 = smul.addr %s311, 8
      %s313 = scalar_lea.vmem %s0, %s312
      %p314 = scmp.lt.s32.totalorder %s24, 1
      %s315 = scalar_select %p314, %s24, 1
      %s316 = smul.addr %s315, 32
      %s317 = smul.addr %s316, 8
      %s318 = scalar_lea.vmem %s8, %s317
      %p320 = scmp.eq.s32.totalorder %s25, 0
      // Predicated region
      $region53: #{affinity_attention2.1} parent=51 // pred_check
        %p321 = pneg %p320
      $region54: #{affinity_attention2.1} parent=51 // pred_check_branch
        %323 = sbr.rel (%p321) target = $region56
      $region55: #{affinity_attention2.1} parent=51 // pred_region
        %v324 = vld [vmem:[%s313] sm:$0xff]
        %v325 = vld [vmem:[%s313 + $0x8] sm:$0xff]
        %v326 = vld [vmem:[%s313 + $0x10] sm:$0xff]
        %v327 = vld [vmem:[%s313 + $0x18] sm:$0xff]
        %v328 = vld [vmem:[%s313 + $0x20] sm:$0xff]
        %v329 = vld [vmem:[%s313 + $0x28] sm:$0xff]
        %v330 = vld [vmem:[%s313 + $0x30] sm:$0xff]
        %v331 = vld [vmem:[%s313 + $0x38] sm:$0xff]
        %v332 = vld [vmem:[%s313 + $0x40] sm:$0xff]
        %v333 = vld [vmem:[%s313 + $0x48] sm:$0xff]
        %v334 = vld [vmem:[%s313 + $0x50] sm:$0xff]
        %v335 = vld [vmem:[%s313 + $0x58] sm:$0xff]
        %v336 = vld [vmem:[%s313 + $0x60] sm:$0xff]
        %v337 = vld [vmem:[%s313 + $0x68] sm:$0xff]
        %v338 = vld [vmem:[%s313 + $0x70] sm:$0xff]
        %v339 = vld [vmem:[%s313 + $0x78] sm:$0xff]
        %v340 = vld [vmem:[%s313 + $0x80] sm:$0xff]
        %v341 = vld [vmem:[%s313 + $0x88] sm:$0xff]
        %v342 = vld [vmem:[%s313 + $0x90] sm:$0xff]
        %v343 = vld [vmem:[%s313 + $0x98] sm:$0xff]
        %v344 = vld [vmem:[%s313 + $0xa0] sm:$0xff]
        %v345 = vld [vmem:[%s313 + $0xa8] sm:$0xff]
        %v346 = vld [vmem:[%s313 + $0xb0] sm:$0xff]
        %v347 = vld [vmem:[%s313 + $0xb8] sm:$0xff]
        %v348 = vld [vmem:[%s313 + $0xc0] sm:$0xff]
        %v349 = vld [vmem:[%s313 + $0xc8] sm:$0xff]
        %v350 = vld [vmem:[%s313 + $0xd0] sm:$0xff]
        %v351 = vld [vmem:[%s313 + $0xd8] sm:$0xff]
        %v352 = vld [vmem:[%s313 + $0xe0] sm:$0xff]
        %v353 = vld [vmem:[%s313 + $0xe8] sm:$0xff]
        %v354 = vld [vmem:[%s313 + $0xf0] sm:$0xff]
        %v355 = vld [vmem:[%s313 + $0xf8] sm:$0xff]
        %v356 = vpack.c.bf16 %v325, %v324
        %v357 = vpack.c.bf16 %v327, %v326
        %v358 = vpack.c.bf16 %v329, %v328
        %v359 = vpack.c.bf16 %v331, %v330
        %v360 = vpack.c.bf16 %v333, %v332
        %v361 = vpack.c.bf16 %v335, %v334
        %v362 = vpack.c.bf16 %v337, %v336
        %v363 = vpack.c.bf16 %v339, %v338
        %v364 = vpack.c.bf16 %v341, %v340
        %v365 = vpack.c.bf16 %v343, %v342
        %v366 = vpack.c.bf16 %v345, %v344
        %v367 = vpack.c.bf16 %v347, %v346
        %v368 = vpack.c.bf16 %v349, %v348
        %v369 = vpack.c.bf16 %v351, %v350
        %v370 = vpack.c.bf16 %v353, %v352
        %v371 = vpack.c.bf16 %v355, %v354
        %v372 = vlaneseq
        %v373 = vshrl.u32 %v372, 7
        %v374 = vadd.s32 %v373, 8
        %v375 = vadd.s32 %v373, 16
        %v376 = vadd.s32 %v373, 24
        %v377 = vadd.s32 %v373, 32
        %v378 = vadd.s32 %v373, 40
        %v379 = vadd.s32 %v373, 48
        %v380 = vadd.s32 %v373, 56
        %v381 = vadd.s32 %v373, 64
        %v382 = vadd.s32 %v373, 72
        %v383 = vadd.s32 %v373, 80
        %v384 = vadd.s32 %v373, 88
        %v385 = vadd.s32 %v373, 96
        %v386 = vadd.s32 %v373, 104
        %v387 = vadd.s32 %v373, 112
        %v388 = vadd.s32 %v373, 120
        %v389 = vadd.s32 %v373, 128
        %v390 = vadd.s32 %v373, 136
        %v391 = vadd.s32 %v373, 144
        %v392 = vadd.s32 %v373, 152
        %v393 = vadd.s32 %v373, 160
        %v394 = vadd.s32 %v373, 168
        %v395 = vadd.s32 %v373, 176
        %v396 = vadd.s32 %v373, 184
        %v397 = vadd.s32 %v373, 192
        %v398 = vadd.s32 %v373, 200
        %v399 = vadd.s32 %v373, 208
        %v400 = vadd.s32 %v373, 216
        %v401 = vadd.s32 %v373, 224
        %v402 = vadd.s32 %v373, 232
        %v403 = vadd.s32 %v373, 240
        %v404 = vadd.s32 %v373, 248
        %v405 = vld [vmem:[%s1] sm:$0xf]
        %v406 = vld [vmem:[%s1 + $0x4] sm:$0xf]
        %v409 = vunpack.c.l.b16 %v405
        %v410 = vunpack.c.l.b16 %v406
        %v411 = vpack.c.b16 %v410, %v409
        %vm413 = vcmask 130048
        %v415 = vsel %vm413, %v356, 0
        %v418 = vsel %vm413, %v357, 0
        %v421 = vsel %vm413, %v358, 0
        %v424 = vsel %vm413, %v359, 0
        %v427 = vsel %vm413, %v360, 0
        %v430 = vsel %vm413, %v361, 0
        %v433 = vsel %vm413, %v362, 0
        %v436 = vsel %vm413, %v363, 0
        %v439 = vsel %vm413, %v364, 0
        %v442 = vsel %vm413, %v365, 0
        %v445 = vsel %vm413, %v366, 0
        %v448 = vsel %vm413, %v367, 0
        %v451 = vsel %vm413, %v368, 0
        %v454 = vsel %vm413, %v369, 0
        %v457 = vsel %vm413, %v370, 0
        %v460 = vsel %vm413, %v371, 0
        %462 = vmatprep.subr.bf16.mxu0 0
        %463 = vmatpush1.bf16.msra.mxu0 %v411
        %464 = vmatprep.subr.bf16.mxu0 0
        %465 = vmatpush1.bf16.msra.mxu0 0
        %466 = vmatprep.subr.bf16.mxu0 0
        %467 = vmatpush1.bf16.msra.mxu0 0
        %468 = vmatprep.subr.bf16.mxu0 0
        %469 = vmatpush1.bf16.msra.mxu0 0
        %470 = vmatprep.subr.bf16.mxu0 0
        %471 = vmatpush1.bf16.msra.mxu0 0
        %472 = vmatprep.subr.bf16.mxu0 0
        %473 = vmatpush1.bf16.msra.mxu0 0
        %474 = vmatprep.subr.bf16.mxu0 0
        %475 = vmatpush1.bf16.msra.mxu0 0
        %476 = vmatprep.subr.bf16.mxu0 0
        %477 = vmatpush1.bf16.msra.mxu0 0
        %478 = vmatprep.subr.bf16.mxu0 0
        %479 = vmatpush1.bf16.msra.mxu0 0
        %480 = vmatprep.subr.bf16.mxu0 0
        %481 = vmatpush1.bf16.msra.mxu0 0
        %482 = vmatprep.subr.bf16.mxu0 0
        %483 = vmatpush1.bf16.msra.mxu0 0
        %484 = vmatprep.subr.bf16.mxu0 0
        %485 = vmatpush1.bf16.msra.mxu0 0
        %486 = vmatprep.subr.bf16.mxu0 0
        %487 = vmatpush1.bf16.msra.mxu0 0
        %488 = vmatprep.subr.bf16.mxu0 0
        %489 = vmatpush1.bf16.msra.mxu0 0
        %490 = vmatprep.subr.bf16.mxu0 0
        %491 = vmatpush1.bf16.msra.mxu0 0
        %492 = vmatprep.subr.bf16.mxu0 0
        %493 = vmatpush1.bf16.msra.mxu0 0
        %494 = vmatprep.mubr.bf16.mxu0 0
        %495 = vmatmul.mubr.bf16.gmra.mrb[0].mxu0 %v415
        %v496 = vpop.f32.mrb[0].mxu0
        %v497 = vadd.f32 0.0, %v496
        %v498 = vpop.f32.mrb[0].mxu0
        %v499 = vpop.f32.mrb[0].mxu0
        %v500 = vadd.f32 0.0, %v499
        %v501 = vpop.f32.mrb[0].mxu0
        %502 = vmatprep.mubr.bf16.mxu0 0
        %503 = vmatmul.mubr.bf16.gmra.mrb[0].mxu0 %v418
        %v504 = vpop.f32.mrb[0].mxu0
        %v505 = vadd.f32 0.0, %v504
        %v506 = vpop.f32.mrb[0].mxu0
        %v507 = vpop.f32.mrb[0].mxu0
        %v508 = vadd.f32 0.0, %v507
        %v509 = vpop.f32.mrb[0].mxu0
        %510 = vmatprep.mubr.bf16.mxu0 0
        %511 = vmatmul.mubr.bf16.gmra.mrb[0].mxu0 %v421
        %v512 = vpop.f32.mrb[0].mxu0
        %v513 = vadd.f32 0.0, %v512
        %v514 = vpop.f32.mrb[0].mxu0
        %v515 = vpop.f32.mrb[0].mxu0
        %v516 = vadd.f32 0.0, %v515
        %v517 = vpop.f32.mrb[0].mxu0
        %518 = vmatprep.mubr.bf16.mxu0 0
        %519 = vmatmul.mubr.bf16.gmra.mrb[0].mxu0 %v424
        %v520 = vpop.f32.mrb[0].mxu0
        %v521 = vadd.f32 0.0, %v520
        %v522 = vpop.f32.mrb[0].mxu0
        %v523 = vpop.f32.mrb[0].mxu0
        %v524 = vadd.f32 0.0, %v523
        %v525 = vpop.f32.mrb[0].mxu0
        %526 = vmatprep.mubr.bf16.mxu0 0
        %527 = vmatmul.mubr.bf16.gmra.mrb[0].mxu0 %v427
        %v528 = vpop.f32.mrb[0].mxu0
        %v529 = vadd.f32 0.0, %v528
        %v530 = vpop.f32.mrb[0].mxu0
        %v531 = vpop.f32.mrb[0].mxu0
        %v532 = vadd.f32 0.0, %v531
        %v533 = vpop.f32.mrb[0].mxu0
        %534 = vmatprep.mubr.bf16.mxu0 0
        %535 = vmatmul.mubr.bf16.gmra.mrb[0].mxu0 %v430
        %v536 = vpop.f32.mrb[0].mxu0
        %v537 = vadd.f32 0.0, %v536
        %v538 = vpop.f32.mrb[0].mxu0
        %v539 = vpop.f32.mrb[0].mxu0
        %v540 = vadd.f32 0.0, %v539
        %v541 = vpop.f32.mrb[0].mxu0
        %542 = vmatprep.mubr.bf16.mxu0 0
        %543 = vmatmul.mubr.bf16.gmra.mrb[0].mxu0 %v433
        %v544 = vpop.f32.mrb[0].mxu0
        %v545 = vadd.f32 0.0, %v544
        %v546 = vpop.f32.mrb[0].mxu0
        %v547 = vpop.f32.mrb[0].mxu0
        %v548 = vadd.f32 0.0, %v547
        %v549 = vpop.f32.mrb[0].mxu0
        %550 = vmatprep.mubr.bf16.mxu0 0
        %551 = vmatmul.mubr.bf16.gmra.mrb[0].mxu0 %v436
        %v552 = vpop.f32.mrb[0].mxu0
        %v553 = vadd.f32 0.0, %v552
        %v554 = vpop.f32.mrb[0].mxu0
        %v555 = vpop.f32.mrb[0].mxu0
        %v556 = vadd.f32 0.0, %v555
        %v557 = vpop.f32.mrb[0].mxu0
        %558 = vmatprep.mubr.bf16.mxu0 0
        %559 = vmatmul.mubr.bf16.gmra.mrb[0].mxu0 %v439
        %v560 = vpop.f32.mrb[0].mxu0
        %v561 = vadd.f32 0.0, %v560
        %v562 = vpop.f32.mrb[0].mxu0
        %v563 = vpop.f32.mrb[0].mxu0
        %v564 = vadd.f32 0.0, %v563
        %v565 = vpop.f32.mrb[0].mxu0
        %566 = vmatprep.mubr.bf16.mxu0 0
        %567 = vmatmul.mubr.bf16.gmra.mrb[0].mxu0 %v442
        %v568 = vpop.f32.mrb[0].mxu0
        %v569 = vadd.f32 0.0, %v568
        %v570 = vpop.f32.mrb[0].mxu0
        %v571 = vpop.f32.mrb[0].mxu0
        %v572 = vadd.f32 0.0, %v571
        %v573 = vpop.f32.mrb[0].mxu0
        %574 = vmatprep.mubr.bf16.mxu0 0
        %575 = vmatmul.mubr.bf16.gmra.mrb[0].mxu0 %v445
        %v576 = vpop.f32.mrb[0].mxu0
        %v577 = vadd.f32 0.0, %v576
        %v578 = vpop.f32.mrb[0].mxu0
        %v579 = vpop.f32.mrb[0].mxu0
        %v580 = vadd.f32 0.0, %v579
        %v581 = vpop.f32.mrb[0].mxu0
        %582 = vmatprep.mubr.bf16.mxu0 0
        %583 = vmatmul.mubr.bf16.gmra.mrb[0].mxu0 %v448
        %v584 = vpop.f32.mrb[0].mxu0
        %v585 = vadd.f32 0.0, %v584
        %v586 = vpop.f32.mrb[0].mxu0
        %v587 = vpop.f32.mrb[0].mxu0
        %v588 = vadd.f32 0.0, %v587
        %v589 = vpop.f32.mrb[0].mxu0
        %590 = vmatprep.mubr.bf16.mxu0 0
        %591 = vmatmul.mubr.bf16.gmra.mrb[0].mxu0 %v451
        %v592 = vpop.f32.mrb[0].mxu0
        %v593 = vadd.f32 0.0, %v592
        %v594 = vpop.f32.mrb[0].mxu0
        %v595 = vpop.f32.mrb[0].mxu0
        %v596 = vadd.f32 0.0, %v595
        %v597 = vpop.f32.mrb[0].mxu0
        %598 = vmatprep.mubr.bf16.mxu0 0
        %599 = vmatmul.mubr.bf16.gmra.mrb[0].mxu0 %v454
        %v600 = vpop.f32.mrb[0].mxu0
        %v601 = vadd.f32 0.0, %v600
        %v602 = vpop.f32.mrb[0].mxu0
        %v603 = vpop.f32.mrb[0].mxu0
        %v604 = vadd.f32 0.0, %v603
        %v605 = vpop.f32.mrb[0].mxu0
        %606 = vmatprep.mubr.bf16.mxu0 0
        %607 = vmatmul.mubr.bf16.gmra.mrb[0].mxu0 %v457
        %v608 = vpop.f32.mrb[0].mxu0
        %v609 = vadd.f32 0.0, %v608
        %v610 = vpop.f32.mrb[0].mxu0
        %v611 = vpop.f32.mrb[0].mxu0
        %v612 = vadd.f32 0.0, %v611
        %v613 = vpop.f32.mrb[0].mxu0
        %614 = vmatprep.mubr.bf16.mxu0 0
        %615 = vmatmul.mubr.bf16.gmra.mrb[0].mxu0 %v460
        %v616 = vpop.f32.mrb[0].mxu0
        %v617 = vadd.f32 0.0, %v616
        %v618 = vpop.f32.mrb[0].mxu0
        %v619 = vpop.f32.mrb[0].mxu0
        %v620 = vadd.f32 0.0, %v619
        %v621 = vpop.f32.mrb[0].mxu0
        %622 = vdwg.mxu0
        %s623 = scalar_lea.vmem %s1, 8
        %v624 = vld [vmem:[%s623] sm:$0xf]
        %v625 = vld [vmem:[%s623 + $0x4] sm:$0xf]
        %v628 = vunpack.c.l.b16 %v624
        %v629 = vunpack.c.l.b16 %v625
        %v630 = vpack.c.b16 %v629, %v628
        %632 = vmatprep.subr.bf16.mxu0 0
        %633 = vmatpush1.bf16.msra.mxu0 %v630
        %634 = vmatprep.subr.bf16.mxu0 0
        %635 = vmatpush1.bf16.msra.mxu0 0
        %636 = vmatprep.subr.bf16.mxu0 0
        %637 = vmatpush1.bf16.msra.mxu0 0
        %638 = vmatprep.subr.bf16.mxu0 0
        %639 = vmatpush1.bf16.msra.mxu0 0
        %640 = vmatprep.subr.bf16.mxu0 0
        %641 = vmatpush1.bf16.msra.mxu0 0
        %642 = vmatprep.subr.bf16.mxu0 0
        %643 = vmatpush1.bf16.msra.mxu0 0
        %644 = vmatprep.subr.bf16.mxu0 0
        %645 = vmatpush1.bf16.msra.mxu0 0
        %646 = vmatprep.subr.bf16.mxu0 0
        %647 = vmatpush1.bf16.msra.mxu0 0
        %648 = vmatprep.subr.bf16.mxu0 0
        %649 = vmatpush1.bf16.msra.mxu0 0
        %650 = vmatprep.subr.bf16.mxu0 0
        %651 = vmatpush1.bf16.msra.mxu0 0
        %652 = vmatprep.subr.bf16.mxu0 0
        %653 = vmatpush1.bf16.msra.mxu0 0
        %654 = vmatprep.subr.bf16.mxu0 0
        %655 = vmatpush1.bf16.msra.mxu0 0
        %656 = vmatprep.subr.bf16.mxu0 0
        %657 = vmatpush1.bf16.msra.mxu0 0
        %658 = vmatprep.subr.bf16.mxu0 0
        %659 = vmatpush1.bf16.msra.mxu0 0
        %660 = vmatprep.subr.bf16.mxu0 0
        %661 = vmatpush1.bf16.msra.mxu0 0
        %662 = vmatprep.subr.bf16.mxu0 0
        %663 = vmatpush1.bf16.msra.mxu0 0
        %664 = vmatprep.mubr.bf16.mxu0 0
        %665 = vmatmul.mubr.bf16.gmra.mrb[0].mxu0 %v415
        %v666 = vpop.f32.mrb[0].mxu0
        %v667 = vadd.f32 0.0, %v666
        %v668 = vpop.f32.mrb[0].mxu0
        %v669 = vpop.f32.mrb[0].mxu0
        %v670 = vadd.f32 0.0, %v669
        %v671 = vpop.f32.mrb[0].mxu0
        %672 = vmatprep.mubr.bf16.mxu0 0
        %673 = vmatmul.mubr.bf16.gmra.mrb[0].mxu0 %v418
        %v674 = vpop.f32.mrb[0].mxu0
        %v675 = vadd.f32 0.0, %v674
        %v676 = vpop.f32.mrb[0].mxu0
        %v677 = vpop.f32.mrb[0].mxu0
        %v678 = vadd.f32 0.0, %v677
        %v679 = vpop.f32.mrb[0].mxu0
        %680 = vmatprep.mubr.bf16.mxu0 0
        %681 = vmatmul.mubr.bf16.gmra.mrb[0].mxu0 %v421
        %v682 = vpop.f32.mrb[0].mxu0
        %v683 = vadd.f32 0.0, %v682
        %v684 = vpop.f32.mrb[0].mxu0
        %v685 = vpop.f32.mrb[0].mxu0
        %v686 = vadd.f32 0.0, %v685
        %v687 = vpop.f32.mrb[0].mxu0
        %688 = vmatprep.mubr.bf16.mxu0 0
        %689 = vmatmul.mubr.bf16.gmra.mrb[0].mxu0 %v424
        %v690 = vpop.f32.mrb[0].mxu0
        %v691 = vadd.f32 0.0, %v690
        %v692 = vpop.f32.mrb[0].mxu0
        %v693 = vpop.f32.mrb[0].mxu0
        %v694 = vadd.f32 0.0, %v693
        %v695 = vpop.f32.mrb[0].mxu0
        %696 = vmatprep.mubr.bf16.mxu0 0
        %697 = vmatmul.mubr.bf16.gmra.mrb[0].mxu0 %v427
        %v698 = vpop.f32.mrb[0].mxu0
        %v699 = vadd.f32 0.0, %v698
        %v700 = vpop.f32.mrb[0].mxu0
        %v701 = vpop.f32.mrb[0].mxu0
        %v702 = vadd.f32 0.0, %v701
        %v703 = vpop.f32.mrb[0].mxu0
        %704 = vmatprep.mubr.bf16.mxu0 0
        %705 = vmatmul.mubr.bf16.gmra.mrb[0].mxu0 %v430
        %v706 = vpop.f32.mrb[0].mxu0
        %v707 = vadd.f32 0.0, %v706
        %v708 = vpop.f32.mrb[0].mxu0
        %v709 = vpop.f32.mrb[0].mxu0
        %v710 = vadd.f32 0.0, %v709
        %v711 = vpop.f32.mrb[0].mxu0
        %712 = vmatprep.mubr.bf16.mxu0 0
        %713 = vmatmul.mubr.bf16.gmra.mrb[0].mxu0 %v433
        %v714 = vpop.f32.mrb[0].mxu0
        %v715 = vadd.f32 0.0, %v714
        %v716 = vpop.f32.mrb[0].mxu0
        %v717 = vpop.f32.mrb[0].mxu0
        %v718 = vadd.f32 0.0, %v717
        %v719 = vpop.f32.mrb[0].mxu0
        %720 = vmatprep.mubr.bf16.mxu0 0
        %721 = vmatmul.mubr.bf16.gmra.mrb[0].mxu0 %v436
        %v722 = vpop.f32.mrb[0].mxu0
        %v723 = vadd.f32 0.0, %v722
        %v724 = vpop.f32.mrb[0].mxu0
        %v725 = vpop.f32.mrb[0].mxu0
        %v726 = vadd.f32 0.0, %v725
        %v727 = vpop.f32.mrb[0].mxu0
        %728 = vmatprep.mubr.bf16.mxu0 0
        %729 = vmatmul.mubr.bf16.gmra.mrb[0].mxu0 %v439
        %v730 = vpop.f32.mrb[0].mxu0
        %v731 = vadd.f32 0.0, %v730
        %v732 = vpop.f32.mrb[0].mxu0
        %v733 = vpop.f32.mrb[0].mxu0
        %v734 = vadd.f32 0.0, %v733
        %v735 = vpop.f32.mrb[0].mxu0
        %736 = vmatprep.mubr.bf16.mxu0 0
        %737 = vmatmul.mubr.bf16.gmra.mrb[0].mxu0 %v442
        %v738 = vpop.f32.mrb[0].mxu0
        %v739 = vadd.f32 0.0, %v738
        %v740 = vpop.f32.mrb[0].mxu0
        %v741 = vpop.f32.mrb[0].mxu0
        %v742 = vadd.f32 0.0, %v741
        %v743 = vpop.f32.mrb[0].mxu0
        %744 = vmatprep.mubr.bf16.mxu0 0
        %745 = vmatmul.mubr.bf16.gmra.mrb[0].mxu0 %v445
        %v746 = vpop.f32.mrb[0].mxu0
        %v747 = vadd.f32 0.0, %v746
        %v748 = vpop.f32.mrb[0].mxu0
        %v749 = vpop.f32.mrb[0].mxu0
        %v750 = vadd.f32 0.0, %v749
        %v751 = vpop.f32.mrb[0].mxu0
        %752 = vmatprep.mubr.bf16.mxu0 0
        %753 = vmatmul.mubr.bf16.gmra.mrb[0].mxu0 %v448
        %v754 = vpop.f32.mrb[0].mxu0
        %v755 = vadd.f32 0.0, %v754
        %v756 = vpop.f32.mrb[0].mxu0
        %v757 = vpop.f32.mrb[0].mxu0
        %v758 = vadd.f32 0.0, %v757
        %v759 = vpop.f32.mrb[0].mxu0
        %760 = vmatprep.mubr.bf16.mxu0 0
        %761 = vmatmul.mubr.bf16.gmra.mrb[0].mxu0 %v451
        %v762 = vpop.f32.mrb[0].mxu0
        %v763 = vadd.f32 0.0, %v762
        %v764 = vpop.f32.mrb[0].mxu0
        %v765 = vpop.f32.mrb[0].mxu0
        %v766 = vadd.f32 0.0, %v765
        %v767 = vpop.f32.mrb[0].mxu0
        %768 = vmatprep.mubr.bf16.mxu0 0
        %769 = vmatmul.mubr.bf16.gmra.mrb[0].mxu0 %v454
        %v770 = vpop.f32.mrb[0].mxu0
        %v771 = vadd.f32 0.0, %v770
        %v772 = vpop.f32.mrb[0].mxu0
        %v773 = vpop.f32.mrb[0].mxu0
        %v774 = vadd.f32 0.0, %v773
        %v775 = vpop.f32.mrb[0].mxu0
        %776 = vmatprep.mubr.bf16.mxu0 0
        %777 = vmatmul.mubr.bf16.gmra.mrb[0].mxu0 %v457
        %v778 = vpop.f32.mrb[0].mxu0
        %v779 = vadd.f32 0.0, %v778
        %v780 = vpop.f32.mrb[0].mxu0
        %v781 = vpop.f32.mrb[0].mxu0
        %v782 = vadd.f32 0.0, %v781
        %v783 = vpop.f32.mrb[0].mxu0
        %784 = vmatprep.mubr.bf16.mxu0 0
        %785 = vmatmul.mubr.bf16.gmra.mrb[0].mxu0 %v460
        %v786 = vpop.f32.mrb[0].mxu0
        %v787 = vadd.f32 0.0, %v786
        %v788 = vpop.f32.mrb[0].mxu0
        %v789 = vpop.f32.mrb[0].mxu0
        %v790 = vadd.f32 0.0, %v789
        %v791 = vpop.f32.mrb[0].mxu0
        %792 = vdwg.mxu0
        %s793 = scalar_lea.vmem %s1, 16
        %v794 = vld [vmem:[%s793] sm:$0xf]
        %v795 = vld [vmem:[%s793 + $0x4] sm:$0xf]
        %v798 = vunpack.c.l.b16 %v794
        %v799 = vunpack.c.l.b16 %v795
        %v800 = vpack.c.b16 %v799, %v798
        %802 = vmatprep.subr.bf16.mxu0 0
        %803 = vmatpush1.bf16.msra.mxu0 %v800
        %804 = vmatprep.subr.bf16.mxu0 0
        %805 = vmatpush1.bf16.msra.mxu0 0
        %806 = vmatprep.subr.bf16.mxu0 0
        %807 = vmatpush1.bf16.msra.mxu0 0
        %808 = vmatprep.subr.bf16.mxu0 0
        %809 = vmatpush1.bf16.msra.mxu0 0
        %810 = vmatprep.subr.bf16.mxu0 0
        %811 = vmatpush1.bf16.msra.mxu0 0
        %812 = vmatprep.subr.bf16.mxu0 0
        %813 = vmatpush1.bf16.msra.mxu0 0
        %814 = vmatprep.subr.bf16.mxu0 0
        %815 = vmatpush1.bf16.msra.mxu0 0
        %816 = vmatprep.subr.bf16.mxu0 0
        %817 = vmatpush1.bf16.msra.mxu0 0
        %818 = vmatprep.subr.bf16.mxu0 0
        %819 = vmatpush1.bf16.msra.mxu0 0
        %820 = vmatprep.subr.bf16.mxu0 0
        %821 = vmatpush1.bf16.msra.mxu0 0
        %822 = vmatprep.subr.bf16.mxu0 0
        %823 = vmatpush1.bf16.msra.mxu0 0
        %824 = vmatprep.subr.bf16.mxu0 0
        %825 = vmatpush1.bf16.msra.mxu0 0
        %826 = vmatprep.subr.bf16.mxu0 0
        %827 = vmatpush1.bf16.msra.mxu0 0
        %828 = vmatprep.subr.bf16.mxu0 0
        %829 = vmatpush1.bf16.msra.mxu0 0
        %830 = vmatprep.subr.bf16.mxu0 0
        %831 = vmatpush1.bf16.msra.mxu0 0
        %832 = vmatprep.subr.bf16.mxu0 0
        %833 = vmatpush1.bf16.msra.mxu0 0
        %834 = vmatprep.mubr.bf16.mxu0 0
        %835 = vmatmul.mubr.bf16.gmra.mrb[0].mxu0 %v415
        %v836 = vpop.f32.mrb[0].mxu0
        %v837 = vadd.f32 0.0, %v836
        %v838 = vpop.f32.mrb[0].mxu0
        %v839 = vpop.f32.mrb[0].mxu0
        %v840 = vadd.f32 0.0, %v839
        %v841 = vpop.f32.mrb[0].mxu0
        %842 = vmatprep.mubr.bf16.mxu0 0
        %843 = vmatmul.mubr.bf16.gmra.mrb[0].mxu0 %v418
        %v844 = vpop.f32.mrb[0].mxu0
        %v845 = vadd.f32 0.0, %v844
        %v846 = vpop.f32.mrb[0].mxu0
        %v847 = vpop.f32.mrb[0].mxu0
        %v848 = vadd.f32 0.0, %v847
        %v849 = vpop.f32.mrb[0].mxu0
        %850 = vmatprep.mubr.bf16.mxu0 0
        %851 = vmatmul.mubr.bf16.gmra.mrb[0].mxu0 %v421
        %v852 = vpop.f32.mrb[0].mxu0
        %v853 = vadd.f32 0.0, %v852
        %v854 = vpop.f32.mrb[0].mxu0
        %v855 = vpop.f32.mrb[0].mxu0
        %v856 = vadd.f32 0.0, %v855
        %v857 = vpop.f32.mrb[0].mxu0
        %858 = vmatprep.mubr.bf16.mxu0 0
        %859 = vmatmul.mubr.bf16.gmra.mrb[0].mxu0 %v424
        %v860 = vpop.f32.mrb[0].mxu0
        %v861 = vadd.f32 0.0, %v860
        %v862 = vpop.f32.mrb[0].mxu0
        %v863 = vpop.f32.mrb[0].mxu0
        %v864 = vadd.f32 0.0, %v863
        %v865 = vpop.f32.mrb[0].mxu0
        %866 = vmatprep.mubr.bf16.mxu0 0
        %867 = vmatmul.mubr.bf16.gmra.mrb[0].mxu0 %v427
        %v868 = vpop.f32.mrb[0].mxu0
        %v869 = vadd.f32 0.0, %v868
        %v870 = vpop.f32.mrb[0].mxu0
        %v871 = vpop.f32.mrb[0].mxu0
        %v872 = vadd.f32 0.0, %v871
        %v873 = vpop.f32.mrb[0].mxu0
        %874 = vmatprep.mubr.bf16.mxu0 0
        %875 = vmatmul.mubr.bf16.gmra.mrb[0].mxu0 %v430
        %v876 = vpop.f32.mrb[0].mxu0
        %v877 = vadd.f32 0.0, %v876
        %v878 = vpop.f32.mrb[0].mxu0
        %v879 = vpop.f32.mrb[0].mxu0
        %v880 = vadd.f32 0.0, %v879
        %v881 = vpop.f32.mrb[0].mxu0
        %882 = vmatprep.mubr.bf16.mxu0 0
        %883 = vmatmul.mubr.bf16.gmra.mrb[0].mxu0 %v433
        %v884 = vpop.f32.mrb[0].mxu0
        %v885 = vadd.f32 0.0, %v884
        %v886 = vpop.f32.mrb[0].mxu0
        %v887 = vpop.f32.mrb[0].mxu0
        %v888 = vadd.f32 0.0, %v887
        %v889 = vpop.f32.mrb[0].mxu0
        %890 = vmatprep.mubr.bf16.mxu0 0
        %891 = vmatmul.mubr.bf16.gmra.mrb[0].mxu0 %v436
        %v892 = vpop.f32.mrb[0].mxu0
        %v893 = vadd.f32 0.0, %v892
        %v894 = vpop.f32.mrb[0].mxu0
        %v895 = vpop.f32.mrb[0].mxu0
        %v896 = vadd.f32 0.0, %v895
        %v897 = vpop.f32.mrb[0].mxu0
        %898 = vmatprep.mubr.bf16.mxu0 0
        %899 = vmatmul.mubr.bf16.gmra.mrb[0].mxu0 %v439
        %v900 = vpop.f32.mrb[0].mxu0
        %v901 = vadd.f32 0.0, %v900
        %v902 = vpop.f32.mrb[0].mxu0
        %v903 = vpop.f32.mrb[0].mxu0
        %v904 = vadd.f32 0.0, %v903
        %v905 = vpop.f32.mrb[0].mxu0
        %906 = vmatprep.mubr.bf16.mxu0 0
        %907 = vmatmul.mubr.bf16.gmra.mrb[0].mxu0 %v442
        %v908 = vpop.f32.mrb[0].mxu0
        %v909 = vadd.f32 0.0, %v908
        %v910 = vpop.f32.mrb[0].mxu0
        %v911 = vpop.f32.mrb[0].mxu0
        %v912 = vadd.f32 0.0, %v911
        %v913 = vpop.f32.mrb[0].mxu0
        %914 = vmatprep.mubr.bf16.mxu0 0
        %915 = vmatmul.mubr.bf16.gmra.mrb[0].mxu0 %v445
        %v916 = vpop.f32.mrb[0].mxu0
        %v917 = vadd.f32 0.0, %v916
        %v918 = vpop.f32.mrb[0].mxu0
        %v919 = vpop.f32.mrb[0].mxu0
        %v920 = vadd.f32 0.0, %v919
        %v921 = vpop.f32.mrb[0].mxu0
        %922 = vmatprep.mubr.bf16.mxu0 0
        %923 = vmatmul.mubr.bf16.gmra.mrb[0].mxu0 %v448
        %v924 = vpop.f32.mrb[0].mxu0
        %v925 = vadd.f32 0.0, %v924
        %v926 = vpop.f32.mrb[0].mxu0
        %v927 = vpop.f32.mrb[0].mxu0
        %v928 = vadd.f32 0.0, %v927
        %v929 = vpop.f32.mrb[0].mxu0
        %930 = vmatprep.mubr.bf16.mxu0 0
        %931 = vmatmul.mubr.bf16.gmra.mrb[0].mxu0 %v451
        %v932 = vpop.f32.mrb[0].mxu0
        %v933 = vadd.f32 0.0, %v932
        %v934 = vpop.f32.mrb[0].mxu0
        %v935 = vpop.f32.mrb[0].mxu0
        %v936 = vadd.f32 0.0, %v935
        %v937 = vpop.f32.mrb[0].mxu0
        %938 = vmatprep.mubr.bf16.mxu0 0
        %939 = vmatmul.mubr.bf16.gmra.mrb[0].mxu0 %v454
        %v940 = vpop.f32.mrb[0].mxu0
        %v941 = vadd.f32 0.0, %v940
        %v942 = vpop.f32.mrb[0].mxu0
        %v943 = vpop.f32.mrb[0].mxu0
        %v944 = vadd.f32 0.0, %v943
        %v945 = vpop.f32.mrb[0].mxu0
        %946 = vmatprep.mubr.bf16.mxu0 0
        %947 = vmatmul.mubr.bf16.gmra.mrb[0].mxu0 %v457
        %v948 = vpop.f32.mrb[0].mxu0
        %v949 = vadd.f32 0.0, %v948
        %v950 = vpop.f32.mrb[0].mxu0
        %v951 = vpop.f32.mrb[0].mxu0
        %v952 = vadd.f32 0.0, %v951
        %v953 = vpop.f32.mrb[0].mxu0
        %954 = vmatprep.mubr.bf16.mxu0 0
        %955 = vmatmul.mubr.bf16.gmra.mrb[0].mxu0 %v460
        %v956 = vpop.f32.mrb[0].mxu0
        %v957 = vadd.f32 0.0, %v956
        %v958 = vpop.f32.mrb[0].mxu0
        %v959 = vpop.f32.mrb[0].mxu0
        %v960 = vadd.f32 0.0, %v959
        %v961 = vpop.f32.mrb[0].mxu0
        %962 = vdwg.mxu0
        %vm963 = vcmp.lt.s32.totalorder %v373, 0
        %v964 = vsub.s32 0, %v373
        %v965 = vsel %vm963, %v964, %v373
        %v966 = vshrl.u32 %v965, 4
        %v967 = vand.u32 %v965, 15
        %v968 = vsub.s32 0, %v967
        %v969 = vsel %vm963, %v968, %v967
        %vm970 = vcmp.lt.s32.totalorder %v374, 0
        %v971 = vsub.s32 0, %v374
        %v972 = vsel %vm970, %v971, %v374
        %v973 = vshrl.u32 %v972, 4
        %v974 = vand.u32 %v972, 15
        %v975 = vsub.s32 0, %v974
        %v976 = vsel %vm970, %v975, %v974
        %vm977 = vcmp.lt.s32.totalorder %v375, 0
        %v978 = vsub.s32 0, %v375
        %v979 = vsel %vm977, %v978, %v375
        %v980 = vshrl.u32 %v979, 4
        %v981 = vand.u32 %v979, 15
        %v982 = vsub.s32 0, %v981
        %v983 = vsel %vm977, %v982, %v981
        %vm984 = vcmp.lt.s32.totalorder %v376, 0
        %v985 = vsub.s32 0, %v376
        %v986 = vsel %vm984, %v985, %v376
        %v987 = vshrl.u32 %v986, 4
        %v988 = vand.u32 %v986, 15
        %v989 = vsub.s32 0, %v988
        %v990 = vsel %vm984, %v989, %v988
        %vm991 = vcmp.lt.s32.totalorder %v377, 0
        %v992 = vsub.s32 0, %v377
        %v993 = vsel %vm991, %v992, %v377
        %v994 = vshrl.u32 %v993, 4
        %v995 = vand.u32 %v993, 15
        %v996 = vsub.s32 0, %v995
        %v997 = vsel %vm991, %v996, %v995
        %vm998 = vcmp.lt.s32.totalorder %v378, 0
        %v999 = vsub.s32 0, %v378
        %v1000 = vsel %vm998, %v999, %v378
        %v1001 = vshrl.u32 %v1000, 4
        %v1002 = vand.u32 %v1000, 15
        %v1003 = vsub.s32 0, %v1002
        %v1004 = vsel %vm998, %v1003, %v1002
        %vm1005 = vcmp.lt.s32.totalorder %v379, 0
        %v1006 = vsub.s32 0, %v379
        %v1007 = vsel %vm1005, %v1006, %v379
        %v1008 = vshrl.u32 %v1007, 4
        %v1009 = vand.u32 %v1007, 15
        %v1010 = vsub.s32 0, %v1009
        %v1011 = vsel %vm1005, %v1010, %v1009
        %vm1012 = vcmp.lt.s32.totalorder %v380, 0
        %v1013 = vsub.s32 0, %v380
        %v1014 = vsel %vm1012, %v1013, %v380
        %v1015 = vshrl.u32 %v1014, 4
        %v1016 = vand.u32 %v1014, 15
        %v1017 = vsub.s32 0, %v1016
        %v1018 = vsel %vm1012, %v1017, %v1016
        %vm1019 = vcmp.lt.s32.totalorder %v381, 0
        %v1020 = vsub.s32 0, %v381
        %v1021 = vsel %vm1019, %v1020, %v381
        %v1022 = vshrl.u32 %v1021, 4
        %v1023 = vand.u32 %v1021, 15
        %v1024 = vsub.s32 0, %v1023
        %v1025 = vsel %vm1019, %v1024, %v1023
        %vm1026 = vcmp.lt.s32.totalorder %v382, 0
        %v1027 = vsub.s32 0, %v382
        %v1028 = vsel %vm1026, %v1027, %v382
        %v1029 = vshrl.u32 %v1028, 4
        %v1030 = vand.u32 %v1028, 15
        %v1031 = vsub.s32 0, %v1030
        %v1032 = vsel %vm1026, %v1031, %v1030
        %vm1033 = vcmp.lt.s32.totalorder %v383, 0
        %v1034 = vsub.s32 0, %v383
        %v1035 = vsel %vm1033, %v1034, %v383
        %v1036 = vshrl.u32 %v1035, 4
        %v1037 = vand.u32 %v1035, 15
        %v1038 = vsub.s32 0, %v1037
        %v1039 = vsel %vm1033, %v1038, %v1037
        %vm1040 = vcmp.lt.s32.totalorder %v384, 0
        %v1041 = vsub.s32 0, %v384
        %v1042 = vsel %vm1040, %v1041, %v384
        %v1043 = vshrl.u32 %v1042, 4
        %v1044 = vand.u32 %v1042, 15
        %v1045 = vsub.s32 0, %v1044
        %v1046 = vsel %vm1040, %v1045, %v1044
        %vm1047 = vcmp.lt.s32.totalorder %v385, 0
        %v1048 = vsub.s32 0, %v385
        %v1049 = vsel %vm1047, %v1048, %v385
        %v1050 = vshrl.u32 %v1049, 4
        %v1051 = vand.u32 %v1049, 15
        %v1052 = vsub.s32 0, %v1051
        %v1053 = vsel %vm1047, %v1052, %v1051
        %vm1054 = vcmp.lt.s32.totalorder %v386, 0
        %v1055 = vsub.s32 0, %v386
        %v1056 = vsel %vm1054, %v1055, %v386
        %v1057 = vshrl.u32 %v1056, 4
        %v1058 = vand.u32 %v1056, 15
        %v1059 = vsub.s32 0, %v1058
        %v1060 = vsel %vm1054, %v1059, %v1058
        %vm1061 = vcmp.lt.s32.totalorder %v387, 0
        %v1062 = vsub.s32 0, %v387
        %v1063 = vsel %vm1061, %v1062, %v387
        %v1064 = vshrl.u32 %v1063, 4
        %v1065 = vand.u32 %v1063, 15
        %v1066 = vsub.s32 0, %v1065
        %v1067 = vsel %vm1061, %v1066, %v1065
        %vm1068 = vcmp.lt.s32.totalorder %v388, 0
        %v1069 = vsub.s32 0, %v388
        %v1070 = vsel %vm1068, %v1069, %v388
        %v1071 = vshrl.u32 %v1070, 4
        %v1072 = vand.u32 %v1070, 15
        %v1073 = vsub.s32 0, %v1072
        %v1074 = vsel %vm1068, %v1073, %v1072
        %vm1075 = vcmp.lt.s32.totalorder %v389, 0
        %v1076 = vsub.s32 0, %v389
        %v1077 = vsel %vm1075, %v1076, %v389
        %v1078 = vshrl.u32 %v1077, 4
        %v1079 = vand.u32 %v1077, 15
        %v1080 = vsub.s32 0, %v1079
        %v1081 = vsel %vm1075, %v1080, %v1079
        %vm1082 = vcmp.lt.s32.totalorder %v390, 0
        %v1083 = vsub.s32 0, %v390
        %v1084 = vsel %vm1082, %v1083, %v390
        %v1085 = vshrl.u32 %v1084, 4
        %v1086 = vand.u32 %v1084, 15
        %v1087 = vsub.s32 0, %v1086
        %v1088 = vsel %vm1082, %v1087, %v1086
        %vm1089 = vcmp.lt.s32.totalorder %v391, 0
        %v1090 = vsub.s32 0, %v391
        %v1091 = vsel %vm1089, %v1090, %v391
        %v1092 = vshrl.u32 %v1091, 4
        %v1093 = vand.u32 %v1091, 15
        %v1094 = vsub.s32 0, %v1093
        %v1095 = vsel %vm1089, %v1094, %v1093
        %vm1096 = vcmp.lt.s32.totalorder %v392, 0
        %v1097 = vsub.s32 0, %v392
        %v1098 = vsel %vm1096, %v1097, %v392
        %v1099 = vshrl.u32 %v1098, 4
        %v1100 = vand.u32 %v1098, 15
        %v1101 = vsub.s32 0, %v1100
        %v1102 = vsel %vm1096, %v1101, %v1100
        %vm1103 = vcmp.lt.s32.totalorder %v393, 0
        %v1104 = vsub.s32 0, %v393
        %v1105 = vsel %vm1103, %v1104, %v393
        %v1106 = vshrl.u32 %v1105, 4
        %v1107 = vand.u32 %v1105, 15
        %v1108 = vsub.s32 0, %v1107
        %v1109 = vsel %vm1103, %v1108, %v1107
        %vm1110 = vcmp.lt.s32.totalorder %v394, 0
        %v1111 = vsub.s32 0, %v394
        %v1112 = vsel %vm1110, %v1111, %v394
        %v1113 = vshrl.u32 %v1112, 4
        %v1114 = vand.u32 %v1112, 15
        %v1115 = vsub.s32 0, %v1114
        %v1116 = vsel %vm1110, %v1115, %v1114
        %vm1117 = vcmp.lt.s32.totalorder %v395, 0
        %v1118 = vsub.s32 0, %v395
        %v1119 = vsel %vm1117, %v1118, %v395
        %v1120 = vshrl.u32 %v1119, 4
        %v1121 = vand.u32 %v1119, 15
        %v1122 = vsub.s32 0, %v1121
        %v1123 = vsel %vm1117, %v1122, %v1121
        %vm1124 = vcmp.lt.s32.totalorder %v396, 0
        %v1125 = vsub.s32 0, %v396
        %v1126 = vsel %vm1124, %v1125, %v396
        %v1127 = vshrl.u32 %v1126, 4
        %v1128 = vand.u32 %v1126, 15
        %v1129 = vsub.s32 0, %v1128
        %v1130 = vsel %vm1124, %v1129, %v1128
        %vm1131 = vcmp.lt.s32.totalorder %v397, 0
        %v1132 = vsub.s32 0, %v397
        %v1133 = vsel %vm1131, %v1132, %v397
        %v1134 = vshrl.u32 %v1133, 4
        %v1135 = vand.u32 %v1133, 15
        %v1136 = vsub.s32 0, %v1135
        %v1137 = vsel %vm1131, %v1136, %v1135
        %vm1138 = vcmp.lt.s32.totalorder %v398, 0
        %v1139 = vsub.s32 0, %v398
        %v1140 = vsel %vm1138, %v1139, %v398
        %v1141 = vshrl.u32 %v1140, 4
        %v1142 = vand.u32 %v1140, 15
        %v1143 = vsub.s32 0, %v1142
        %v1144 = vsel %vm1138, %v1143, %v1142
        %vm1145 = vcmp.lt.s32.totalorder %v399, 0
        %v1146 = vsub.s32 0, %v399
        %v1147 = vsel %vm1145, %v1146, %v399
        %v1148 = vshrl.u32 %v1147, 4
        %v1149 = vand.u32 %v1147, 15
        %v1150 = vsub.s32 0, %v1149
        %v1151 = vsel %vm1145, %v1150, %v1149
        %vm1152 = vcmp.lt.s32.totalorder %v400, 0
        %v1153 = vsub.s32 0, %v400
        %v1154 = vsel %vm1152, %v1153, %v400
        %v1155 = vshrl.u32 %v1154, 4
        %v1156 = vand.u32 %v1154, 15
        %v1157 = vsub.s32 0, %v1156
        %v1158 = vsel %vm1152, %v1157, %v1156
        %vm1159 = vcmp.lt.s32.totalorder %v401, 0
        %v1160 = vsub.s32 0, %v401
        %v1161 = vsel %vm1159, %v1160, %v401
        %v1162 = vshrl.u32 %v1161, 4
        %v1163 = vand.u32 %v1161, 15
        %v1164 = vsub.s32 0, %v1163
        %v1165 = vsel %vm1159, %v1164, %v1163
        %vm1166 = vcmp.lt.s32.totalorder %v402, 0
        %v1167 = vsub.s32 0, %v402
        %v1168 = vsel %vm1166, %v1167, %v402
        %v1169 = vshrl.u32 %v1168, 4
        %v1170 = vand.u32 %v1168, 15
        %v1171 = vsub.s32 0, %v1170
        %v1172 = vsel %vm1166, %v1171, %v1170
        %vm1173 = vcmp.lt.s32.totalorder %v403, 0
        %v1174 = vsub.s32 0, %v403
        %v1175 = vsel %vm1173, %v1174, %v403
        %v1176 = vshrl.u32 %v1175, 4
        %v1177 = vand.u32 %v1175, 15
        %v1178 = vsub.s32 0, %v1177
        %v1179 = vsel %vm1173, %v1178, %v1177
        %vm1180 = vcmp.lt.s32.totalorder %v404, 0
        %v1181 = vsub.s32 0, %v404
        %v1182 = vsel %vm1180, %v1181, %v404
        %v1183 = vshrl.u32 %v1182, 4
        %v1184 = vand.u32 %v1182, 15
        %v1185 = vsub.s32 0, %v1184
        %v1186 = vsel %vm1180, %v1185, %v1184
        %vm1187 = vcmp.ne.s32.totalorder %v969, 0
        %vm1188 = vcmp.ne.s32.totalorder %v976, 0
        %vm1189 = vcmp.ne.s32.totalorder %v983, 0
        %vm1190 = vcmp.ne.s32.totalorder %v990, 0
        %vm1191 = vcmp.ne.s32.totalorder %v997, 0
        %vm1192 = vcmp.ne.s32.totalorder %v1004, 0
        %vm1193 = vcmp.ne.s32.totalorder %v1011, 0
        %vm1194 = vcmp.ne.s32.totalorder %v1018, 0
        %vm1195 = vcmp.ne.s32.totalorder %v1025, 0
        %vm1196 = vcmp.ne.s32.totalorder %v1032, 0
        %vm1197 = vcmp.ne.s32.totalorder %v1039, 0
        %vm1198 = vcmp.ne.s32.totalorder %v1046, 0
        %vm1199 = vcmp.ne.s32.totalorder %v1053, 0
        %vm1200 = vcmp.ne.s32.totalorder %v1060, 0
        %vm1201 = vcmp.ne.s32.totalorder %v1067, 0
        %vm1202 = vcmp.ne.s32.totalorder %v1074, 0
        %vm1203 = vcmp.ne.s32.totalorder %v1081, 0
        %vm1204 = vcmp.ne.s32.totalorder %v1088, 0
        %vm1205 = vcmp.ne.s32.totalorder %v1095, 0
        %vm1206 = vcmp.ne.s32.totalorder %v1102, 0
        %vm1207 = vcmp.ne.s32.totalorder %v1109, 0
        %vm1208 = vcmp.ne.s32.totalorder %v1116, 0
        %vm1209 = vcmp.ne.s32.totalorder %v1123, 0
        %vm1210 = vcmp.ne.s32.totalorder %v1130, 0
        %vm1211 = vcmp.ne.s32.totalorder %v1137, 0
        %vm1212 = vcmp.ne.s32.totalorder %v1144, 0
        %vm1213 = vcmp.ne.s32.totalorder %v1151, 0
        %vm1214 = vcmp.ne.s32.totalorder %v1158, 0
        %vm1215 = vcmp.ne.s32.totalorder %v1165, 0
        %vm1216 = vcmp.ne.s32.totalorder %v1172, 0
        %vm1217 = vcmp.ne.s32.totalorder %v1179, 0
        %vm1218 = vcmp.ne.s32.totalorder %v1186, 0
        %vm1219 = vcmp.lt.s32.totalorder %v969, 0
        %vm1220 = vcmp.lt.s32.totalorder %v976, 0
        %vm1221 = vcmp.lt.s32.totalorder %v983, 0
        %vm1222 = vcmp.lt.s32.totalorder %v990, 0
        %vm1223 = vcmp.lt.s32.totalorder %v997, 0
        %vm1224 = vcmp.lt.s32.totalorder %v1004, 0
        %vm1225 = vcmp.lt.s32.totalorder %v1011, 0
        %vm1226 = vcmp.lt.s32.totalorder %v1018, 0
        %vm1227 = vcmp.lt.s32.totalorder %v1025, 0
        %vm1228 = vcmp.lt.s32.totalorder %v1032, 0
        %vm1229 = vcmp.lt.s32.totalorder %v1039, 0
        %vm1230 = vcmp.lt.s32.totalorder %v1046, 0
        %vm1231 = vcmp.lt.s32.totalorder %v1053, 0
        %vm1232 = vcmp.lt.s32.totalorder %v1060, 0
        %vm1233 = vcmp.lt.s32.totalorder %v1067, 0
        %vm1234 = vcmp.lt.s32.totalorder %v1074, 0
        %vm1235 = vcmp.lt.s32.totalorder %v1081, 0
        %vm1236 = vcmp.lt.s32.totalorder %v1088, 0
        %vm1237 = vcmp.lt.s32.totalorder %v1095, 0
        %vm1238 = vcmp.lt.s32.totalorder %v1102, 0
        %vm1239 = vcmp.lt.s32.totalorder %v1109, 0
        %vm1240 = vcmp.lt.s32.totalorder %v1116, 0
        %vm1241 = vcmp.lt.s32.totalorder %v1123, 0
        %vm1242 = vcmp.lt.s32.totalorder %v1130, 0
        %vm1243 = vcmp.lt.s32.totalorder %v1137, 0
        %vm1244 = vcmp.lt.s32.totalorder %v1144, 0
        %vm1245 = vcmp.lt.s32.totalorder %v1151, 0
        %vm1246 = vcmp.lt.s32.totalorder %v1158, 0
        %vm1247 = vcmp.lt.s32.totalorder %v1165, 0
        %vm1248 = vcmp.lt.s32.totalorder %v1172, 0
        %vm1249 = vcmp.lt.s32.totalorder %v1179, 0
        %vm1250 = vcmp.lt.s32.totalorder %v1186, 0
        %vm1251 = vmand %vm1219, %vm1187
        %vm1252 = vmand %vm1220, %vm1188
        %vm1253 = vmand %vm1221, %vm1189
        %vm1254 = vmand %vm1222, %vm1190
        %vm1255 = vmand %vm1223, %vm1191
        %vm1256 = vmand %vm1224, %vm1192
        %vm1257 = vmand %vm1225, %vm1193
        %vm1258 = vmand %vm1226, %vm1194
        %vm1259 = vmand %vm1227, %vm1195
        %vm1260 = vmand %vm1228, %vm1196
        %vm1261 = vmand %vm1229, %vm1197
        %vm1262 = vmand %vm1230, %vm1198
        %vm1263 = vmand %vm1231, %vm1199
        %vm1264 = vmand %vm1232, %vm1200
        %vm1265 = vmand %vm1233, %vm1201
        %vm1266 = vmand %vm1234, %vm1202
        %vm1267 = vmand %vm1235, %vm1203
        %vm1268 = vmand %vm1236, %vm1204
        %vm1269 = vmand %vm1237, %vm1205
        %vm1270 = vmand %vm1238, %vm1206
        %vm1271 = vmand %vm1239, %vm1207
        %vm1272 = vmand %vm1240, %vm1208
        %vm1273 = vmand %vm1241, %vm1209
        %vm1274 = vmand %vm1242, %vm1210
        %vm1275 = vmand %vm1243, %vm1211
        %vm1276 = vmand %vm1244, %vm1212
        %vm1277 = vmand %vm1245, %vm1213
        %vm1278 = vmand %vm1246, %vm1214
        %vm1279 = vmand %vm1247, %vm1215
        %vm1280 = vmand %vm1248, %vm1216
        %vm1281 = vmand %vm1249, %vm1217
        %vm1282 = vmand %vm1250, %vm1218
        %v1283 = vadd.s32 %v969, 16
        %v1284 = vadd.s32 %v976, 16
        %v1285 = vadd.s32 %v983, 16
        %v1286 = vadd.s32 %v990, 16
        %v1287 = vadd.s32 %v997, 16
        %v1288 = vadd.s32 %v1004, 16
        %v1289 = vadd.s32 %v1011, 16
        %v1290 = vadd.s32 %v1018, 16
        %v1291 = vadd.s32 %v1025, 16
        %v1292 = vadd.s32 %v1032, 16
        %v1293 = vadd.s32 %v1039, 16
        %v1294 = vadd.s32 %v1046, 16
        %v1295 = vadd.s32 %v1053, 16
        %v1296 = vadd.s32 %v1060, 16
        %v1297 = vadd.s32 %v1067, 16
        %v1298 = vadd.s32 %v1074, 16
        %v1299 = vadd.s32 %v1081, 16
        %v1300 = vadd.s32 %v1088, 16
        %v1301 = vadd.s32 %v1095, 16
        %v1302 = vadd.s32 %v1102, 16
        %v1303 = vadd.s32 %v1109, 16
        %v1304 = vadd.s32 %v1116, 16
        %v1305 = vadd.s32 %v1123, 16
        %v1306 = vadd.s32 %v1130, 16
        %v1307 = vadd.s32 %v1137, 16
        %v1308 = vadd.s32 %v1144, 16
        %v1309 = vadd.s32 %v1151, 16
        %v1310 = vadd.s32 %v1158, 16
        %v1311 = vadd.s32 %v1165, 16
        %v1312 = vadd.s32 %v1172, 16
        %v1313 = vadd.s32 %v1179, 16
        %v1314 = vadd.s32 %v1186, 16
        %v1315 = vsel %vm1251, %v1283, %v969
        %v1316 = vsel %vm1252, %v1284, %v976
        %v1317 = vsel %vm1253, %v1285, %v983
        %v1318 = vsel %vm1254, %v1286, %v990
        %v1319 = vsel %vm1255, %v1287, %v997
        %v1320 = vsel %vm1256, %v1288, %v1004
        %v1321 = vsel %vm1257, %v1289, %v1011
        %v1322 = vsel %vm1258, %v1290, %v1018
        %v1323 = vsel %vm1259, %v1291, %v1025
        %v1324 = vsel %vm1260, %v1292, %v1032
        %v1325 = vsel %vm1261, %v1293, %v1039
        %v1326 = vsel %vm1262, %v1294, %v1046
        %v1327 = vsel %vm1263, %v1295, %v1053
        %v1328 = vsel %vm1264, %v1296, %v1060
        %v1329 = vsel %vm1265, %v1297, %v1067
        %v1330 = vsel %vm1266, %v1298, %v1074
        %v1331 = vsel %vm1267, %v1299, %v1081
        %v1332 = vsel %vm1268, %v1300, %v1088
        %v1333 = vsel %vm1269, %v1301, %v1095
        %v1334 = vsel %vm1270, %v1302, %v1102
        %v1335 = vsel %vm1271, %v1303, %v1109
        %v1336 = vsel %vm1272, %v1304, %v1116
        %v1337 = vsel %vm1273, %v1305, %v1123
        %v1338 = vsel %vm1274, %v1306, %v1130
        %v1339 = vsel %vm1275, %v1307, %v1137
        %v1340 = vsel %vm1276, %v1308, %v1144
        %v1341 = vsel %vm1277, %v1309, %v1151
        %v1342 = vsel %vm1278, %v1310, %v1158
        %v1343 = vsel %vm1279, %v1311, %v1165
        %v1344 = vsel %vm1280, %v1312, %v1172
        %v1345 = vsel %vm1281, %v1313, %v1179
        %v1346 = vsel %vm1282, %v1314, %v1186
        %vm1347 = vcmp.ne.s32.totalorder %v1315, 0
        %vm1348 = vcmp.ne.s32.totalorder %v1316, 0
        %vm1349 = vcmp.ne.s32.totalorder %v1317, 0
        %vm1350 = vcmp.ne.s32.totalorder %v1318, 0
        %vm1351 = vcmp.ne.s32.totalorder %v1319, 0
        %vm1352 = vcmp.ne.s32.totalorder %v1320, 0
        %vm1353 = vcmp.ne.s32.totalorder %v1321, 0
        %vm1354 = vcmp.ne.s32.totalorder %v1322, 0
        %vm1355 = vcmp.ne.s32.totalorder %v1323, 0
        %vm1356 = vcmp.ne.s32.totalorder %v1324, 0
        %vm1357 = vcmp.ne.s32.totalorder %v1325, 0
        %vm1358 = vcmp.ne.s32.totalorder %v1326, 0
        %vm1359 = vcmp.ne.s32.totalorder %v1327, 0
        %vm1360 = vcmp.ne.s32.totalorder %v1328, 0
        %vm1361 = vcmp.ne.s32.totalorder %v1329, 0
        %vm1362 = vcmp.ne.s32.totalorder %v1330, 0
        %vm1363 = vcmp.ne.s32.totalorder %v1331, 0
        %vm1364 = vcmp.ne.s32.totalorder %v1332, 0
        %vm1365 = vcmp.ne.s32.totalorder %v1333, 0
        %vm1366 = vcmp.ne.s32.totalorder %v1334, 0
        %vm1367 = vcmp.ne.s32.totalorder %v1335, 0
        %vm1368 = vcmp.ne.s32.totalorder %v1336, 0
        %vm1369 = vcmp.ne.s32.totalorder %v1337, 0
        %vm1370 = vcmp.ne.s32.totalorder %v1338, 0
        %vm1371 = vcmp.ne.s32.totalorder %v1339, 0
        %vm1372 = vcmp.ne.s32.totalorder %v1340, 0
        %vm1373 = vcmp.ne.s32.totalorder %v1341, 0
        %vm1374 = vcmp.ne.s32.totalorder %v1342, 0
        %vm1375 = vcmp.ne.s32.totalorder %v1343, 0
        %vm1376 = vcmp.ne.s32.totalorder %v1344, 0
        %vm1377 = vcmp.ne.s32.totalorder %v1345, 0
        %vm1378 = vcmp.ne.s32.totalorder %v1346, 0
        %v1379 = vrot.slane %v497, 7
        %v1380 = vrot.slane %v500, 7
        %v1381 = vrot.slane %v505, 7
        %v1382 = vrot.slane %v508, 7
        %v1383 = vrot.slane %v513, 7
        %v1384 = vrot.slane %v516, 7
        %v1385 = vrot.slane %v521, 7
        %v1386 = vrot.slane %v524, 7
        %v1387 = vrot.slane %v529, 7
        %v1388 = vrot.slane %v532, 7
        %v1389 = vrot.slane %v537, 7
        %v1390 = vrot.slane %v540, 7
        %v1391 = vrot.slane %v545, 7
        %v1392 = vrot.slane %v548, 7
        %v1393 = vrot.slane %v553, 7
        %v1394 = vrot.slane %v556, 7
        %v1395 = vrot.slane %v561, 7
        %v1396 = vrot.slane %v564, 7
        %v1397 = vrot.slane %v569, 7
        %v1398 = vrot.slane %v572, 7
        %v1399 = vrot.slane %v577, 7
        %v1400 = vrot.slane %v580, 7
        %v1401 = vrot.slane %v585, 7
        %v1402 = vrot.slane %v588, 7
        %v1403 = vrot.slane %v593, 7
        %v1404 = vrot.slane %v596, 7
        %v1405 = vrot.slane %v601, 7
        %v1406 = vrot.slane %v604, 7
        %v1407 = vrot.slane %v609, 7
        %v1408 = vrot.slane %v612, 7
        %v1409 = vrot.slane %v617, 7
        %v1410 = vrot.slane %v620, 7
        %vm1411 = vcmp.lt.s32.totalorder %v373, 1
        %v1412 = vsel %vm1411, %v1409, %v1410
        %v1413 = vsel %vm1411, %v1408, %v1409
        %v1414 = vsel %vm1411, %v1407, %v1408
        %v1415 = vsel %vm1411, %v1406, %v1407
        %v1416 = vsel %vm1411, %v1405, %v1406
        %v1417 = vsel %vm1411, %v1404, %v1405
        %v1418 = vsel %vm1411, %v1403, %v1404
        %v1419 = vsel %vm1411, %v1402, %v1403
        %v1420 = vsel %vm1411, %v1401, %v1402
        %v1421 = vsel %vm1411, %v1400, %v1401
        %v1422 = vsel %vm1411, %v1399, %v1400
        %v1423 = vsel %vm1411, %v1398, %v1399
        %v1424 = vsel %vm1411, %v1397, %v1398
        %v1425 = vsel %vm1411, %v1396, %v1397
        %v1426 = vsel %vm1411, %v1395, %v1396
        %v1427 = vsel %vm1411, %v1394, %v1395
        %v1428 = vsel %vm1411, %v1393, %v1394
        %v1429 = vsel %vm1411, %v1392, %v1393
        %v1430 = vsel %vm1411, %v1391, %v1392
        %v1431 = vsel %vm1411, %v1390, %v1391
        %v1432 = vsel %vm1411, %v1389, %v1390
        %v1433 = vsel %vm1411, %v1388, %v1389
        %v1434 = vsel %vm1411, %v1387, %v1388
        %v1435 = vsel %vm1411, %v1386, %v1387
        %v1436 = vsel %vm1411, %v1385, %v1386
        %v1437 = vsel %vm1411, %v1384, %v1385
        %v1438 = vsel %vm1411, %v1383, %v1384
        %v1439 = vsel %vm1411, %v1382, %v1383
        %v1440 = vsel %vm1411, %v1381, %v1382
        %v1441 = vsel %vm1411, %v1380, %v1381
        %v1442 = vsel %vm1411, %v1379, %v1380
        %v1443 = vsel %vm1411, %v1410, %v1379
        %v1444 = vsel %vm1347, %v1443, 0.0
        %v1445 = vsel %vm1348, %v1442, 0.0
        %v1446 = vsel %vm1349, %v1441, 0.0
        %v1447 = vsel %vm1350, %v1440, 0.0
        %v1448 = vsel %vm1351, %v1439, 0.0
        %v1449 = vsel %vm1352, %v1438, 0.0
        %v1450 = vsel %vm1353, %v1437, 0.0
        %v1451 = vsel %vm1354, %v1436, 0.0
        %v1452 = vsel %vm1355, %v1435, 0.0
        %v1453 = vsel %vm1356, %v1434, 0.0
        %v1454 = vsel %vm1357, %v1433, 0.0
        %v1455 = vsel %vm1358, %v1432, 0.0
        %v1456 = vsel %vm1359, %v1431, 0.0
        %v1457 = vsel %vm1360, %v1430, 0.0
        %v1458 = vsel %vm1361, %v1429, 0.0
        %v1459 = vsel %vm1362, %v1428, 0.0
        %v1460 = vsel %vm1363, %v1427, 0.0
        %v1461 = vsel %vm1364, %v1426, 0.0
        %v1462 = vsel %vm1365, %v1425, 0.0
        %v1463 = vsel %vm1366, %v1424, 0.0
        %v1464 = vsel %vm1367, %v1423, 0.0
        %v1465 = vsel %vm1368, %v1422, 0.0
        %v1466 = vsel %vm1369, %v1421, 0.0
        %v1467 = vsel %vm1370, %v1420, 0.0
        %v1468 = vsel %vm1371, %v1419, 0.0
        %v1469 = vsel %vm1372, %v1418, 0.0
        %v1470 = vsel %vm1373, %v1417, 0.0
        %v1471 = vsel %vm1374, %v1416, 0.0
        %v1472 = vsel %vm1375, %v1415, 0.0
        %v1473 = vsel %vm1376, %v1414, 0.0
        %v1474 = vsel %vm1377, %v1413, 0.0
        %v1475 = vsel %vm1378, %v1412, 0.0
        %vm1476 = vcmp.ne.s32.totalorder %v1315, 15
        %vm1477 = vcmp.ne.s32.totalorder %v1316, 15
        %vm1478 = vcmp.ne.s32.totalorder %v1317, 15
        %vm1479 = vcmp.ne.s32.totalorder %v1318, 15
        %vm1480 = vcmp.ne.s32.totalorder %v1319, 15
        %vm1481 = vcmp.ne.s32.totalorder %v1320, 15
        %vm1482 = vcmp.ne.s32.totalorder %v1321, 15
        %vm1483 = vcmp.ne.s32.totalorder %v1322, 15
        %vm1484 = vcmp.ne.s32.totalorder %v1323, 15
        %vm1485 = vcmp.ne.s32.totalorder %v1324, 15
        %vm1486 = vcmp.ne.s32.totalorder %v1325, 15
        %vm1487 = vcmp.ne.s32.totalorder %v1326, 15
        %vm1488 = vcmp.ne.s32.totalorder %v1327, 15
        %vm1489 = vcmp.ne.s32.totalorder %v1328, 15
        %vm1490 = vcmp.ne.s32.totalorder %v1329, 15
        %vm1491 = vcmp.ne.s32.totalorder %v1330, 15
        %vm1492 = vcmp.ne.s32.totalorder %v1331, 15
        %vm1493 = vcmp.ne.s32.totalorder %v1332, 15
        %vm1494 = vcmp.ne.s32.totalorder %v1333, 15
        %vm1495 = vcmp.ne.s32.totalorder %v1334, 15
        %vm1496 = vcmp.ne.s32.totalorder %v1335, 15
        %vm1497 = vcmp.ne.s32.totalorder %v1336, 15
        %vm1498 = vcmp.ne.s32.totalorder %v1337, 15
        %vm1499 = vcmp.ne.s32.totalorder %v1338, 15
        %vm1500 = vcmp.ne.s32.totalorder %v1339, 15
        %vm1501 = vcmp.ne.s32.totalorder %v1340, 15
        %vm1502 = vcmp.ne.s32.totalorder %v1341, 15
        %vm1503 = vcmp.ne.s32.totalorder %v1342, 15
        %vm1504 = vcmp.ne.s32.totalorder %v1343, 15
        %vm1505 = vcmp.ne.s32.totalorder %v1344, 15
        %vm1506 = vcmp.ne.s32.totalorder %v1345, 15
        %vm1507 = vcmp.ne.s32.totalorder %v1346, 15
        %v1508 = vrot.slane %v837, 1
        %v1509 = vrot.slane %v840, 1
        %v1510 = vrot.slane %v845, 1
        %v1511 = vrot.slane %v848, 1
        %v1512 = vrot.slane %v853, 1
        %v1513 = vrot.slane %v856, 1
        %v1514 = vrot.slane %v861, 1
        %v1515 = vrot.slane %v864, 1
        %v1516 = vrot.slane %v869, 1
        %v1517 = vrot.slane %v872, 1
        %v1518 = vrot.slane %v877, 1
        %v1519 = vrot.slane %v880, 1
        %v1520 = vrot.slane %v885, 1
        %v1521 = vrot.slane %v888, 1
        %v1522 = vrot.slane %v893, 1
        %v1523 = vrot.slane %v896, 1
        %v1524 = vrot.slane %v901, 1
        %v1525 = vrot.slane %v904, 1
        %v1526 = vrot.slane %v909, 1
        %v1527 = vrot.slane %v912, 1
        %v1528 = vrot.slane %v917, 1
        %v1529 = vrot.slane %v920, 1
        %v1530 = vrot.slane %v925, 1
        %v1531 = vrot.slane %v928, 1
        %v1532 = vrot.slane %v933, 1
        %v1533 = vrot.slane %v936, 1
        %v1534 = vrot.slane %v941, 1
        %v1535 = vrot.slane %v944, 1
        %v1536 = vrot.slane %v949, 1
        %v1537 = vrot.slane %v952, 1
        %v1538 = vrot.slane %v957, 1
        %v1539 = vrot.slane %v960, 1
        %vm1540 = vcmp.lt.s32.totalorder %v373, 7
        %v1541 = vsel %vm1540, %v1538, %v1539
        %v1542 = vsel %vm1540, %v1537, %v1538
        %v1543 = vsel %vm1540, %v1536, %v1537
        %v1544 = vsel %vm1540, %v1535, %v1536
        %v1545 = vsel %vm1540, %v1534, %v1535
        %v1546 = vsel %vm1540, %v1533, %v1534
        %v1547 = vsel %vm1540, %v1532, %v1533
        %v1548 = vsel %vm1540, %v1531, %v1532
        %v1549 = vsel %vm1540, %v1530, %v1531
        %v1550 = vsel %vm1540, %v1529, %v1530
        %v1551 = vsel %vm1540, %v1528, %v1529
        %v1552 = vsel %vm1540, %v1527, %v1528
        %v1553 = vsel %vm1540, %v1526, %v1527
        %v1554 = vsel %vm1540, %v1525, %v1526
        %v1555 = vsel %vm1540, %v1524, %v1525
        %v1556 = vsel %vm1540, %v1523, %v1524
        %v1557 = vsel %vm1540, %v1522, %v1523
        %v1558 = vsel %vm1540, %v1521, %v1522
        %v1559 = vsel %vm1540, %v1520, %v1521
        %v1560 = vsel %vm1540, %v1519, %v1520
        %v1561 = vsel %vm1540, %v1518, %v1519
        %v1562 = vsel %vm1540, %v1517, %v1518
        %v1563 = vsel %vm1540, %v1516, %v1517
        %v1564 = vsel %vm1540, %v1515, %v1516
        %v1565 = vsel %vm1540, %v1514, %v1515
        %v1566 = vsel %vm1540, %v1513, %v1514
        %v1567 = vsel %vm1540, %v1512, %v1513
        %v1568 = vsel %vm1540, %v1511, %v1512
        %v1569 = vsel %vm1540, %v1510, %v1511
        %v1570 = vsel %vm1540, %v1509, %v1510
        %v1571 = vsel %vm1540, %v1508, %v1509
        %v1572 = vsel %vm1540, %v1539, %v1508
        %v1573 = vsel %vm1476, %v1571, 0.0
        %v1574 = vsel %vm1477, %v1570, 0.0
        %v1575 = vsel %vm1478, %v1569, 0.0
        %v1576 = vsel %vm1479, %v1568, 0.0
        %v1577 = vsel %vm1480, %v1567, 0.0
        %v1578 = vsel %vm1481, %v1566, 0.0
        %v1579 = vsel %vm1482, %v1565, 0.0
        %v1580 = vsel %vm1483, %v1564, 0.0
        %v1581 = vsel %vm1484, %v1563, 0.0
        %v1582 = vsel %vm1485, %v1562, 0.0
        %v1583 = vsel %vm1486, %v1561, 0.0
        %v1584 = vsel %vm1487, %v1560, 0.0
        %v1585 = vsel %vm1488, %v1559, 0.0
        %v1586 = vsel %vm1489, %v1558, 0.0
        %v1587 = vsel %vm1490, %v1557, 0.0
        %v1588 = vsel %vm1491, %v1556, 0.0
        %v1589 = vsel %vm1492, %v1555, 0.0
        %v1590 = vsel %vm1493, %v1554, 0.0
        %v1591 = vsel %vm1494, %v1553, 0.0
        %v1592 = vsel %vm1495, %v1552, 0.0
        %v1593 = vsel %vm1496, %v1551, 0.0
        %v1594 = vsel %vm1497, %v1550, 0.0
        %v1595 = vsel %vm1498, %v1549, 0.0
        %v1596 = vsel %vm1499, %v1548, 0.0
        %v1597 = vsel %vm1500, %v1547, 0.0
        %v1598 = vsel %vm1501, %v1546, 0.0
        %v1599 = vsel %vm1502, %v1545, 0.0
        %v1600 = vsel %vm1503, %v1544, 0.0
        %v1601 = vsel %vm1504, %v1543, 0.0
        %v1602 = vsel %vm1505, %v1542, 0.0
        %v1603 = vsel %vm1506, %v1541, 0.0
        %v1604 = vsel %vm1507, %v1572, 0.0
        %v1605 = vadd.f32 %v1444, %v667
        %v1606 = vadd.f32 %v1445, %v670
        %v1607 = vadd.f32 %v1446, %v675
        %v1608 = vadd.f32 %v1447, %v678
        %v1609 = vadd.f32 %v1448, %v683
        %v1610 = vadd.f32 %v1449, %v686
        %v1611 = vadd.f32 %v1450, %v691
        %v1612 = vadd.f32 %v1451, %v694
        %v1613 = vadd.f32 %v1452, %v699
        %v1614 = vadd.f32 %v1453, %v702
        %v1615 = vadd.f32 %v1454, %v707
        %v1616 = vadd.f32 %v1455, %v710
        %v1617 = vadd.f32 %v1456, %v715
        %v1618 = vadd.f32 %v1457, %v718
        %v1619 = vadd.f32 %v1458, %v723
        %v1620 = vadd.f32 %v1459, %v726
        %v1621 = vadd.f32 %v1460, %v731
        %v1622 = vadd.f32 %v1461, %v734
        %v1623 = vadd.f32 %v1462, %v739
        %v1624 = vadd.f32 %v1463, %v742
        %v1625 = vadd.f32 %v1464, %v747
        %v1626 = vadd.f32 %v1465, %v750
        %v1627 = vadd.f32 %v1466, %v755
        %v1628 = vadd.f32 %v1467, %v758
        %v1629 = vadd.f32 %v1468, %v763
        %v1630 = vadd.f32 %v1469, %v766
        %v1631 = vadd.f32 %v1470, %v771
        %v1632 = vadd.f32 %v1471, %v774
        %v1633 = vadd.f32 %v1472, %v779
        %v1634 = vadd.f32 %v1473, %v782
        %v1635 = vadd.f32 %v1474, %v787
        %v1636 = vadd.f32 %v1475, %v790
        %v1637 = vadd.f32 %v1605, %v1573
        %v1638 = vadd.f32 %v1606, %v1574
        %v1639 = vadd.f32 %v1607, %v1575
        %v1640 = vadd.f32 %v1608, %v1576
        %v1641 = vadd.f32 %v1609, %v1577
        %v1642 = vadd.f32 %v1610, %v1578
        %v1643 = vadd.f32 %v1611, %v1579
        %v1644 = vadd.f32 %v1612, %v1580
        %v1645 = vadd.f32 %v1613, %v1581
        %v1646 = vadd.f32 %v1614, %v1582
        %v1647 = vadd.f32 %v1615, %v1583
        %v1648 = vadd.f32 %v1616, %v1584
        %v1649 = vadd.f32 %v1617, %v1585
        %v1650 = vadd.f32 %v1618, %v1586
        %v1651 = vadd.f32 %v1619, %v1587
        %v1652 = vadd.f32 %v1620, %v1588
        %v1653 = vadd.f32 %v1621, %v1589
        %v1654 = vadd.f32 %v1622, %v1590
        %v1655 = vadd.f32 %v1623, %v1591
        %v1656 = vadd.f32 %v1624, %v1592
        %v1657 = vadd.f32 %v1625, %v1593
        %v1658 = vadd.f32 %v1626, %v1594
        %v1659 = vadd.f32 %v1627, %v1595
        %v1660 = vadd.f32 %v1628, %v1596
        %v1661 = vadd.f32 %v1629, %v1597
        %v1662 = vadd.f32 %v1630, %v1598
        %v1663 = vadd.f32 %v1631, %v1599
        %v1664 = vadd.f32 %v1632, %v1600
        %v1665 = vadd.f32 %v1633, %v1601
        %v1666 = vadd.f32 %v1634, %v1602
        %v1667 = vadd.f32 %v1635, %v1603
        %v1668 = vadd.f32 %v1636, %v1604
        %v1669 = vld [vmem:[%s2] sm:$0x1]
        %v1671 = vlaneseq
        %v1672 = vshrl.u32 %v1671, 7
        %v1673 = vsub.s32 0, %v1672
        %v1674 = vrot.slane %v1669, %v1673
        %v1676 = vadd.f32 %v1637, %v1674
        %v1677 = vadd.f32 %v1638, %v1674
        %v1678 = vadd.f32 %v1639, %v1674
        %v1679 = vadd.f32 %v1640, %v1674
        %v1680 = vadd.f32 %v1641, %v1674
        %v1681 = vadd.f32 %v1642, %v1674
        %v1682 = vadd.f32 %v1643, %v1674
        %v1683 = vadd.f32 %v1644, %v1674
        %v1684 = vadd.f32 %v1645, %v1674
        %v1685 = vadd.f32 %v1646, %v1674
        %v1686 = vadd.f32 %v1647, %v1674
        %v1687 = vadd.f32 %v1648, %v1674
        %v1688 = vadd.f32 %v1649, %v1674
        %v1689 = vadd.f32 %v1650, %v1674
        %v1690 = vadd.f32 %v1651, %v1674
        %v1691 = vadd.f32 %v1652, %v1674
        %v1692 = vadd.f32 %v1653, %v1674
        %v1693 = vadd.f32 %v1654, %v1674
        %v1694 = vadd.f32 %v1655, %v1674
        %v1695 = vadd.f32 %v1656, %v1674
        %v1696 = vadd.f32 %v1657, %v1674
        %v1697 = vadd.f32 %v1658, %v1674
        %v1698 = vadd.f32 %v1659, %v1674
        %v1699 = vadd.f32 %v1660, %v1674
        %v1700 = vadd.f32 %v1661, %v1674
        %v1701 = vadd.f32 %v1662, %v1674
        %v1702 = vadd.f32 %v1663, %v1674
        %v1703 = vadd.f32 %v1664, %v1674
        %v1704 = vadd.f32 %v1665, %v1674
        %v1705 = vadd.f32 %v1666, %v1674
        %v1706 = vadd.f32 %v1667, %v1674
        %v1707 = vadd.f32 %v1668, %v1674
        %v1708 = vmax.f32 %v1676, 0.0
        %v1709 = vmax.f32 %v1677, 0.0
        %v1710 = vmax.f32 %v1678, 0.0
        %v1711 = vmax.f32 %v1679, 0.0
        %v1712 = vmax.f32 %v1680, 0.0
        %v1713 = vmax.f32 %v1681, 0.0
        %v1714 = vmax.f32 %v1682, 0.0
        %v1715 = vmax.f32 %v1683, 0.0
        %v1716 = vmax.f32 %v1684, 0.0
        %v1717 = vmax.f32 %v1685, 0.0
        %v1718 = vmax.f32 %v1686, 0.0
        %v1719 = vmax.f32 %v1687, 0.0
        %v1720 = vmax.f32 %v1688, 0.0
        %v1721 = vmax.f32 %v1689, 0.0
        %v1722 = vmax.f32 %v1690, 0.0
        %v1723 = vmax.f32 %v1691, 0.0
        %v1724 = vmax.f32 %v1692, 0.0
        %v1725 = vmax.f32 %v1693, 0.0
        %v1726 = vmax.f32 %v1694, 0.0
        %v1727 = vmax.f32 %v1695, 0.0
        %v1728 = vmax.f32 %v1696, 0.0
        %v1729 = vmax.f32 %v1697, 0.0
        %v1730 = vmax.f32 %v1698, 0.0
        %v1731 = vmax.f32 %v1699, 0.0
        %v1732 = vmax.f32 %v1700, 0.0
        %v1733 = vmax.f32 %v1701, 0.0
        %v1734 = vmax.f32 %v1702, 0.0
        %v1735 = vmax.f32 %v1703, 0.0
        %v1736 = vmax.f32 %v1704, 0.0
        %v1737 = vmax.f32 %v1705, 0.0
        %v1738 = vmax.f32 %v1706, 0.0
        %v1739 = vmax.f32 %v1707, 0.0
        %v1740 = vpack.c.bf16 %v1709, %v1708
        %v1741 = vpack.c.bf16 %v1711, %v1710
        %v1742 = vpack.c.bf16 %v1713, %v1712
        %v1743 = vpack.c.bf16 %v1715, %v1714
        %v1744 = vpack.c.bf16 %v1717, %v1716
        %v1745 = vpack.c.bf16 %v1719, %v1718
        %v1746 = vpack.c.bf16 %v1721, %v1720
        %v1747 = vpack.c.bf16 %v1723, %v1722
        %v1748 = vpack.c.bf16 %v1725, %v1724
        %v1749 = vpack.c.bf16 %v1727, %v1726
        %v1750 = vpack.c.bf16 %v1729, %v1728
        %v1751 = vpack.c.bf16 %v1731, %v1730
        %v1752 = vpack.c.bf16 %v1733, %v1732
        %v1753 = vpack.c.bf16 %v1735, %v1734
        %v1754 = vpack.c.bf16 %v1737, %v1736
        %v1755 = vpack.c.bf16 %v1739, %v1738
        %vm1756 = vcmask 15360
        %1757 = vst.msk [vmem:[#allocation2] sm:$0xff] %vm1756, %v1740
        %1758 = vst.msk [vmem:[#allocation2 + $0x8] sm:$0xff] %vm1756, %v1741
        %1759 = vst.msk [vmem:[#allocation2 + $0x10] sm:$0xff] %vm1756, %v1742
        %1760 = vst.msk [vmem:[#allocation2 + $0x18] sm:$0xff] %vm1756, %v1743
        %1761 = vst.msk [vmem:[#allocation2 + $0x20] sm:$0xff] %vm1756, %v1744
        %1762 = vst.msk [vmem:[#allocation2 + $0x28] sm:$0xff] %vm1756, %v1745
        %1763 = vst.msk [vmem:[#allocation2 + $0x30] sm:$0xff] %vm1756, %v1746
        %1764 = vst.msk [vmem:[#allocation2 + $0x38] sm:$0xff] %vm1756, %v1747
        %1765 = vst.msk [vmem:[#allocation2 + $0x40] sm:$0xff] %vm1756, %v1748
        %1766 = vst.msk [vmem:[#allocation2 + $0x48] sm:$0xff] %vm1756, %v1749
        %1767 = vst.msk [vmem:[#allocation2 + $0x50] sm:$0xff] %vm1756, %v1750
        %1768 = vst.msk [vmem:[#allocation2 + $0x58] sm:$0xff] %vm1756, %v1751
        %1769 = vst.msk [vmem:[#allocation2 + $0x60] sm:$0xff] %vm1756, %v1752
        %1770 = vst.msk [vmem:[#allocation2 + $0x68] sm:$0xff] %vm1756, %v1753
        %1771 = vst.msk [vmem:[#allocation2 + $0x70] sm:$0xff] %vm1756, %v1754
        %1772 = vst.msk [vmem:[#allocation2 + $0x78] sm:$0xff] %vm1756, %v1755
        %v1773 = vld [vmem:[%s3] sm:$0xf]
        %v1774 = vld [vmem:[%s3 + $0x4] sm:$0xf]
        %v1777 = vunpack.c.l.b16 %v1773
        %v1778 = vunpack.c.l.b16 %v1774
        %v1779 = vpack.c.b16 %v1778, %v1777
        %1781 = vmatprep.subr.bf16.mxu0 0
        %1782 = vmatpush1.bf16.msra.mxu0 %v1779
        %1783 = vmatprep.subr.bf16.mxu0 0
        %1784 = vmatpush1.bf16.msra.mxu0 0
        %1785 = vmatprep.subr.bf16.mxu0 0
        %1786 = vmatpush1.bf16.msra.mxu0 0
        %1787 = vmatprep.subr.bf16.mxu0 0
        %1788 = vmatpush1.bf16.msra.mxu0 0
        %1789 = vmatprep.subr.bf16.mxu0 0
        %1790 = vmatpush1.bf16.msra.mxu0 0
        %1791 = vmatprep.subr.bf16.mxu0 0
        %1792 = vmatpush1.bf16.msra.mxu0 0
        %1793 = vmatprep.subr.bf16.mxu0 0
        %1794 = vmatpush1.bf16.msra.mxu0 0
        %1795 = vmatprep.subr.bf16.mxu0 0
        %1796 = vmatpush1.bf16.msra.mxu0 0
        %1797 = vmatprep.subr.bf16.mxu0 0
        %1798 = vmatpush1.bf16.msra.mxu0 0
        %1799 = vmatprep.subr.bf16.mxu0 0
        %1800 = vmatpush1.bf16.msra.mxu0 0
        %1801 = vmatprep.subr.bf16.mxu0 0
        %1802 = vmatpush1.bf16.msra.mxu0 0
        %1803 = vmatprep.subr.bf16.mxu0 0
        %1804 = vmatpush1.bf16.msra.mxu0 0
        %1805 = vmatprep.subr.bf16.mxu0 0
        %1806 = vmatpush1.bf16.msra.mxu0 0
        %1807 = vmatprep.subr.bf16.mxu0 0
        %1808 = vmatpush1.bf16.msra.mxu0 0
        %1809 = vmatprep.subr.bf16.mxu0 0
        %1810 = vmatpush1.bf16.msra.mxu0 0
        %1811 = vmatprep.subr.bf16.mxu0 0
        %1812 = vmatpush1.bf16.msra.mxu0 0
        %1813 = vmatprep.mubr.bf16.mxu0 0
        %1814 = vmatmul.mubr.bf16.gmra.mrb[0].mxu0 %v415
        %v1815 = vpop.f32.mrb[0].mxu0
        %v1816 = vadd.f32 0.0, %v1815
        %v1817 = vpop.f32.mrb[0].mxu0
        %v1818 = vpop.f32.mrb[0].mxu0
        %v1819 = vadd.f32 0.0, %v1818
        %v1820 = vpop.f32.mrb[0].mxu0
        %1821 = vmatprep.mubr.bf16.mxu0 0
        %1822 = vmatmul.mubr.bf16.gmra.mrb[0].mxu0 %v418
        %v1823 = vpop.f32.mrb[0].mxu0
        %v1824 = vadd.f32 0.0, %v1823
        %v1825 = vpop.f32.mrb[0].mxu0
        %v1826 = vpop.f32.mrb[0].mxu0
        %v1827 = vadd.f32 0.0, %v1826
        %v1828 = vpop.f32.mrb[0].mxu0
        %1829 = vmatprep.mubr.bf16.mxu0 0
        %1830 = vmatmul.mubr.bf16.gmra.mrb[0].mxu0 %v421
        %v1831 = vpop.f32.mrb[0].mxu0
        %v1832 = vadd.f32 0.0, %v1831
        %v1833 = vpop.f32.mrb[0].mxu0
        %v1834 = vpop.f32.mrb[0].mxu0
        %v1835 = vadd.f32 0.0, %v1834
        %v1836 = vpop.f32.mrb[0].mxu0
        %1837 = vmatprep.mubr.bf16.mxu0 0
        %1838 = vmatmul.mubr.bf16.gmra.mrb[0].mxu0 %v424
        %v1839 = vpop.f32.mrb[0].mxu0
        %v1840 = vadd.f32 0.0, %v1839
        %v1841 = vpop.f32.mrb[0].mxu0
        %v1842 = vpop.f32.mrb[0].mxu0
        %v1843 = vadd.f32 0.0, %v1842
        %v1844 = vpop.f32.mrb[0].mxu0
        %1845 = vmatprep.mubr.bf16.mxu0 0
        %1846 = vmatmul.mubr.bf16.gmra.mrb[0].mxu0 %v427
        %v1847 = vpop.f32.mrb[0].mxu0
        %v1848 = vadd.f32 0.0, %v1847
        %v1849 = vpop.f32.mrb[0].mxu0
        %v1850 = vpop.f32.mrb[0].mxu0
        %v1851 = vadd.f32 0.0, %v1850
        %v1852 = vpop.f32.mrb[0].mxu0
        %1853 = vmatprep.mubr.bf16.mxu0 0
        %1854 = vmatmul.mubr.bf16.gmra.mrb[0].mxu0 %v430
        %v1855 = vpop.f32.mrb[0].mxu0
        %v1856 = vadd.f32 0.0, %v1855
        %v1857 = vpop.f32.mrb[0].mxu0
        %v1858 = vpop.f32.mrb[0].mxu0
        %v1859 = vadd.f32 0.0, %v1858
        %v1860 = vpop.f32.mrb[0].mxu0
        %1861 = vmatprep.mubr.bf16.mxu0 0
        %1862 = vmatmul.mubr.bf16.gmra.mrb[0].mxu0 %v433
        %v1863 = vpop.f32.mrb[0].mxu0
        %v1864 = vadd.f32 0.0, %v1863
        %v1865 = vpop.f32.mrb[0].mxu0
        %v1866 = vpop.f32.mrb[0].mxu0
        %v1867 = vadd.f32 0.0, %v1866
        %v1868 = vpop.f32.mrb[0].mxu0
        %1869 = vmatprep.mubr.bf16.mxu0 0
        %1870 = vmatmul.mubr.bf16.gmra.mrb[0].mxu0 %v436
        %v1871 = vpop.f32.mrb[0].mxu0
        %v1872 = vadd.f32 0.0, %v1871
        %v1873 = vpop.f32.mrb[0].mxu0
        %v1874 = vpop.f32.mrb[0].mxu0
        %v1875 = vadd.f32 0.0, %v1874
        %v1876 = vpop.f32.mrb[0].mxu0
        %1877 = vmatprep.mubr.bf16.mxu0 0
        %1878 = vmatmul.mubr.bf16.gmra.mrb[0].mxu0 %v439
        %v1879 = vpop.f32.mrb[0].mxu0
        %v1880 = vadd.f32 0.0, %v1879
        %v1881 = vpop.f32.mrb[0].mxu0
        %v1882 = vpop.f32.mrb[0].mxu0
        %v1883 = vadd.f32 0.0, %v1882
        %v1884 = vpop.f32.mrb[0].mxu0
        %1885 = vmatprep.mubr.bf16.mxu0 0
        %1886 = vmatmul.mubr.bf16.gmra.mrb[0].mxu0 %v442
        %v1887 = vpop.f32.mrb[0].mxu0
        %v1888 = vadd.f32 0.0, %v1887
        %v1889 = vpop.f32.mrb[0].mxu0
        %v1890 = vpop.f32.mrb[0].mxu0
        %v1891 = vadd.f32 0.0, %v1890
        %v1892 = vpop.f32.mrb[0].mxu0
        %1893 = vmatprep.mubr.bf16.mxu0 0
        %1894 = vmatmul.mubr.bf16.gmra.mrb[0].mxu0 %v445
        %v1895 = vpop.f32.mrb[0].mxu0
        %v1896 = vadd.f32 0.0, %v1895
        %v1897 = vpop.f32.mrb[0].mxu0
        %v1898 = vpop.f32.mrb[0].mxu0
        %v1899 = vadd.f32 0.0, %v1898
        %v1900 = vpop.f32.mrb[0].mxu0
        %1901 = vmatprep.mubr.bf16.mxu0 0
        %1902 = vmatmul.mubr.bf16.gmra.mrb[0].mxu0 %v448
        %v1903 = vpop.f32.mrb[0].mxu0
        %v1904 = vadd.f32 0.0, %v1903
        %v1905 = vpop.f32.mrb[0].mxu0
        %v1906 = vpop.f32.mrb[0].mxu0
        %v1907 = vadd.f32 0.0, %v1906
        %v1908 = vpop.f32.mrb[0].mxu0
        %1909 = vmatprep.mubr.bf16.mxu0 0
        %1910 = vmatmul.mubr.bf16.gmra.mrb[0].mxu0 %v451
        %v1911 = vpop.f32.mrb[0].mxu0
        %v1912 = vadd.f32 0.0, %v1911
        %v1913 = vpop.f32.mrb[0].mxu0
        %v1914 = vpop.f32.mrb[0].mxu0
        %v1915 = vadd.f32 0.0, %v1914
        %v1916 = vpop.f32.mrb[0].mxu0
        %1917 = vmatprep.mubr.bf16.mxu0 0
        %1918 = vmatmul.mubr.bf16.gmra.mrb[0].mxu0 %v454
        %v1919 = vpop.f32.mrb[0].mxu0
        %v1920 = vadd.f32 0.0, %v1919
        %v1921 = vpop.f32.mrb[0].mxu0
        %v1922 = vpop.f32.mrb[0].mxu0
        %v1923 = vadd.f32 0.0, %v1922
        %v1924 = vpop.f32.mrb[0].mxu0
        %1925 = vmatprep.mubr.bf16.mxu0 0
        %1926 = vmatmul.mubr.bf16.gmra.mrb[0].mxu0 %v457
        %v1927 = vpop.f32.mrb[0].mxu0
        %v1928 = vadd.f32 0.0, %v1927
        %v1929 = vpop.f32.mrb[0].mxu0
        %v1930 = vpop.f32.mrb[0].mxu0
        %v1931 = vadd.f32 0.0, %v1930
        %v1932 = vpop.f32.mrb[0].mxu0
        %1933 = vmatprep.mubr.bf16.mxu0 0
        %1934 = vmatmul.mubr.bf16.gmra.mrb[0].mxu0 %v460
        %v1935 = vpop.f32.mrb[0].mxu0
        %v1936 = vadd.f32 0.0, %v1935
        %v1937 = vpop.f32.mrb[0].mxu0
        %v1938 = vpop.f32.mrb[0].mxu0
        %v1939 = vadd.f32 0.0, %v1938
        %v1940 = vpop.f32.mrb[0].mxu0
        %1941 = vdwg.mxu0
        %s1942 = scalar_lea.vmem %s3, 8
        %v1943 = vld [vmem:[%s1942] sm:$0xf]
        %v1944 = vld [vmem:[%s1942 + $0x4] sm:$0xf]
        %v1947 = vunpack.c.l.b16 %v1943
        %v1948 = vunpack.c.l.b16 %v1944
        %v1949 = vpack.c.b16 %v1948, %v1947
        %1951 = vmatprep.subr.bf16.mxu0 0
        %1952 = vmatpush1.bf16.msra.mxu0 %v1949
        %1953 = vmatprep.subr.bf16.mxu0 0
        %1954 = vmatpush1.bf16.msra.mxu0 0
        %1955 = vmatprep.subr.bf16.mxu0 0
        %1956 = vmatpush1.bf16.msra.mxu0 0
        %1957 = vmatprep.subr.bf16.mxu0 0
        %1958 = vmatpush1.bf16.msra.mxu0 0
        %1959 = vmatprep.subr.bf16.mxu0 0
        %1960 = vmatpush1.bf16.msra.mxu0 0
        %1961 = vmatprep.subr.bf16.mxu0 0
        %1962 = vmatpush1.bf16.msra.mxu0 0
        %1963 = vmatprep.subr.bf16.mxu0 0
        %1964 = vmatpush1.bf16.msra.mxu0 0
        %1965 = vmatprep.subr.bf16.mxu0 0
        %1966 = vmatpush1.bf16.msra.mxu0 0
        %1967 = vmatprep.subr.bf16.mxu0 0
        %1968 = vmatpush1.bf16.msra.mxu0 0
        %1969 = vmatprep.subr.bf16.mxu0 0
        %1970 = vmatpush1.bf16.msra.mxu0 0
        %1971 = vmatprep.subr.bf16.mxu0 0
        %1972 = vmatpush1.bf16.msra.mxu0 0
        %1973 = vmatprep.subr.bf16.mxu0 0
        %1974 = vmatpush1.bf16.msra.mxu0 0
        %1975 = vmatprep.subr.bf16.mxu0 0
        %1976 = vmatpush1.bf16.msra.mxu0 0
        %1977 = vmatprep.subr.bf16.mxu0 0
        %1978 = vmatpush1.bf16.msra.mxu0 0
        %1979 = vmatprep.subr.bf16.mxu0 0
        %1980 = vmatpush1.bf16.msra.mxu0 0
        %1981 = vmatprep.subr.bf16.mxu0 0
        %1982 = vmatpush1.bf16.msra.mxu0 0
        %1983 = vmatprep.mubr.bf16.mxu0 0
        %1984 = vmatmul.mubr.bf16.gmra.mrb[0].mxu0 %v415
        %v1985 = vpop.f32.mrb[0].mxu0
        %v1986 = vadd.f32 0.0, %v1985
        %v1987 = vpop.f32.mrb[0].mxu0
        %v1988 = vpop.f32.mrb[0].mxu0
        %v1989 = vadd.f32 0.0, %v1988
        %v1990 = vpop.f32.mrb[0].mxu0
        %1991 = vmatprep.mubr.bf16.mxu0 0
        %1992 = vmatmul.mubr.bf16.gmra.mrb[0].mxu0 %v418
        %v1993 = vpop.f32.mrb[0].mxu0
        %v1994 = vadd.f32 0.0, %v1993
        %v1995 = vpop.f32.mrb[0].mxu0
        %v1996 = vpop.f32.mrb[0].mxu0
        %v1997 = vadd.f32 0.0, %v1996
        %v1998 = vpop.f32.mrb[0].mxu0
        %1999 = vmatprep.mubr.bf16.mxu0 0
        %2000 = vmatmul.mubr.bf16.gmra.mrb[0].mxu0 %v421
        %v2001 = vpop.f32.mrb[0].mxu0
        %v2002 = vadd.f32 0.0, %v2001
        %v2003 = vpop.f32.mrb[0].mxu0
        %v2004 = vpop.f32.mrb[0].mxu0
        %v2005 = vadd.f32 0.0, %v2004
        %v2006 = vpop.f32.mrb[0].mxu0
        %2007 = vmatprep.mubr.bf16.mxu0 0
        %2008 = vmatmul.mubr.bf16.gmra.mrb[0].mxu0 %v424
        %v2009 = vpop.f32.mrb[0].mxu0
        %v2010 = vadd.f32 0.0, %v2009
        %v2011 = vpop.f32.mrb[0].mxu0
        %v2012 = vpop.f32.mrb[0].mxu0
        %v2013 = vadd.f32 0.0, %v2012
        %v2014 = vpop.f32.mrb[0].mxu0
        %2015 = vmatprep.mubr.bf16.mxu0 0
        %2016 = vmatmul.mubr.bf16.gmra.mrb[0].mxu0 %v427
        %v2017 = vpop.f32.mrb[0].mxu0
        %v2018 = vadd.f32 0.0, %v2017
        %v2019 = vpop.f32.mrb[0].mxu0
        %v2020 = vpop.f32.mrb[0].mxu0
        %v2021 = vadd.f32 0.0, %v2020
        %v2022 = vpop.f32.mrb[0].mxu0
        %2023 = vmatprep.mubr.bf16.mxu0 0
        %2024 = vmatmul.mubr.bf16.gmra.mrb[0].mxu0 %v430
        %v2025 = vpop.f32.mrb[0].mxu0
        %v2026 = vadd.f32 0.0, %v2025
        %v2027 = vpop.f32.mrb[0].mxu0
        %v2028 = vpop.f32.mrb[0].mxu0
        %v2029 = vadd.f32 0.0, %v2028
        %v2030 = vpop.f32.mrb[0].mxu0
        %2031 = vmatprep.mubr.bf16.mxu0 0
        %2032 = vmatmul.mubr.bf16.gmra.mrb[0].mxu0 %v433
        %v2033 = vpop.f32.mrb[0].mxu0
        %v2034 = vadd.f32 0.0, %v2033
        %v2035 = vpop.f32.mrb[0].mxu0
        %v2036 = vpop.f32.mrb[0].mxu0
        %v2037 = vadd.f32 0.0, %v2036
        %v2038 = vpop.f32.mrb[0].mxu0
        %2039 = vmatprep.mubr.bf16.mxu0 0
        %2040 = vmatmul.mubr.bf16.gmra.mrb[0].mxu0 %v436
        %v2041 = vpop.f32.mrb[0].mxu0
        %v2042 = vadd.f32 0.0, %v2041
        %v2043 = vpop.f32.mrb[0].mxu0
        %v2044 = vpop.f32.mrb[0].mxu0
        %v2045 = vadd.f32 0.0, %v2044
        %v2046 = vpop.f32.mrb[0].mxu0
        %2047 = vmatprep.mubr.bf16.mxu0 0
        %2048 = vmatmul.mubr.bf16.gmra.mrb[0].mxu0 %v439
        %v2049 = vpop.f32.mrb[0].mxu0
        %v2050 = vadd.f32 0.0, %v2049
        %v2051 = vpop.f32.mrb[0].mxu0
        %v2052 = vpop.f32.mrb[0].mxu0
        %v2053 = vadd.f32 0.0, %v2052
        %v2054 = vpop.f32.mrb[0].mxu0
        %2055 = vmatprep.mubr.bf16.mxu0 0
        %2056 = vmatmul.mubr.bf16.gmra.mrb[0].mxu0 %v442
        %v2057 = vpop.f32.mrb[0].mxu0
        %v2058 = vadd.f32 0.0, %v2057
        %v2059 = vpop.f32.mrb[0].mxu0
        %v2060 = vpop.f32.mrb[0].mxu0
        %v2061 = vadd.f32 0.0, %v2060
        %v2062 = vpop.f32.mrb[0].mxu0
        %2063 = vmatprep.mubr.bf16.mxu0 0
        %2064 = vmatmul.mubr.bf16.gmra.mrb[0].mxu0 %v445
        %v2065 = vpop.f32.mrb[0].mxu0
        %v2066 = vadd.f32 0.0, %v2065
        %v2067 = vpop.f32.mrb[0].mxu0
        %v2068 = vpop.f32.mrb[0].mxu0
        %v2069 = vadd.f32 0.0, %v2068
        %v2070 = vpop.f32.mrb[0].mxu0
        %2071 = vmatprep.mubr.bf16.mxu0 0
        %2072 = vmatmul.mubr.bf16.gmra.mrb[0].mxu0 %v448
        %v2073 = vpop.f32.mrb[0].mxu0
        %v2074 = vadd.f32 0.0, %v2073
        %v2075 = vpop.f32.mrb[0].mxu0
        %v2076 = vpop.f32.mrb[0].mxu0
        %v2077 = vadd.f32 0.0, %v2076
        %v2078 = vpop.f32.mrb[0].mxu0
        %2079 = vmatprep.mubr.bf16.mxu0 0
        %2080 = vmatmul.mubr.bf16.gmra.mrb[0].mxu0 %v451
        %v2081 = vpop.f32.mrb[0].mxu0
        %v2082 = vadd.f32 0.0, %v2081
        %v2083 = vpop.f32.mrb[0].mxu0
        %v2084 = vpop.f32.mrb[0].mxu0
        %v2085 = vadd.f32 0.0, %v2084
        %v2086 = vpop.f32.mrb[0].mxu0
        %2087 = vmatprep.mubr.bf16.mxu0 0
        %2088 = vmatmul.mubr.bf16.gmra.mrb[0].mxu0 %v454
        %v2089 = vpop.f32.mrb[0].mxu0
        %v2090 = vadd.f32 0.0, %v2089
        %v2091 = vpop.f32.mrb[0].mxu0
        %v2092 = vpop.f32.mrb[0].mxu0
        %v2093 = vadd.f32 0.0, %v2092
        %v2094 = vpop.f32.mrb[0].mxu0
        %2095 = vmatprep.mubr.bf16.mxu0 0
        %2096 = vmatmul.mubr.bf16.gmra.mrb[0].mxu0 %v457
        %v2097 = vpop.f32.mrb[0].mxu0
        %v2098 = vadd.f32 0.0, %v2097
        %v2099 = vpop.f32.mrb[0].mxu0
        %v2100 = vpop.f32.mrb[0].mxu0
        %v2101 = vadd.f32 0.0, %v2100
        %v2102 = vpop.f32.mrb[0].mxu0
        %2103 = vmatprep.mubr.bf16.mxu0 0
        %2104 = vmatmul.mubr.bf16.gmra.mrb[0].mxu0 %v460
        %v2105 = vpop.f32.mrb[0].mxu0
        %v2106 = vadd.f32 0.0, %v2105
        %v2107 = vpop.f32.mrb[0].mxu0
        %v2108 = vpop.f32.mrb[0].mxu0
        %v2109 = vadd.f32 0.0, %v2108
        %v2110 = vpop.f32.mrb[0].mxu0
        %2111 = vdwg.mxu0
        %s2112 = scalar_lea.vmem %s3, 16
        %v2113 = vld [vmem:[%s2112] sm:$0xf]
        %v2114 = vld [vmem:[%s2112 + $0x4] sm:$0xf]
        %v2117 = vunpack.c.l.b16 %v2113
        %v2118 = vunpack.c.l.b16 %v2114
        %v2119 = vpack.c.b16 %v2118, %v2117
        %2121 = vmatprep.subr.bf16.mxu0 0
        %2122 = vmatpush1.bf16.msra.mxu0 %v2119
        %2123 = vmatprep.subr.bf16.mxu0 0
        %2124 = vmatpush1.bf16.msra.mxu0 0
        %2125 = vmatprep.subr.bf16.mxu0 0
        %2126 = vmatpush1.bf16.msra.mxu0 0
        %2127 = vmatprep.subr.bf16.mxu0 0
        %2128 = vmatpush1.bf16.msra.mxu0 0
        %2129 = vmatprep.subr.bf16.mxu0 0
        %2130 = vmatpush1.bf16.msra.mxu0 0
        %2131 = vmatprep.subr.bf16.mxu0 0
        %2132 = vmatpush1.bf16.msra.mxu0 0
        %2133 = vmatprep.subr.bf16.mxu0 0
        %2134 = vmatpush1.bf16.msra.mxu0 0
        %2135 = vmatprep.subr.bf16.mxu0 0
        %2136 = vmatpush1.bf16.msra.mxu0 0
        %2137 = vmatprep.subr.bf16.mxu0 0
        %2138 = vmatpush1.bf16.msra.mxu0 0
        %2139 = vmatprep.subr.bf16.mxu0 0
        %2140 = vmatpush1.bf16.msra.mxu0 0
        %2141 = vmatprep.subr.bf16.mxu0 0
        %2142 = vmatpush1.bf16.msra.mxu0 0
        %2143 = vmatprep.subr.bf16.mxu0 0
        %2144 = vmatpush1.bf16.msra.mxu0 0
        %2145 = vmatprep.subr.bf16.mxu0 0
        %2146 = vmatpush1.bf16.msra.mxu0 0
        %2147 = vmatprep.subr.bf16.mxu0 0
        %2148 = vmatpush1.bf16.msra.mxu0 0
        %2149 = vmatprep.subr.bf16.mxu0 0
        %2150 = vmatpush1.bf16.msra.mxu0 0
        %2151 = vmatprep.subr.bf16.mxu0 0
        %2152 = vmatpush1.bf16.msra.mxu0 0
        %2153 = vmatprep.mubr.bf16.mxu0 0
        %2154 = vmatmul.mubr.bf16.gmra.mrb[0].mxu0 %v415
        %v2155 = vpop.f32.mrb[0].mxu0
        %v2156 = vadd.f32 0.0, %v2155
        %v2157 = vpop.f32.mrb[0].mxu0
        %v2158 = vpop.f32.mrb[0].mxu0
        %v2159 = vadd.f32 0.0, %v2158
        %v2160 = vpop.f32.mrb[0].mxu0
        %2161 = vmatprep.mubr.bf16.mxu0 0
        %2162 = vmatmul.mubr.bf16.gmra.mrb[0].mxu0 %v418
        %v2163 = vpop.f32.mrb[0].mxu0
        %v2164 = vadd.f32 0.0, %v2163
        %v2165 = vpop.f32.mrb[0].mxu0
        %v2166 = vpop.f32.mrb[0].mxu0
        %v2167 = vadd.f32 0.0, %v2166
        %v2168 = vpop.f32.mrb[0].mxu0
        %2169 = vmatprep.mubr.bf16.mxu0 0
        %2170 = vmatmul.mubr.bf16.gmra.mrb[0].mxu0 %v421
        %v2171 = vpop.f32.mrb[0].mxu0
        %v2172 = vadd.f32 0.0, %v2171
        %v2173 = vpop.f32.mrb[0].mxu0
        %v2174 = vpop.f32.mrb[0].mxu0
        %v2175 = vadd.f32 0.0, %v2174
        %v2176 = vpop.f32.mrb[0].mxu0
        %2177 = vmatprep.mubr.bf16.mxu0 0
        %2178 = vmatmul.mubr.bf16.gmra.mrb[0].mxu0 %v424
        %v2179 = vpop.f32.mrb[0].mxu0
        %v2180 = vadd.f32 0.0, %v2179
        %v2181 = vpop.f32.mrb[0].mxu0
        %v2182 = vpop.f32.mrb[0].mxu0
        %v2183 = vadd.f32 0.0, %v2182
        %v2184 = vpop.f32.mrb[0].mxu0
        %2185 = vmatprep.mubr.bf16.mxu0 0
        %2186 = vmatmul.mubr.bf16.gmra.mrb[0].mxu0 %v427
        %v2187 = vpop.f32.mrb[0].mxu0
        %v2188 = vadd.f32 0.0, %v2187
        %v2189 = vpop.f32.mrb[0].mxu0
        %v2190 = vpop.f32.mrb[0].mxu0
        %v2191 = vadd.f32 0.0, %v2190
        %v2192 = vpop.f32.mrb[0].mxu0
        %2193 = vmatprep.mubr.bf16.mxu0 0
        %2194 = vmatmul.mubr.bf16.gmra.mrb[0].mxu0 %v430
        %v2195 = vpop.f32.mrb[0].mxu0
        %v2196 = vadd.f32 0.0, %v2195
        %v2197 = vpop.f32.mrb[0].mxu0
        %v2198 = vpop.f32.mrb[0].mxu0
        %v2199 = vadd.f32 0.0, %v2198
        %v2200 = vpop.f32.mrb[0].mxu0
        %2201 = vmatprep.mubr.bf16.mxu0 0
        %2202 = vmatmul.mubr.bf16.gmra.mrb[0].mxu0 %v433
        %v2203 = vpop.f32.mrb[0].mxu0
        %v2204 = vadd.f32 0.0, %v2203
        %v2205 = vpop.f32.mrb[0].mxu0
        %v2206 = vpop.f32.mrb[0].mxu0
        %v2207 = vadd.f32 0.0, %v2206
        %v2208 = vpop.f32.mrb[0].mxu0
        %2209 = vmatprep.mubr.bf16.mxu0 0
        %2210 = vmatmul.mubr.bf16.gmra.mrb[0].mxu0 %v436
        %v2211 = vpop.f32.mrb[0].mxu0
        %v2212 = vadd.f32 0.0, %v2211
        %v2213 = vpop.f32.mrb[0].mxu0
        %v2214 = vpop.f32.mrb[0].mxu0
        %v2215 = vadd.f32 0.0, %v2214
        %v2216 = vpop.f32.mrb[0].mxu0
        %2217 = vmatprep.mubr.bf16.mxu0 0
        %2218 = vmatmul.mubr.bf16.gmra.mrb[0].mxu0 %v439
        %v2219 = vpop.f32.mrb[0].mxu0
        %v2220 = vadd.f32 0.0, %v2219
        %v2221 = vpop.f32.mrb[0].mxu0
        %v2222 = vpop.f32.mrb[0].mxu0
        %v2223 = vadd.f32 0.0, %v2222
        %v2224 = vpop.f32.mrb[0].mxu0
        %2225 = vmatprep.mubr.bf16.mxu0 0
        %2226 = vmatmul.mubr.bf16.gmra.mrb[0].mxu0 %v442
        %v2227 = vpop.f32.mrb[0].mxu0
        %v2228 = vadd.f32 0.0, %v2227
        %v2229 = vpop.f32.mrb[0].mxu0
        %v2230 = vpop.f32.mrb[0].mxu0
        %v2231 = vadd.f32 0.0, %v2230
        %v2232 = vpop.f32.mrb[0].mxu0
        %2233 = vmatprep.mubr.bf16.mxu0 0
        %2234 = vmatmul.mubr.bf16.gmra.mrb[0].mxu0 %v445
        %v2235 = vpop.f32.mrb[0].mxu0
        %v2236 = vadd.f32 0.0, %v2235
        %v2237 = vpop.f32.mrb[0].mxu0
        %v2238 = vpop.f32.mrb[0].mxu0
        %v2239 = vadd.f32 0.0, %v2238
        %v2240 = vpop.f32.mrb[0].mxu0
        %2241 = vmatprep.mubr.bf16.mxu0 0
        %2242 = vmatmul.mubr.bf16.gmra.mrb[0].mxu0 %v448
        %v2243 = vpop.f32.mrb[0].mxu0
        %v2244 = vadd.f32 0.0, %v2243
        %v2245 = vpop.f32.mrb[0].mxu0
        %v2246 = vpop.f32.mrb[0].mxu0
        %v2247 = vadd.f32 0.0, %v2246
        %v2248 = vpop.f32.mrb[0].mxu0
        %2249 = vmatprep.mubr.bf16.mxu0 0
        %2250 = vmatmul.mubr.bf16.gmra.mrb[0].mxu0 %v451
        %v2251 = vpop.f32.mrb[0].mxu0
        %v2252 = vadd.f32 0.0, %v2251
        %v2253 = vpop.f32.mrb[0].mxu0
        %v2254 = vpop.f32.mrb[0].mxu0
        %v2255 = vadd.f32 0.0, %v2254
        %v2256 = vpop.f32.mrb[0].mxu0
        %2257 = vmatprep.mubr.bf16.mxu0 0
        %2258 = vmatmul.mubr.bf16.gmra.mrb[0].mxu0 %v454
        %v2259 = vpop.f32.mrb[0].mxu0
        %v2260 = vadd.f32 0.0, %v2259
        %v2261 = vpop.f32.mrb[0].mxu0
        %v2262 = vpop.f32.mrb[0].mxu0
        %v2263 = vadd.f32 0.0, %v2262
        %v2264 = vpop.f32.mrb[0].mxu0
        %2265 = vmatprep.mubr.bf16.mxu0 0
        %2266 = vmatmul.mubr.bf16.gmra.mrb[0].mxu0 %v457
        %v2267 = vpop.f32.mrb[0].mxu0
        %v2268 = vadd.f32 0.0, %v2267
        %v2269 = vpop.f32.mrb[0].mxu0
        %v2270 = vpop.f32.mrb[0].mxu0
        %v2271 = vadd.f32 0.0, %v2270
        %v2272 = vpop.f32.mrb[0].mxu0
        %2273 = vmatprep.mubr.bf16.mxu0 0
        %2274 = vmatmul.mubr.bf16.gmra.mrb[0].mxu0 %v460
        %v2275 = vpop.f32.mrb[0].mxu0
        %v2276 = vadd.f32 0.0, %v2275
        %v2277 = vpop.f32.mrb[0].mxu0
        %v2278 = vpop.f32.mrb[0].mxu0
        %v2279 = vadd.f32 0.0, %v2278
        %v2280 = vpop.f32.mrb[0].mxu0
        %2281 = vdwg.mxu0
        %vm2282 = vcmp.ge.s32.totalorder %v373, 16
        %vm2283 = vcmp.ge.s32.totalorder %v374, 16
        %vm2284 = vcmp.ge.s32.totalorder %v375, 16
        %vm2285 = vcmp.ge.s32.totalorder %v376, 16
        %vm2286 = vcmp.ge.s32.totalorder %v377, 16
        %vm2287 = vcmp.ge.s32.totalorder %v378, 16
        %vm2288 = vcmp.ge.s32.totalorder %v379, 16
        %vm2289 = vcmp.ge.s32.totalorder %v380, 16
        %vm2290 = vcmp.ge.s32.totalorder %v381, 16
        %vm2291 = vcmp.ge.s32.totalorder %v382, 16
        %vm2292 = vcmp.ge.s32.totalorder %v383, 16
        %vm2293 = vcmp.ge.s32.totalorder %v384, 16
        %vm2294 = vcmp.ge.s32.totalorder %v385, 16
        %vm2295 = vcmp.ge.s32.totalorder %v386, 16
        %vm2296 = vcmp.ge.s32.totalorder %v387, 16
        %vm2297 = vcmp.ge.s32.totalorder %v388, 16
        %vm2298 = vcmp.ge.s32.totalorder %v389, 16
        %vm2299 = vcmp.ge.s32.totalorder %v390, 16
        %vm2300 = vcmp.ge.s32.totalorder %v391, 16
        %vm2301 = vcmp.ge.s32.totalorder %v392, 16
        %vm2302 = vcmp.ge.s32.totalorder %v393, 16
        %vm2303 = vcmp.ge.s32.totalorder %v394, 16
        %vm2304 = vcmp.ge.s32.totalorder %v395, 16
        %vm2305 = vcmp.ge.s32.totalorder %v396, 16
        %vm2306 = vcmp.ge.s32.totalorder %v397, 16
        %vm2307 = vcmp.ge.s32.totalorder %v398, 16
        %vm2308 = vcmp.ge.s32.totalorder %v399, 16
        %vm2309 = vcmp.ge.s32.totalorder %v400, 16
        %vm2310 = vcmp.ge.s32.totalorder %v401, 16
        %vm2311 = vcmp.ge.s32.totalorder %v402, 16
        %vm2312 = vcmp.ge.s32.totalorder %v403, 16
        %vm2313 = vcmp.ge.s32.totalorder %v404, 16
        %v2314 = vsel %vm2282, %v1936, 0.0
        %v2315 = vsel %vm2283, %v1939, 0.0
        %v2316 = vsel %vm2284, %v1816, 0.0
        %v2317 = vsel %vm2285, %v1819, 0.0
        %v2318 = vsel %vm2286, %v1824, 0.0
        %v2319 = vsel %vm2287, %v1827, 0.0
        %v2320 = vsel %vm2288, %v1832, 0.0
        %v2321 = vsel %vm2289, %v1835, 0.0
        %v2322 = vsel %vm2290, %v1840, 0.0
        %v2323 = vsel %vm2291, %v1843, 0.0
        %v2324 = vsel %vm2292, %v1848, 0.0
        %v2325 = vsel %vm2293, %v1851, 0.0
        %v2326 = vsel %vm2294, %v1856, 0.0
        %v2327 = vsel %vm2295, %v1859, 0.0
        %v2328 = vsel %vm2296, %v1864, 0.0
        %v2329 = vsel %vm2297, %v1867, 0.0
        %v2330 = vsel %vm2298, %v1872, 0.0
        %v2331 = vsel %vm2299, %v1875, 0.0
        %v2332 = vsel %vm2300, %v1880, 0.0
        %v2333 = vsel %vm2301, %v1883, 0.0
        %v2334 = vsel %vm2302, %v1888, 0.0
        %v2335 = vsel %vm2303, %v1891, 0.0
        %v2336 = vsel %vm2304, %v1896, 0.0
        %v2337 = vsel %vm2305, %v1899, 0.0
        %v2338 = vsel %vm2306, %v1904, 0.0
        %v2339 = vsel %vm2307, %v1907, 0.0
        %v2340 = vsel %vm2308, %v1912, 0.0
        %v2341 = vsel %vm2309, %v1915, 0.0
        %v2342 = vsel %vm2310, %v1920, 0.0
        %v2343 = vsel %vm2311, %v1923, 0.0
        %v2344 = vsel %vm2312, %v1928, 0.0
        %v2345 = vsel %vm2313, %v1931, 0.0
        %vm2346 = vcmp.lt.s32.totalorder %v373, 240
        %vm2347 = vcmp.lt.s32.totalorder %v374, 240
        %vm2348 = vcmp.lt.s32.totalorder %v375, 240
        %vm2349 = vcmp.lt.s32.totalorder %v376, 240
        %vm2350 = vcmp.lt.s32.totalorder %v377, 240
        %vm2351 = vcmp.lt.s32.totalorder %v378, 240
        %vm2352 = vcmp.lt.s32.totalorder %v379, 240
        %vm2353 = vcmp.lt.s32.totalorder %v380, 240
        %vm2354 = vcmp.lt.s32.totalorder %v381, 240
        %vm2355 = vcmp.lt.s32.totalorder %v382, 240
        %vm2356 = vcmp.lt.s32.totalorder %v383, 240
        %vm2357 = vcmp.lt.s32.totalorder %v384, 240
        %vm2358 = vcmp.lt.s32.totalorder %v385, 240
        %vm2359 = vcmp.lt.s32.totalorder %v386, 240
        %vm2360 = vcmp.lt.s32.totalorder %v387, 240
        %vm2361 = vcmp.lt.s32.totalorder %v388, 240
        %vm2362 = vcmp.lt.s32.totalorder %v389, 240
        %vm2363 = vcmp.lt.s32.totalorder %v390, 240
        %vm2364 = vcmp.lt.s32.totalorder %v391, 240
        %vm2365 = vcmp.lt.s32.totalorder %v392, 240
        %vm2366 = vcmp.lt.s32.totalorder %v393, 240
        %vm2367 = vcmp.lt.s32.totalorder %v394, 240
        %vm2368 = vcmp.lt.s32.totalorder %v395, 240
        %vm2369 = vcmp.lt.s32.totalorder %v396, 240
        %vm2370 = vcmp.lt.s32.totalorder %v397, 240
        %vm2371 = vcmp.lt.s32.totalorder %v398, 240
        %vm2372 = vcmp.lt.s32.totalorder %v399, 240
        %vm2373 = vcmp.lt.s32.totalorder %v400, 240
        %vm2374 = vcmp.lt.s32.totalorder %v401, 240
        %vm2375 = vcmp.lt.s32.totalorder %v402, 240
        %vm2376 = vcmp.lt.s32.totalorder %v403, 240
        %vm2377 = vcmp.lt.s32.totalorder %v404, 240
        %v2378 = vsel %vm2346, %v2164, 0.0
        %v2379 = vsel %vm2347, %v2167, 0.0
        %v2380 = vsel %vm2348, %v2172, 0.0
        %v2381 = vsel %vm2349, %v2175, 0.0
        %v2382 = vsel %vm2350, %v2180, 0.0
        %v2383 = vsel %vm2351, %v2183, 0.0
        %v2384 = vsel %vm2352, %v2188, 0.0
        %v2385 = vsel %vm2353, %v2191, 0.0
        %v2386 = vsel %vm2354, %v2196, 0.0
        %v2387 = vsel %vm2355, %v2199, 0.0
        %v2388 = vsel %vm2356, %v2204, 0.0
        %v2389 = vsel %vm2357, %v2207, 0.0
        %v2390 = vsel %vm2358, %v2212, 0.0
        %v2391 = vsel %vm2359, %v2215, 0.0
        %v2392 = vsel %vm2360, %v2220, 0.0
        %v2393 = vsel %vm2361, %v2223, 0.0
        %v2394 = vsel %vm2362, %v2228, 0.0
        %v2395 = vsel %vm2363, %v2231, 0.0
        %v2396 = vsel %vm2364, %v2236, 0.0
        %v2397 = vsel %vm2365, %v2239, 0.0
        %v2398 = vsel %vm2366, %v2244, 0.0
        %v2399 = vsel %vm2367, %v2247, 0.0
        %v2400 = vsel %vm2368, %v2252, 0.0
        %v2401 = vsel %vm2369, %v2255, 0.0
        %v2402 = vsel %vm2370, %v2260, 0.0
        %v2403 = vsel %vm2371, %v2263, 0.0
        %v2404 = vsel %vm2372, %v2268, 0.0
        %v2405 = vsel %vm2373, %v2271, 0.0
        %v2406 = vsel %vm2374, %v2276, 0.0
        %v2407 = vsel %vm2375, %v2279, 0.0
        %v2408 = vsel %vm2376, %v2156, 0.0
        %v2409 = vsel %vm2377, %v2159, 0.0
        %v2410 = vadd.f32 %v2314, %v1986
        %v2411 = vadd.f32 %v2315, %v1989
        %v2412 = vadd.f32 %v2316, %v1994
        %v2413 = vadd.f32 %v2317, %v1997
        %v2414 = vadd.f32 %v2318, %v2002
        %v2415 = vadd.f32 %v2319, %v2005
        %v2416 = vadd.f32 %v2320, %v2010
        %v2417 = vadd.f32 %v2321, %v2013
        %v2418 = vadd.f32 %v2322, %v2018
        %v2419 = vadd.f32 %v2323, %v2021
        %v2420 = vadd.f32 %v2324, %v2026
        %v2421 = vadd.f32 %v2325, %v2029
        %v2422 = vadd.f32 %v2326, %v2034
        %v2423 = vadd.f32 %v2327, %v2037
        %v2424 = vadd.f32 %v2328, %v2042
        %v2425 = vadd.f32 %v2329, %v2045
        %v2426 = vadd.f32 %v2330, %v2050
        %v2427 = vadd.f32 %v2331, %v2053
        %v2428 = vadd.f32 %v2332, %v2058
        %v2429 = vadd.f32 %v2333, %v2061
        %v2430 = vadd.f32 %v2334, %v2066
        %v2431 = vadd.f32 %v2335, %v2069
        %v2432 = vadd.f32 %v2336, %v2074
        %v2433 = vadd.f32 %v2337, %v2077
        %v2434 = vadd.f32 %v2338, %v2082
        %v2435 = vadd.f32 %v2339, %v2085
        %v2436 = vadd.f32 %v2340, %v2090
        %v2437 = vadd.f32 %v2341, %v2093
        %v2438 = vadd.f32 %v2342, %v2098
        %v2439 = vadd.f32 %v2343, %v2101
        %v2440 = vadd.f32 %v2344, %v2106
        %v2441 = vadd.f32 %v2345, %v2109
        %v2442 = vadd.f32 %v2410, %v2378
        %v2443 = vadd.f32 %v2411, %v2379
        %v2444 = vadd.f32 %v2412, %v2380
        %v2445 = vadd.f32 %v2413, %v2381
        %v2446 = vadd.f32 %v2414, %v2382
        %v2447 = vadd.f32 %v2415, %v2383
        %v2448 = vadd.f32 %v2416, %v2384
        %v2449 = vadd.f32 %v2417, %v2385
        %v2450 = vadd.f32 %v2418, %v2386
        %v2451 = vadd.f32 %v2419, %v2387
        %v2452 = vadd.f32 %v2420, %v2388
        %v2453 = vadd.f32 %v2421, %v2389
        %v2454 = vadd.f32 %v2422, %v2390
        %v2455 = vadd.f32 %v2423, %v2391
        %v2456 = vadd.f32 %v2424, %v2392
        %v2457 = vadd.f32 %v2425, %v2393
        %v2458 = vadd.f32 %v2426, %v2394
        %v2459 = vadd.f32 %v2427, %v2395
        %v2460 = vadd.f32 %v2428, %v2396
        %v2461 = vadd.f32 %v2429, %v2397
        %v2462 = vadd.f32 %v2430, %v2398
        %v2463 = vadd.f32 %v2431, %v2399
        %v2464 = vadd.f32 %v2432, %v2400
        %v2465 = vadd.f32 %v2433, %v2401
        %v2466 = vadd.f32 %v2434, %v2402
        %v2467 = vadd.f32 %v2435, %v2403
        %v2468 = vadd.f32 %v2436, %v2404
        %v2469 = vadd.f32 %v2437, %v2405
        %v2470 = vadd.f32 %v2438, %v2406
        %v2471 = vadd.f32 %v2439, %v2407
        %v2472 = vadd.f32 %v2440, %v2408
        %v2473 = vadd.f32 %v2441, %v2409
        %v2474 = vld [vmem:[%s4] sm:$0x1]
        %v2476 = vlaneseq
        %v2477 = vshrl.u32 %v2476, 7
        %v2478 = vsub.s32 0, %v2477
        %v2479 = vrot.slane %v2474, %v2478
        %v2481 = vadd.f32 %v2442, %v2479
        %v2482 = vadd.f32 %v2443, %v2479
        %v2483 = vadd.f32 %v2444, %v2479
        %v2484 = vadd.f32 %v2445, %v2479
        %v2485 = vadd.f32 %v2446, %v2479
        %v2486 = vadd.f32 %v2447, %v2479
        %v2487 = vadd.f32 %v2448, %v2479
        %v2488 = vadd.f32 %v2449, %v2479
        %v2489 = vadd.f32 %v2450, %v2479
        %v2490 = vadd.f32 %v2451, %v2479
        %v2491 = vadd.f32 %v2452, %v2479
        %v2492 = vadd.f32 %v2453, %v2479
        %v2493 = vadd.f32 %v2454, %v2479
        %v2494 = vadd.f32 %v2455, %v2479
        %v2495 = vadd.f32 %v2456, %v2479
        %v2496 = vadd.f32 %v2457, %v2479
        %v2497 = vadd.f32 %v2458, %v2479
        %v2498 = vadd.f32 %v2459, %v2479
        %v2499 = vadd.f32 %v2460, %v2479
        %v2500 = vadd.f32 %v2461, %v2479
        %v2501 = vadd.f32 %v2462, %v2479
        %v2502 = vadd.f32 %v2463, %v2479
        %v2503 = vadd.f32 %v2464, %v2479
        %v2504 = vadd.f32 %v2465, %v2479
        %v2505 = vadd.f32 %v2466, %v2479
        %v2506 = vadd.f32 %v2467, %v2479
        %v2507 = vadd.f32 %v2468, %v2479
        %v2508 = vadd.f32 %v2469, %v2479
        %v2509 = vadd.f32 %v2470, %v2479
        %v2510 = vadd.f32 %v2471, %v2479
        %v2511 = vadd.f32 %v2472, %v2479
        %v2512 = vadd.f32 %v2473, %v2479
        %v2513 = vmax.f32 %v2481, 0.0
        %v2514 = vmax.f32 %v2482, 0.0
        %v2515 = vmax.f32 %v2483, 0.0
        %v2516 = vmax.f32 %v2484, 0.0
        %v2517 = vmax.f32 %v2485, 0.0
        %v2518 = vmax.f32 %v2486, 0.0
        %v2519 = vmax.f32 %v2487, 0.0
        %v2520 = vmax.f32 %v2488, 0.0
        %v2521 = vmax.f32 %v2489, 0.0
        %v2522 = vmax.f32 %v2490, 0.0
        %v2523 = vmax.f32 %v2491, 0.0
        %v2524 = vmax.f32 %v2492, 0.0
        %v2525 = vmax.f32 %v2493, 0.0
        %v2526 = vmax.f32 %v2494, 0.0
        %v2527 = vmax.f32 %v2495, 0.0
        %v2528 = vmax.f32 %v2496, 0.0
        %v2529 = vmax.f32 %v2497, 0.0
        %v2530 = vmax.f32 %v2498, 0.0
        %v2531 = vmax.f32 %v2499, 0.0
        %v2532 = vmax.f32 %v2500, 0.0
        %v2533 = vmax.f32 %v2501, 0.0
        %v2534 = vmax.f32 %v2502, 0.0
        %v2535 = vmax.f32 %v2503, 0.0
        %v2536 = vmax.f32 %v2504, 0.0
        %v2537 = vmax.f32 %v2505, 0.0
        %v2538 = vmax.f32 %v2506, 0.0
        %v2539 = vmax.f32 %v2507, 0.0
        %v2540 = vmax.f32 %v2508, 0.0
        %v2541 = vmax.f32 %v2509, 0.0
        %v2542 = vmax.f32 %v2510, 0.0
        %v2543 = vmax.f32 %v2511, 0.0
        %v2544 = vmax.f32 %v2512, 0.0
        %v2545 = vpack.c.bf16 %v2514, %v2513
        %v2546 = vpack.c.bf16 %v2516, %v2515
        %v2547 = vpack.c.bf16 %v2518, %v2517
        %v2548 = vpack.c.bf16 %v2520, %v2519
        %v2549 = vpack.c.bf16 %v2522, %v2521
        %v2550 = vpack.c.bf16 %v2524, %v2523
        %v2551 = vpack.c.bf16 %v2526, %v2525
        %v2552 = vpack.c.bf16 %v2528, %v2527
        %v2553 = vpack.c.bf16 %v2530, %v2529
        %v2554 = vpack.c.bf16 %v2532, %v2531
        %v2555 = vpack.c.bf16 %v2534, %v2533
        %v2556 = vpack.c.bf16 %v2536, %v2535
        %v2557 = vpack.c.bf16 %v2538, %v2537
        %v2558 = vpack.c.bf16 %v2540, %v2539
        %v2559 = vpack.c.bf16 %v2542, %v2541
        %v2560 = vpack.c.bf16 %v2544, %v2543
        %2561 = vst.msk [vmem:[#allocation3] sm:$0xff] %vm1756, %v2545
        %2562 = vst.msk [vmem:[#allocation3 + $0x8] sm:$0xff] %vm1756, %v2546
        %2563 = vst.msk [vmem:[#allocation3 + $0x10] sm:$0xff] %vm1756, %v2547
        %2564 = vst.msk [vmem:[#allocation3 + $0x18] sm:$0xff] %vm1756, %v2548
        %2565 = vst.msk [vmem:[#allocation3 + $0x20] sm:$0xff] %vm1756, %v2549
        %2566 = vst.msk [vmem:[#allocation3 + $0x28] sm:$0xff] %vm1756, %v2550
        %2567 = vst.msk [vmem:[#allocation3 + $0x30] sm:$0xff] %vm1756, %v2551
        %2568 = vst.msk [vmem:[#allocation3 + $0x38] sm:$0xff] %vm1756, %v2552
        %2569 = vst.msk [vmem:[#allocation3 + $0x40] sm:$0xff] %vm1756, %v2553
        %2570 = vst.msk [vmem:[#allocation3 + $0x48] sm:$0xff] %vm1756, %v2554
        %2571 = vst.msk [vmem:[#allocation3 + $0x50] sm:$0xff] %vm1756, %v2555
        %2572 = vst.msk [vmem:[#allocation3 + $0x58] sm:$0xff] %vm1756, %v2556
        %2573 = vst.msk [vmem:[#allocation3 + $0x60] sm:$0xff] %vm1756, %v2557
        %2574 = vst.msk [vmem:[#allocation3 + $0x68] sm:$0xff] %vm1756, %v2558
        %2575 = vst.msk [vmem:[#allocation3 + $0x70] sm:$0xff] %vm1756, %v2559
        %2576 = vst.msk [vmem:[#allocation3 + $0x78] sm:$0xff] %vm1756, %v2560
        %v2577 = vld [vmem:[%s5] sm:$0xff]
        %v2578 = vld [vmem:[%s5 + $0x8] sm:$0xff]
        %v2579 = vld [vmem:[%s6] sm:$0x1]
        %v2581 = vlaneseq
        %v2582 = vshrl.u32 %v2581, 7
        %v2583 = vsub.s32 0, %v2582
        %v2584 = vrot.slane %v2579, %v2583
        %v2587 = vsel %vm413, %v324, 0
        %v2590 = vsel %vm413, %v325, 0
        %v2593 = vsel %vm413, %v326, 0
        %v2596 = vsel %vm413, %v327, 0
        %v2599 = vsel %vm413, %v328, 0
        %v2602 = vsel %vm413, %v329, 0
        %v2605 = vsel %vm413, %v330, 0
        %v2608 = vsel %vm413, %v331, 0
        %v2611 = vsel %vm413, %v332, 0
        %v2614 = vsel %vm413, %v333, 0
        %v2617 = vsel %vm413, %v334, 0
        %v2620 = vsel %vm413, %v335, 0
        %v2623 = vsel %vm413, %v336, 0
        %v2626 = vsel %vm413, %v337, 0
        %v2629 = vsel %vm413, %v338, 0
        %v2632 = vsel %vm413, %v339, 0
        %v2635 = vsel %vm413, %v340, 0
        %v2638 = vsel %vm413, %v341, 0
        %v2641 = vsel %vm413, %v342, 0
        %v2644 = vsel %vm413, %v343, 0
        %v2647 = vsel %vm413, %v344, 0
        %v2650 = vsel %vm413, %v345, 0
        %v2653 = vsel %vm413, %v346, 0
        %v2656 = vsel %vm413, %v347, 0
        %v2659 = vsel %vm413, %v348, 0
        %v2662 = vsel %vm413, %v349, 0
        %v2665 = vsel %vm413, %v350, 0
        %v2668 = vsel %vm413, %v351, 0
        %v2671 = vsel %vm413, %v352, 0
        %v2674 = vsel %vm413, %v353, 0
        %v2677 = vsel %vm413, %v354, 0
        %v2680 = vsel %vm413, %v355, 0
        %2682 = vmatprep.subr.mxu0 0.0
        %2683 = vmatpush1.msra.mxu0 %v2577
        %2684 = vmatprep.subr.mxu0 0.0
        %2685 = vmatpush1.msra.mxu0 %v2578
        %2686 = vmatprep.subr.mxu0 0.0
        %2687 = vmatpush1.msra.mxu0 0.0
        %2688 = vmatprep.subr.mxu0 0.0
        %2689 = vmatpush1.msra.mxu0 0.0
        %2690 = vmatprep.subr.mxu0 0.0
        %2691 = vmatpush1.msra.mxu0 0.0
        %2692 = vmatprep.subr.mxu0 0.0
        %2693 = vmatpush1.msra.mxu0 0.0
        %2694 = vmatprep.subr.mxu0 0.0
        %2695 = vmatpush1.msra.mxu0 0.0
        %2696 = vmatprep.subr.mxu0 0.0
        %2697 = vmatpush1.msra.mxu0 0.0
        %2698 = vmatprep.subr.mxu0 0.0
        %2699 = vmatpush1.msra.mxu0 0.0
        %2700 = vmatprep.subr.mxu0 0.0
        %2701 = vmatpush1.msra.mxu0 0.0
        %2702 = vmatprep.subr.mxu0 0.0
        %2703 = vmatpush1.msra.mxu0 0.0
        %2704 = vmatprep.subr.mxu0 0.0
        %2705 = vmatpush1.msra.mxu0 0.0
        %2706 = vmatprep.subr.mxu0 0.0
        %2707 = vmatpush1.msra.mxu0 0.0
        %2708 = vmatprep.subr.mxu0 0.0
        %2709 = vmatpush1.msra.mxu0 0.0
        %2710 = vmatprep.subr.mxu0 0.0
        %2711 = vmatpush1.msra.mxu0 0.0
        %2712 = vmatprep.subr.mxu0 0.0
        %2713 = vmatpush1.msra.mxu0 0.0
        %2714 = vmatprep.subr.mxu0 0.0
        %2715 = vmatpush1.msra.mxu0 0.0
        %2716 = vmatprep.subr.mxu0 0.0
        %2717 = vmatpush1.msra.mxu0 0.0
        %2718 = vmatprep.subr.mxu0 0.0
        %2719 = vmatpush1.msra.mxu0 0.0
        %2720 = vmatprep.subr.mxu0 0.0
        %2721 = vmatpush1.msra.mxu0 0.0
        %2722 = vmatprep.subr.mxu0 0.0
        %2723 = vmatpush1.msra.mxu0 0.0
        %2724 = vmatprep.subr.mxu0 0.0
        %2725 = vmatpush1.msra.mxu0 0.0
        %2726 = vmatprep.subr.mxu0 0.0
        %2727 = vmatpush1.msra.mxu0 0.0
        %2728 = vmatprep.subr.mxu0 0.0
        %2729 = vmatpush1.msra.mxu0 0.0
        %2730 = vmatprep.subr.mxu0 0.0
        %2731 = vmatpush1.msra.mxu0 0.0
        %2732 = vmatprep.subr.mxu0 0.0
        %2733 = vmatpush1.msra.mxu0 0.0
        %2734 = vmatprep.subr.mxu0 0.0
        %2735 = vmatpush1.msra.mxu0 0.0
        %2736 = vmatprep.subr.mxu0 0.0
        %2737 = vmatpush1.msra.mxu0 0.0
        %2738 = vmatprep.subr.mxu0 0.0
        %2739 = vmatpush1.msra.mxu0 0.0
        %2740 = vmatprep.subr.mxu0 0.0
        %2741 = vmatpush1.msra.mxu0 0.0
        %2742 = vmatprep.subr.mxu0 0.0
        %2743 = vmatpush1.msra.mxu0 0.0
        %2744 = vmatprep.subr.mxu0 0.0
        %2745 = vmatpush1.msra.mxu0 0.0
        %2746 = vmatprep.mubr.f32.mxu0 0.0
        %2747 = vmatmul.mubr.f32.gmra.mrb[0].mxu0 %v2587
        %v2748 = vpop.f32.mrb[0].mxu0
        %v2749 = vadd.f32 %v2584, %v2748
        %v2750 = vpop.f32.mrb[0].mxu0
        %2751 = vmatprep.mubr.f32.mxu0 0.0
        %2752 = vmatmul.mubr.f32.gmra.mrb[0].mxu0 %v2590
        %v2753 = vpop.f32.mrb[0].mxu0
        %v2754 = vadd.f32 %v2584, %v2753
        %v2755 = vpop.f32.mrb[0].mxu0
        %2756 = vmatprep.mubr.f32.mxu0 0.0
        %2757 = vmatmul.mubr.f32.gmra.mrb[0].mxu0 %v2593
        %v2758 = vpop.f32.mrb[0].mxu0
        %v2759 = vadd.f32 %v2584, %v2758
        %v2760 = vpop.f32.mrb[0].mxu0
        %2761 = vmatprep.mubr.f32.mxu0 0.0
        %2762 = vmatmul.mubr.f32.gmra.mrb[0].mxu0 %v2596
        %v2763 = vpop.f32.mrb[0].mxu0
        %v2764 = vadd.f32 %v2584, %v2763
        %v2765 = vpop.f32.mrb[0].mxu0
        %2766 = vmatprep.mubr.f32.mxu0 0.0
        %2767 = vmatmul.mubr.f32.gmra.mrb[0].mxu0 %v2599
        %v2768 = vpop.f32.mrb[0].mxu0
        %v2769 = vadd.f32 %v2584, %v2768
        %v2770 = vpop.f32.mrb[0].mxu0
        %2771 = vmatprep.mubr.f32.mxu0 0.0
        %2772 = vmatmul.mubr.f32.gmra.mrb[0].mxu0 %v2602
        %v2773 = vpop.f32.mrb[0].mxu0
        %v2774 = vadd.f32 %v2584, %v2773
        %v2775 = vpop.f32.mrb[0].mxu0
        %2776 = vmatprep.mubr.f32.mxu0 0.0
        %2777 = vmatmul.mubr.f32.gmra.mrb[0].mxu0 %v2605
        %v2778 = vpop.f32.mrb[0].mxu0
        %v2779 = vadd.f32 %v2584, %v2778
        %v2780 = vpop.f32.mrb[0].mxu0
        %2781 = vmatprep.mubr.f32.mxu0 0.0
        %2782 = vmatmul.mubr.f32.gmra.mrb[0].mxu0 %v2608
        %v2783 = vpop.f32.mrb[0].mxu0
        %v2784 = vadd.f32 %v2584, %v2783
        %v2785 = vpop.f32.mrb[0].mxu0
        %2786 = vmatprep.mubr.f32.mxu0 0.0
        %2787 = vmatmul.mubr.f32.gmra.mrb[0].mxu0 %v2611
        %v2788 = vpop.f32.mrb[0].mxu0
        %v2789 = vadd.f32 %v2584, %v2788
        %v2790 = vpop.f32.mrb[0].mxu0
        %2791 = vmatprep.mubr.f32.mxu0 0.0
        %2792 = vmatmul.mubr.f32.gmra.mrb[0].mxu0 %v2614
        %v2793 = vpop.f32.mrb[0].mxu0
        %v2794 = vadd.f32 %v2584, %v2793
        %v2795 = vpop.f32.mrb[0].mxu0
        %2796 = vmatprep.mubr.f32.mxu0 0.0
        %2797 = vmatmul.mubr.f32.gmra.mrb[0].mxu0 %v2617
        %v2798 = vpop.f32.mrb[0].mxu0
        %v2799 = vadd.f32 %v2584, %v2798
        %v2800 = vpop.f32.mrb[0].mxu0
        %2801 = vmatprep.mubr.f32.mxu0 0.0
        %2802 = vmatmul.mubr.f32.gmra.mrb[0].mxu0 %v2620
        %v2803 = vpop.f32.mrb[0].mxu0
        %v2804 = vadd.f32 %v2584, %v2803
        %v2805 = vpop.f32.mrb[0].mxu0
        %2806 = vmatprep.mubr.f32.mxu0 0.0
        %2807 = vmatmul.mubr.f32.gmra.mrb[0].mxu0 %v2623
        %v2808 = vpop.f32.mrb[0].mxu0
        %v2809 = vadd.f32 %v2584, %v2808
        %v2810 = vpop.f32.mrb[0].mxu0
        %2811 = vmatprep.mubr.f32.mxu0 0.0
        %2812 = vmatmul.mubr.f32.gmra.mrb[0].mxu0 %v2626
        %v2813 = vpop.f32.mrb[0].mxu0
        %v2814 = vadd.f32 %v2584, %v2813
        %v2815 = vpop.f32.mrb[0].mxu0
        %2816 = vmatprep.mubr.f32.mxu0 0.0
        %2817 = vmatmul.mubr.f32.gmra.mrb[0].mxu0 %v2629
        %v2818 = vpop.f32.mrb[0].mxu0
        %v2819 = vadd.f32 %v2584, %v2818
        %v2820 = vpop.f32.mrb[0].mxu0
        %2821 = vmatprep.mubr.f32.mxu0 0.0
        %2822 = vmatmul.mubr.f32.gmra.mrb[0].mxu0 %v2632
        %v2823 = vpop.f32.mrb[0].mxu0
        %v2824 = vadd.f32 %v2584, %v2823
        %v2825 = vpop.f32.mrb[0].mxu0
        %2826 = vmatprep.mubr.f32.mxu0 0.0
        %2827 = vmatmul.mubr.f32.gmra.mrb[0].mxu0 %v2635
        %v2828 = vpop.f32.mrb[0].mxu0
        %v2829 = vadd.f32 %v2584, %v2828
        %v2830 = vpop.f32.mrb[0].mxu0
        %2831 = vmatprep.mubr.f32.mxu0 0.0
        %2832 = vmatmul.mubr.f32.gmra.mrb[0].mxu0 %v2638
        %v2833 = vpop.f32.mrb[0].mxu0
        %v2834 = vadd.f32 %v2584, %v2833
        %v2835 = vpop.f32.mrb[0].mxu0
        %2836 = vmatprep.mubr.f32.mxu0 0.0
        %2837 = vmatmul.mubr.f32.gmra.mrb[0].mxu0 %v2641
        %v2838 = vpop.f32.mrb[0].mxu0
        %v2839 = vadd.f32 %v2584, %v2838
        %v2840 = vpop.f32.mrb[0].mxu0
        %2841 = vmatprep.mubr.f32.mxu0 0.0
        %2842 = vmatmul.mubr.f32.gmra.mrb[0].mxu0 %v2644
        %v2843 = vpop.f32.mrb[0].mxu0
        %v2844 = vadd.f32 %v2584, %v2843
        %v2845 = vpop.f32.mrb[0].mxu0
        %2846 = vmatprep.mubr.f32.mxu0 0.0
        %2847 = vmatmul.mubr.f32.gmra.mrb[0].mxu0 %v2647
        %v2848 = vpop.f32.mrb[0].mxu0
        %v2849 = vadd.f32 %v2584, %v2848
        %v2850 = vpop.f32.mrb[0].mxu0
        %2851 = vmatprep.mubr.f32.mxu0 0.0
        %2852 = vmatmul.mubr.f32.gmra.mrb[0].mxu0 %v2650
        %v2853 = vpop.f32.mrb[0].mxu0
        %v2854 = vadd.f32 %v2584, %v2853
        %v2855 = vpop.f32.mrb[0].mxu0
        %2856 = vmatprep.mubr.f32.mxu0 0.0
        %2857 = vmatmul.mubr.f32.gmra.mrb[0].mxu0 %v2653
        %v2858 = vpop.f32.mrb[0].mxu0
        %v2859 = vadd.f32 %v2584, %v2858
        %v2860 = vpop.f32.mrb[0].mxu0
        %2861 = vmatprep.mubr.f32.mxu0 0.0
        %2862 = vmatmul.mubr.f32.gmra.mrb[0].mxu0 %v2656
        %v2863 = vpop.f32.mrb[0].mxu0
        %v2864 = vadd.f32 %v2584, %v2863
        %v2865 = vpop.f32.mrb[0].mxu0
        %2866 = vmatprep.mubr.f32.mxu0 0.0
        %2867 = vmatmul.mubr.f32.gmra.mrb[0].mxu0 %v2659
        %v2868 = vpop.f32.mrb[0].mxu0
        %v2869 = vadd.f32 %v2584, %v2868
        %v2870 = vpop.f32.mrb[0].mxu0
        %2871 = vmatprep.mubr.f32.mxu0 0.0
        %2872 = vmatmul.mubr.f32.gmra.mrb[0].mxu0 %v2662
        %v2873 = vpop.f32.mrb[0].mxu0
        %v2874 = vadd.f32 %v2584, %v2873
        %v2875 = vpop.f32.mrb[0].mxu0
        %2876 = vmatprep.mubr.f32.mxu0 0.0
        %2877 = vmatmul.mubr.f32.gmra.mrb[0].mxu0 %v2665
        %v2878 = vpop.f32.mrb[0].mxu0
        %v2879 = vadd.f32 %v2584, %v2878
        %v2880 = vpop.f32.mrb[0].mxu0
        %2881 = vmatprep.mubr.f32.mxu0 0.0
        %2882 = vmatmul.mubr.f32.gmra.mrb[0].mxu0 %v2668
        %v2883 = vpop.f32.mrb[0].mxu0
        %v2884 = vadd.f32 %v2584, %v2883
        %v2885 = vpop.f32.mrb[0].mxu0
        %2886 = vmatprep.mubr.f32.mxu0 0.0
        %2887 = vmatmul.mubr.f32.gmra.mrb[0].mxu0 %v2671
        %v2888 = vpop.f32.mrb[0].mxu0
        %v2889 = vadd.f32 %v2584, %v2888
        %v2890 = vpop.f32.mrb[0].mxu0
        %2891 = vmatprep.mubr.f32.mxu0 0.0
        %2892 = vmatmul.mubr.f32.gmra.mrb[0].mxu0 %v2674
        %v2893 = vpop.f32.mrb[0].mxu0
        %v2894 = vadd.f32 %v2584, %v2893
        %v2895 = vpop.f32.mrb[0].mxu0
        %2896 = vmatprep.mubr.f32.mxu0 0.0
        %2897 = vmatmul.mubr.f32.gmra.mrb[0].mxu0 %v2677
        %v2898 = vpop.f32.mrb[0].mxu0
        %v2899 = vadd.f32 %v2584, %v2898
        %v2900 = vpop.f32.mrb[0].mxu0
        %2901 = vmatprep.mubr.f32.mxu0 0.0
        %2902 = vmatmul.mubr.f32.gmra.mrb[0].mxu0 %v2680
        %v2903 = vpop.f32.mrb[0].mxu0
        %v2904 = vadd.f32 %v2584, %v2903
        %v2905 = vpop.f32.mrb[0].mxu0
        %2906 = vdwg.mxu0
        %2907 = vst.msk [vmem:[#allocation4] sm:$0xff] %vm413, %v2749
        %2908 = vst.msk [vmem:[#allocation4 + $0x8] sm:$0xff] %vm413, %v2754
        %2909 = vst.msk [vmem:[#allocation4 + $0x10] sm:$0xff] %vm413, %v2759
        %2910 = vst.msk [vmem:[#allocation4 + $0x18] sm:$0xff] %vm413, %v2764
        %2911 = vst.msk [vmem:[#allocation4 + $0x20] sm:$0xff] %vm413, %v2769
        %2912 = vst.msk [vmem:[#allocation4 + $0x28] sm:$0xff] %vm413, %v2774
        %2913 = vst.msk [vmem:[#allocation4 + $0x30] sm:$0xff] %vm413, %v2779
        %2914 = vst.msk [vmem:[#allocation4 + $0x38] sm:$0xff] %vm413, %v2784
        %2915 = vst.msk [vmem:[#allocation4 + $0x40] sm:$0xff] %vm413, %v2789
        %2916 = vst.msk [vmem:[#allocation4 + $0x48] sm:$0xff] %vm413, %v2794
        %2917 = vst.msk [vmem:[#allocation4 + $0x50] sm:$0xff] %vm413, %v2799
        %2918 = vst.msk [vmem:[#allocation4 + $0x58] sm:$0xff] %vm413, %v2804
        %2919 = vst.msk [vmem:[#allocation4 + $0x60] sm:$0xff] %vm413, %v2809
        %2920 = vst.msk [vmem:[#allocation4 + $0x68] sm:$0xff] %vm413, %v2814
        %2921 = vst.msk [vmem:[#allocation4 + $0x70] sm:$0xff] %vm413, %v2819
        %2922 = vst.msk [vmem:[#allocation4 + $0x78] sm:$0xff] %vm413, %v2824
        %2923 = vst.msk [vmem:[#allocation4 + $0x80] sm:$0xff] %vm413, %v2829
        %2924 = vst.msk [vmem:[#allocation4 + $0x88] sm:$0xff] %vm413, %v2834
        %2925 = vst.msk [vmem:[#allocation4 + $0x90] sm:$0xff] %vm413, %v2839
        %2926 = vst.msk [vmem:[#allocation4 + $0x98] sm:$0xff] %vm413, %v2844
        %2927 = vst.msk [vmem:[#allocation4 + $0xa0] sm:$0xff] %vm413, %v2849
        %2928 = vst.msk [vmem:[#allocation4 + $0xa8] sm:$0xff] %vm413, %v2854
        %2929 = vst.msk [vmem:[#allocation4 + $0xb0] sm:$0xff] %vm413, %v2859
        %2930 = vst.msk [vmem:[#allocation4 + $0xb8] sm:$0xff] %vm413, %v2864
        %2931 = vst.msk [vmem:[#allocation4 + $0xc0] sm:$0xff] %vm413, %v2869
        %2932 = vst.msk [vmem:[#allocation4 + $0xc8] sm:$0xff] %vm413, %v2874
        %2933 = vst.msk [vmem:[#allocation4 + $0xd0] sm:$0xff] %vm413, %v2879
        %2934 = vst.msk [vmem:[#allocation4 + $0xd8] sm:$0xff] %vm413, %v2884
        %2935 = vst.msk [vmem:[#allocation4 + $0xe0] sm:$0xff] %vm413, %v2889
        %2936 = vst.msk [vmem:[#allocation4 + $0xe8] sm:$0xff] %vm413, %v2894
        %2937 = vst.msk [vmem:[#allocation4 + $0xf0] sm:$0xff] %vm413, %v2899
        %2938 = vst.msk [vmem:[#allocation4 + $0xf8] sm:$0xff] %vm413, %v2904
        %2939 = vst.msk [vmem:[#allocation6] sm:$0xff] %vm413, 0.0
        %2940 = vst.msk [vmem:[#allocation6 + $0x8] sm:$0xff] %vm413, 0.0
      $region56: #{affinity_attention2.1} parent=51 // pred_fallthru
        _
      %s2941 = smul.u32 %s25, 128
      %s2942 = sshra.s32 %s2941, 4
      %s2943 = sand.u32 %s2941, 15
      %s2944 = smul.addr %s2942, 8
      %s2945 = scalar_lea.vmem [#allocation2], %s2944
      %v2946 = vld [vmem:[%s2945] sm:$0xff]
      %v2947 = vld [vmem:[%s2945 + $0x8] sm:$0xff]
      %v2948 = vld [vmem:[%s2945 + $0x10] sm:$0xff]
      %v2949 = vld [vmem:[%s2945 + $0x18] sm:$0xff]
      %v2950 = vld [vmem:[%s2945 + $0x20] sm:$0xff]
      %v2951 = vld [vmem:[%s2945 + $0x28] sm:$0xff]
      %v2952 = vld [vmem:[%s2945 + $0x30] sm:$0xff]
      %v2953 = vld [vmem:[%s2945 + $0x38] sm:$0xff]
      %v2954 = vld [vmem:[#allocation3] sm:$0xff]
      %v2955 = vld [vmem:[#allocation3 + $0x8] sm:$0xff]
      %v2956 = vld [vmem:[#allocation3 + $0x10] sm:$0xff]
      %v2957 = vld [vmem:[#allocation3 + $0x18] sm:$0xff]
      %v2958 = vld [vmem:[#allocation3 + $0x20] sm:$0xff]
      %v2959 = vld [vmem:[#allocation3 + $0x28] sm:$0xff]
      %v2960 = vld [vmem:[#allocation3 + $0x30] sm:$0xff]
      %v2961 = vld [vmem:[#allocation3 + $0x38] sm:$0xff]
      %v2962 = vld [vmem:[#allocation3 + $0x40] sm:$0xff]
      %v2963 = vld [vmem:[#allocation3 + $0x48] sm:$0xff]
      %v2964 = vld [vmem:[#allocation3 + $0x50] sm:$0xff]
      %v2965 = vld [vmem:[#allocation3 + $0x58] sm:$0xff]
      %v2966 = vld [vmem:[#allocation3 + $0x60] sm:$0xff]
      %v2967 = vld [vmem:[#allocation3 + $0x68] sm:$0xff]
      %v2968 = vld [vmem:[#allocation3 + $0x70] sm:$0xff]
      %v2969 = vld [vmem:[#allocation3 + $0x78] sm:$0xff]
      %vm2970 = vcmask 15360
      %v2972 = vsel %vm2970, %v2946, 0
      %v2975 = vsel %vm2970, %v2947, 0
      %v2978 = vsel %vm2970, %v2948, 0
      %v2981 = vsel %vm2970, %v2949, 0
      %v2984 = vsel %vm2970, %v2950, 0
      %v2987 = vsel %vm2970, %v2951, 0
      %v2990 = vsel %vm2970, %v2952, 0
      %v2993 = vsel %vm2970, %v2953, 0
      %v2996 = vsel %vm2970, %v2954, 0
      %v2999 = vsel %vm2970, %v2955, 0
      %v3002 = vsel %vm2970, %v2956, 0
      %v3005 = vsel %vm2970, %v2957, 0
      %v3008 = vsel %vm2970, %v2958, 0
      %v3011 = vsel %vm2970, %v2959, 0
      %v3014 = vsel %vm2970, %v2960, 0
      %v3017 = vsel %vm2970, %v2961, 0
      %v3020 = vsel %vm2970, %v2962, 0
      %v3023 = vsel %vm2970, %v2963, 0
      %v3026 = vsel %vm2970, %v2964, 0
      %v3029 = vsel %vm2970, %v2965, 0
      %v3032 = vsel %vm2970, %v2966, 0
      %v3035 = vsel %vm2970, %v2967, 0
      %v3038 = vsel %vm2970, %v2968, 0
      %v3041 = vsel %vm2970, %v2969, 0
      %3043 = vmatprep.subr.bf16.mxu0 0
      %3044 = vmatpush1.bf16.xpose.msra.mxu0 %v2996
      %3045 = vmatprep.subr.bf16.mxu0 0
      %3046 = vmatpush1.bf16.xpose.msra.mxu0 %v2999
      %3047 = vmatprep.subr.bf16.mxu0 0
      %3048 = vmatpush1.bf16.xpose.msra.mxu0 %v3002
      %3049 = vmatprep.subr.bf16.mxu0 0
      %3050 = vmatpush1.bf16.xpose.msra.mxu0 %v3005
      %3051 = vmatprep.subr.bf16.mxu0 0
      %3052 = vmatpush1.bf16.xpose.msra.mxu0 %v3008
      %3053 = vmatprep.subr.bf16.mxu0 0
      %3054 = vmatpush1.bf16.xpose.msra.mxu0 %v3011
      %3055 = vmatprep.subr.bf16.mxu0 0
      %3056 = vmatpush1.bf16.xpose.msra.mxu0 %v3014
      %3057 = vmatprep.subr.bf16.mxu0 0
      %3058 = vmatpush1.bf16.xpose.msra.mxu0 %v3017
      %3059 = vmatprep.subr.bf16.mxu0 0
      %3060 = vmatpush1.bf16.xpose.msra.mxu0 %v3020
      %3061 = vmatprep.subr.bf16.mxu0 0
      %3062 = vmatpush1.bf16.xpose.msra.mxu0 %v3023
      %3063 = vmatprep.subr.bf16.mxu0 0
      %3064 = vmatpush1.bf16.xpose.msra.mxu0 %v3026
      %3065 = vmatprep.subr.bf16.mxu0 0
      %3066 = vmatpush1.bf16.xpose.msra.mxu0 %v3029
      %3067 = vmatprep.subr.bf16.mxu0 0
      %3068 = vmatpush1.bf16.xpose.msra.mxu0 %v3032
      %3069 = vmatprep.subr.bf16.mxu0 0
      %3070 = vmatpush1.bf16.xpose.msra.mxu0 %v3035
      %3071 = vmatprep.subr.bf16.mxu0 0
      %3072 = vmatpush1.bf16.xpose.msra.mxu0 %v3038
      %3073 = vmatprep.subr.bf16.mxu0 0
      %3074 = vmatpush1.bf16.xpose.msra.mxu0 %v3041
      %3075 = vmatprep.mubr.bf16.mxu0 0
      %3076 = vmatmul.mubr.bf16.gmra.mrb[0].mxu0 %v2972
      %v3077 = vpop.f32.mrb[0].mxu0
      %v3078 = vadd.f32 0.0, %v3077
      %v3079 = vpop.f32.mrb[0].mxu0
      %v3080 = vadd.f32 0.0, %v3079
      %v3081 = vpop.f32.mrb[0].mxu0
      %v3082 = vadd.f32 0.0, %v3081
      %v3083 = vpop.f32.mrb[0].mxu0
      %v3084 = vadd.f32 0.0, %v3083
      %3085 = vmatprep.mubr.bf16.mxu0 0
      %3086 = vmatmul.mubr.bf16.gmra.mrb[0].mxu0 %v2975
      %v3087 = vpop.f32.mrb[0].mxu0
      %v3088 = vadd.f32 0.0, %v3087
      %v3089 = vpop.f32.mrb[0].mxu0
      %v3090 = vadd.f32 0.0, %v3089
      %v3091 = vpop.f32.mrb[0].mxu0
      %v3092 = vadd.f32 0.0, %v3091
      %v3093 = vpop.f32.mrb[0].mxu0
      %v3094 = vadd.f32 0.0, %v3093
      %3095 = vmatprep.mubr.bf16.mxu0 0
      %3096 = vmatmul.mubr.bf16.gmra.mrb[0].mxu0 %v2978
      %v3097 = vpop.f32.mrb[0].mxu0
      %v3098 = vadd.f32 0.0, %v3097
      %v3099 = vpop.f32.mrb[0].mxu0
      %v3100 = vadd.f32 0.0, %v3099
      %v3101 = vpop.f32.mrb[0].mxu0
      %v3102 = vadd.f32 0.0, %v3101
      %v3103 = vpop.f32.mrb[0].mxu0
      %v3104 = vadd.f32 0.0, %v3103
      %3105 = vmatprep.mubr.bf16.mxu0 0
      %3106 = vmatmul.mubr.bf16.gmra.mrb[0].mxu0 %v2981
      %v3107 = vpop.f32.mrb[0].mxu0
      %v3108 = vadd.f32 0.0, %v3107
      %v3109 = vpop.f32.mrb[0].mxu0
      %v3110 = vadd.f32 0.0, %v3109
      %v3111 = vpop.f32.mrb[0].mxu0
      %v3112 = vadd.f32 0.0, %v3111
      %v3113 = vpop.f32.mrb[0].mxu0
      %v3114 = vadd.f32 0.0, %v3113
      %3115 = vmatprep.mubr.bf16.mxu0 0
      %3116 = vmatmul.mubr.bf16.gmra.mrb[0].mxu0 %v2984
      %v3117 = vpop.f32.mrb[0].mxu0
      %v3118 = vadd.f32 0.0, %v3117
      %v3119 = vpop.f32.mrb[0].mxu0
      %v3120 = vadd.f32 0.0, %v3119
      %v3121 = vpop.f32.mrb[0].mxu0
      %v3122 = vadd.f32 0.0, %v3121
      %v3123 = vpop.f32.mrb[0].mxu0
      %v3124 = vadd.f32 0.0, %v3123
      %3125 = vmatprep.mubr.bf16.mxu0 0
      %3126 = vmatmul.mubr.bf16.gmra.mrb[0].mxu0 %v2987
      %v3127 = vpop.f32.mrb[0].mxu0
      %v3128 = vadd.f32 0.0, %v3127
      %v3129 = vpop.f32.mrb[0].mxu0
      %v3130 = vadd.f32 0.0, %v3129
      %v3131 = vpop.f32.mrb[0].mxu0
      %v3132 = vadd.f32 0.0, %v3131
      %v3133 = vpop.f32.mrb[0].mxu0
      %v3134 = vadd.f32 0.0, %v3133
      %3135 = vmatprep.mubr.bf16.mxu0 0
      %3136 = vmatmul.mubr.bf16.gmra.mrb[0].mxu0 %v2990
      %v3137 = vpop.f32.mrb[0].mxu0
      %v3138 = vadd.f32 0.0, %v3137
      %v3139 = vpop.f32.mrb[0].mxu0
      %v3140 = vadd.f32 0.0, %v3139
      %v3141 = vpop.f32.mrb[0].mxu0
      %v3142 = vadd.f32 0.0, %v3141
      %v3143 = vpop.f32.mrb[0].mxu0
      %v3144 = vadd.f32 0.0, %v3143
      %3145 = vmatprep.mubr.bf16.mxu0 0
      %3146 = vmatmul.mubr.bf16.gmra.mrb[0].mxu0 %v2993
      %v3147 = vpop.f32.mrb[0].mxu0
      %v3148 = vadd.f32 0.0, %v3147
      %v3149 = vpop.f32.mrb[0].mxu0
      %v3150 = vadd.f32 0.0, %v3149
      %v3151 = vpop.f32.mrb[0].mxu0
      %v3152 = vadd.f32 0.0, %v3151
      %v3153 = vpop.f32.mrb[0].mxu0
      %v3154 = vadd.f32 0.0, %v3153
      %3155 = vdwg.mxu0
      %v3156 = vmax.f32 %v3078, %v3080
      %3157 = vmax.xlane.f32.xlu0 %v3156
      %v3158 = vpop.xlane.xlu0 %3157
      %v3159 = vmax.f32 %v3082, %v3084
      %3160 = vmax.xlane.f32.xlu0 %v3159
      %v3161 = vpop.xlane.xlu0 %3160
      %v3162 = vmax.f32 %v3088, %v3090
      %3163 = vmax.xlane.f32.xlu0 %v3162
      %v3164 = vpop.xlane.xlu0 %3163
      %v3165 = vmax.f32 %v3092, %v3094
      %3166 = vmax.xlane.f32.xlu0 %v3165
      %v3167 = vpop.xlane.xlu0 %3166
      %v3168 = vmax.f32 %v3098, %v3100
      %3169 = vmax.xlane.f32.xlu0 %v3168
      %v3170 = vpop.xlane.xlu0 %3169
      %v3171 = vmax.f32 %v3102, %v3104
      %3172 = vmax.xlane.f32.xlu0 %v3171
      %v3173 = vpop.xlane.xlu0 %3172
      %v3174 = vmax.f32 %v3108, %v3110
      %3175 = vmax.xlane.f32.xlu0 %v3174
      %v3176 = vpop.xlane.xlu0 %3175
      %v3177 = vmax.f32 %v3112, %v3114
      %3178 = vmax.xlane.f32.xlu0 %v3177
      %v3179 = vpop.xlane.xlu0 %3178
      %v3180 = vmax.f32 %v3118, %v3120
      %3181 = vmax.xlane.f32.xlu0 %v3180
      %v3182 = vpop.xlane.xlu0 %3181
      %v3183 = vmax.f32 %v3122, %v3124
      %3184 = vmax.xlane.f32.xlu0 %v3183
      %v3185 = vpop.xlane.xlu0 %3184
      %v3186 = vmax.f32 %v3128, %v3130
      %3187 = vmax.xlane.f32.xlu0 %v3186
      %v3188 = vpop.xlane.xlu0 %3187
      %v3189 = vmax.f32 %v3132, %v3134
      %3190 = vmax.xlane.f32.xlu0 %v3189
      %v3191 = vpop.xlane.xlu0 %3190
      %v3192 = vmax.f32 %v3138, %v3140
      %3193 = vmax.xlane.f32.xlu0 %v3192
      %v3194 = vpop.xlane.xlu0 %3193
      %v3195 = vmax.f32 %v3142, %v3144
      %3196 = vmax.xlane.f32.xlu0 %v3195
      %v3197 = vpop.xlane.xlu0 %3196
      %v3198 = vmax.f32 %v3148, %v3150
      %3199 = vmax.xlane.f32.xlu0 %v3198
      %v3200 = vpop.xlane.xlu0 %3199
      %v3201 = vmax.f32 %v3152, %v3154
      %3202 = vmax.xlane.f32.xlu0 %v3201
      %v3203 = vpop.xlane.xlu0 %3202
      %v3204 = vsub.f32 %v3078, %v3158
      %v3205 = vsub.f32 %v3080, %v3158
      %v3206 = vsub.f32 %v3082, %v3161
      %v3207 = vsub.f32 %v3084, %v3161
      %v3208 = vsub.f32 %v3088, %v3164
      %v3209 = vsub.f32 %v3090, %v3164
      %v3210 = vsub.f32 %v3092, %v3167
      %v3211 = vsub.f32 %v3094, %v3167
      %v3212 = vsub.f32 %v3098, %v3170
      %v3213 = vsub.f32 %v3100, %v3170
      %v3214 = vsub.f32 %v3102, %v3173
      %v3215 = vsub.f32 %v3104, %v3173
      %v3216 = vsub.f32 %v3108, %v3176
      %v3217 = vsub.f32 %v3110, %v3176
      %v3218 = vsub.f32 %v3112, %v3179
      %v3219 = vsub.f32 %v3114, %v3179
      %v3220 = vsub.f32 %v3118, %v3182
      %v3221 = vsub.f32 %v3120, %v3182
      %v3222 = vsub.f32 %v3122, %v3185
      %v3223 = vsub.f32 %v3124, %v3185
      %v3224 = vsub.f32 %v3128, %v3188
      %v3225 = vsub.f32 %v3130, %v3188
      %v3226 = vsub.f32 %v3132, %v3191
      %v3227 = vsub.f32 %v3134, %v3191
      %v3228 = vsub.f32 %v3138, %v3194
      %v3229 = vsub.f32 %v3140, %v3194
      %v3230 = vsub.f32 %v3142, %v3197
      %v3231 = vsub.f32 %v3144, %v3197
      %v3232 = vsub.f32 %v3148, %v3200
      %v3233 = vsub.f32 %v3150, %v3200
      %v3234 = vsub.f32 %v3152, %v3203
      %v3235 = vsub.f32 %v3154, %v3203
      %v3236 = vmul.f32 %v3204, 1.442695
      %v3237 = vpow.pop %v3236
      %v3238 = vmul.f32 %v3205, 1.442695
      %v3239 = vpow.pop %v3238
      %v3240 = vmul.f32 %v3206, 1.442695
      %v3241 = vpow.pop %v3240
      %v3242 = vmul.f32 %v3207, 1.442695
      %v3243 = vpow.pop %v3242
      %v3244 = vmul.f32 %v3208, 1.442695
      %v3245 = vpow.pop %v3244
      %v3246 = vmul.f32 %v3209, 1.442695
      %v3247 = vpow.pop %v3246
      %v3248 = vmul.f32 %v3210, 1.442695
      %v3249 = vpow.pop %v3248
      %v3250 = vmul.f32 %v3211, 1.442695
      %v3251 = vpow.pop %v3250
      %v3252 = vmul.f32 %v3212, 1.442695
      %v3253 = vpow.pop %v3252
      %v3254 = vmul.f32 %v3213, 1.442695
      %v3255 = vpow.pop %v3254
      %v3256 = vmul.f32 %v3214, 1.442695
      %v3257 = vpow.pop %v3256
      %v3258 = vmul.f32 %v3215, 1.442695
      %v3259 = vpow.pop %v3258
      %v3260 = vmul.f32 %v3216, 1.442695
      %v3261 = vpow.pop %v3260
      %v3262 = vmul.f32 %v3217, 1.442695
      %v3263 = vpow.pop %v3262
      %v3264 = vmul.f32 %v3218, 1.442695
      %v3265 = vpow.pop %v3264
      %v3266 = vmul.f32 %v3219, 1.442695
      %v3267 = vpow.pop %v3266
      %v3268 = vmul.f32 %v3220, 1.442695
      %v3269 = vpow.pop %v3268
      %v3270 = vmul.f32 %v3221, 1.442695
      %v3271 = vpow.pop %v3270
      %v3272 = vmul.f32 %v3222, 1.442695
      %v3273 = vpow.pop %v3272
      %v3274 = vmul.f32 %v3223, 1.442695
      %v3275 = vpow.pop %v3274
      %v3276 = vmul.f32 %v3224, 1.442695
      %v3277 = vpow.pop %v3276
      %v3278 = vmul.f32 %v3225, 1.442695
      %v3279 = vpow.pop %v3278
      %v3280 = vmul.f32 %v3226, 1.442695
      %v3281 = vpow.pop %v3280
      %v3282 = vmul.f32 %v3227, 1.442695
      %v3283 = vpow.pop %v3282
      %v3284 = vmul.f32 %v3228, 1.442695
      %v3285 = vpow.pop %v3284
      %v3286 = vmul.f32 %v3229, 1.442695
      %v3287 = vpow.pop %v3286
      %v3288 = vmul.f32 %v3230, 1.442695
      %v3289 = vpow.pop %v3288
      %v3290 = vmul.f32 %v3231, 1.442695
      %v3291 = vpow.pop %v3290
      %v3292 = vmul.f32 %v3232, 1.442695
      %v3293 = vpow.pop %v3292
      %v3294 = vmul.f32 %v3233, 1.442695
      %v3295 = vpow.pop %v3294
      %v3296 = vmul.f32 %v3234, 1.442695
      %v3297 = vpow.pop %v3296
      %v3298 = vmul.f32 %v3235, 1.442695
      %v3299 = vpow.pop %v3298
      %v3300 = vadd.f32 %v3237, %v3239
      %3301 = vadd.xlane.f32.xlu0 %v3300
      %v3302 = vpop.xlane.xlu0 %3301
      %v3303 = vadd.f32 %v3241, %v3243
      %3304 = vadd.xlane.f32.xlu0 %v3303
      %v3305 = vpop.xlane.xlu0 %3304
      %v3306 = vadd.f32 %v3245, %v3247
      %3307 = vadd.xlane.f32.xlu0 %v3306
      %v3308 = vpop.xlane.xlu0 %3307
      %v3309 = vadd.f32 %v3249, %v3251
      %3310 = vadd.xlane.f32.xlu0 %v3309
      %v3311 = vpop.xlane.xlu0 %3310
      %v3312 = vadd.f32 %v3253, %v3255
      %3313 = vadd.xlane.f32.xlu0 %v3312
      %v3314 = vpop.xlane.xlu0 %3313
      %v3315 = vadd.f32 %v3257, %v3259
      %3316 = vadd.xlane.f32.xlu0 %v3315
      %v3317 = vpop.xlane.xlu0 %3316
      %v3318 = vadd.f32 %v3261, %v3263
      %3319 = vadd.xlane.f32.xlu0 %v3318
      %v3320 = vpop.xlane.xlu0 %3319
      %v3321 = vadd.f32 %v3265, %v3267
      %3322 = vadd.xlane.f32.xlu0 %v3321
      %v3323 = vpop.xlane.xlu0 %3322
      %v3324 = vadd.f32 %v3269, %v3271
      %3325 = vadd.xlane.f32.xlu0 %v3324
      %v3326 = vpop.xlane.xlu0 %3325
      %v3327 = vadd.f32 %v3273, %v3275
      %3328 = vadd.xlane.f32.xlu0 %v3327
      %v3329 = vpop.xlane.xlu0 %3328
      %v3330 = vadd.f32 %v3277, %v3279
      %3331 = vadd.xlane.f32.xlu0 %v3330
      %v3332 = vpop.xlane.xlu0 %3331
      %v3333 = vadd.f32 %v3281, %v3283
      %3334 = vadd.xlane.f32.xlu0 %v3333
      %v3335 = vpop.xlane.xlu0 %3334
      %v3336 = vadd.f32 %v3285, %v3287
      %3337 = vadd.xlane.f32.xlu0 %v3336
      %v3338 = vpop.xlane.xlu0 %3337
      %v3339 = vadd.f32 %v3289, %v3291
      %3340 = vadd.xlane.f32.xlu0 %v3339
      %v3341 = vpop.xlane.xlu0 %3340
      %v3342 = vadd.f32 %v3293, %v3295
      %3343 = vadd.xlane.f32.xlu0 %v3342
      %v3344 = vpop.xlane.xlu0 %3343
      %v3345 = vadd.f32 %v3297, %v3299
      %3346 = vadd.xlane.f32.xlu0 %v3345
      %v3347 = vpop.xlane.xlu0 %3346
      %v3348 = vrcp.pop %v3302
      %v3349 = vrcp.pop %v3305
      %v3350 = vrcp.pop %v3308
      %v3351 = vrcp.pop %v3311
      %v3352 = vrcp.pop %v3314
      %v3353 = vrcp.pop %v3317
      %v3354 = vrcp.pop %v3320
      %v3355 = vrcp.pop %v3323
      %v3356 = vrcp.pop %v3326
      %v3357 = vrcp.pop %v3329
      %v3358 = vrcp.pop %v3332
      %v3359 = vrcp.pop %v3335
      %v3360 = vrcp.pop %v3338
      %v3361 = vrcp.pop %v3341
      %v3362 = vrcp.pop %v3344
      %v3363 = vrcp.pop %v3347
      %v3364 = vmul.f32 %v3302, %v3348
      %v3365 = vmul.f32 %v3305, %v3349
      %v3366 = vmul.f32 %v3308, %v3350
      %v3367 = vmul.f32 %v3311, %v3351
      %v3368 = vmul.f32 %v3314, %v3352
      %v3369 = vmul.f32 %v3317, %v3353
      %v3370 = vmul.f32 %v3320, %v3354
      %v3371 = vmul.f32 %v3323, %v3355
      %v3372 = vmul.f32 %v3326, %v3356
      %v3373 = vmul.f32 %v3329, %v3357
      %v3374 = vmul.f32 %v3332, %v3358
      %v3375 = vmul.f32 %v3335, %v3359
      %v3376 = vmul.f32 %v3338, %v3360
      %v3377 = vmul.f32 %v3341, %v3361
      %v3378 = vmul.f32 %v3344, %v3362
      %v3379 = vmul.f32 %v3347, %v3363
      %v3380 = vsub.f32 2.0, %v3364
      %v3381 = vsub.f32 2.0, %v3365
      %v3382 = vsub.f32 2.0, %v3366
      %v3383 = vsub.f32 2.0, %v3367
      %v3384 = vsub.f32 2.0, %v3368
      %v3385 = vsub.f32 2.0, %v3369
      %v3386 = vsub.f32 2.0, %v3370
      %v3387 = vsub.f32 2.0, %v3371
      %v3388 = vsub.f32 2.0, %v3372
      %v3389 = vsub.f32 2.0, %v3373
      %v3390 = vsub.f32 2.0, %v3374
      %v3391 = vsub.f32 2.0, %v3375
      %v3392 = vsub.f32 2.0, %v3376
      %v3393 = vsub.f32 2.0, %v3377
      %v3394 = vsub.f32 2.0, %v3378
      %v3395 = vsub.f32 2.0, %v3379
      %v3396 = vmul.f32 %v3348, %v3380
      %v3397 = vmul.f32 %v3349, %v3381
      %v3398 = vmul.f32 %v3350, %v3382
      %v3399 = vmul.f32 %v3351, %v3383
      %v3400 = vmul.f32 %v3352, %v3384
      %v3401 = vmul.f32 %v3353, %v3385
      %v3402 = vmul.f32 %v3354, %v3386
      %v3403 = vmul.f32 %v3355, %v3387
      %v3404 = vmul.f32 %v3356, %v3388
      %v3405 = vmul.f32 %v3357, %v3389
      %v3406 = vmul.f32 %v3358, %v3390
      %v3407 = vmul.f32 %v3359, %v3391
      %v3408 = vmul.f32 %v3360, %v3392
      %v3409 = vmul.f32 %v3361, %v3393
      %v3410 = vmul.f32 %v3362, %v3394
      %v3411 = vmul.f32 %v3363, %v3395
      %v3412 = vmul.f32 %v3237, %v3396
      %v3413 = vmul.f32 %v3239, %v3396
      %v3414 = vmul.f32 %v3241, %v3397
      %v3415 = vmul.f32 %v3243, %v3397
      %v3416 = vmul.f32 %v3245, %v3398
      %v3417 = vmul.f32 %v3247, %v3398
      %v3418 = vmul.f32 %v3249, %v3399
      %v3419 = vmul.f32 %v3251, %v3399
      %v3420 = vmul.f32 %v3253, %v3400
      %v3421 = vmul.f32 %v3255, %v3400
      %v3422 = vmul.f32 %v3257, %v3401
      %v3423 = vmul.f32 %v3259, %v3401
      %v3424 = vmul.f32 %v3261, %v3402
      %v3425 = vmul.f32 %v3263, %v3402
      %v3426 = vmul.f32 %v3265, %v3403
      %v3427 = vmul.f32 %v3267, %v3403
      %v3428 = vmul.f32 %v3269, %v3404
      %v3429 = vmul.f32 %v3271, %v3404
      %v3430 = vmul.f32 %v3273, %v3405
      %v3431 = vmul.f32 %v3275, %v3405
      %v3432 = vmul.f32 %v3277, %v3406
      %v3433 = vmul.f32 %v3279, %v3406
      %v3434 = vmul.f32 %v3281, %v3407
      %v3435 = vmul.f32 %v3283, %v3407
      %v3436 = vmul.f32 %v3285, %v3408
      %v3437 = vmul.f32 %v3287, %v3408
      %v3438 = vmul.f32 %v3289, %v3409
      %v3439 = vmul.f32 %v3291, %v3409
      %v3440 = vmul.f32 %v3293, %v3410
      %v3441 = vmul.f32 %v3295, %v3410
      %v3442 = vmul.f32 %v3297, %v3411
      %v3443 = vmul.f32 %v3299, %v3411
      %v3444 = vld [vmem:[#allocation4] sm:$0xff]
      %v3445 = vld [vmem:[#allocation4 + $0x8] sm:$0xff]
      %v3446 = vld [vmem:[#allocation4 + $0x10] sm:$0xff]
      %v3447 = vld [vmem:[#allocation4 + $0x18] sm:$0xff]
      %v3448 = vld [vmem:[#allocation4 + $0x20] sm:$0xff]
      %v3449 = vld [vmem:[#allocation4 + $0x28] sm:$0xff]
      %v3450 = vld [vmem:[#allocation4 + $0x30] sm:$0xff]
      %v3451 = vld [vmem:[#allocation4 + $0x38] sm:$0xff]
      %v3452 = vld [vmem:[#allocation4 + $0x40] sm:$0xff]
      %v3453 = vld [vmem:[#allocation4 + $0x48] sm:$0xff]
      %v3454 = vld [vmem:[#allocation4 + $0x50] sm:$0xff]
      %v3455 = vld [vmem:[#allocation4 + $0x58] sm:$0xff]
      %v3456 = vld [vmem:[#allocation4 + $0x60] sm:$0xff]
      %v3457 = vld [vmem:[#allocation4 + $0x68] sm:$0xff]
      %v3458 = vld [vmem:[#allocation4 + $0x70] sm:$0xff]
      %v3459 = vld [vmem:[#allocation4 + $0x78] sm:$0xff]
      %v3460 = vld [vmem:[#allocation4 + $0x80] sm:$0xff]
      %v3461 = vld [vmem:[#allocation4 + $0x88] sm:$0xff]
      %v3462 = vld [vmem:[#allocation4 + $0x90] sm:$0xff]
      %v3463 = vld [vmem:[#allocation4 + $0x98] sm:$0xff]
      %v3464 = vld [vmem:[#allocation4 + $0xa0] sm:$0xff]
      %v3465 = vld [vmem:[#allocation4 + $0xa8] sm:$0xff]
      %v3466 = vld [vmem:[#allocation4 + $0xb0] sm:$0xff]
      %v3467 = vld [vmem:[#allocation4 + $0xb8] sm:$0xff]
      %v3468 = vld [vmem:[#allocation4 + $0xc0] sm:$0xff]
      %v3469 = vld [vmem:[#allocation4 + $0xc8] sm:$0xff]
      %v3470 = vld [vmem:[#allocation4 + $0xd0] sm:$0xff]
      %v3471 = vld [vmem:[#allocation4 + $0xd8] sm:$0xff]
      %v3472 = vld [vmem:[#allocation4 + $0xe0] sm:$0xff]
      %v3473 = vld [vmem:[#allocation4 + $0xe8] sm:$0xff]
      %v3474 = vld [vmem:[#allocation4 + $0xf0] sm:$0xff]
      %v3475 = vld [vmem:[#allocation4 + $0xf8] sm:$0xff]
      %s3476 = scalar_lea.vmem %s313, %s2941
      %v3477 = vld [vmem:[%s3476] sm:$0xff]
      %v3478 = vld [vmem:[%s3476 + $0x8] sm:$0xff]
      %v3479 = vld [vmem:[%s3476 + $0x10] sm:$0xff]
      %v3480 = vld [vmem:[%s3476 + $0x18] sm:$0xff]
      %v3481 = vld [vmem:[%s3476 + $0x20] sm:$0xff]
      %v3482 = vld [vmem:[%s3476 + $0x28] sm:$0xff]
      %v3483 = vld [vmem:[%s3476 + $0x30] sm:$0xff]
      %v3484 = vld [vmem:[%s3476 + $0x38] sm:$0xff]
      %v3485 = vld [vmem:[%s3476 + $0x40] sm:$0xff]
      %v3486 = vld [vmem:[%s3476 + $0x48] sm:$0xff]
      %v3487 = vld [vmem:[%s3476 + $0x50] sm:$0xff]
      %v3488 = vld [vmem:[%s3476 + $0x58] sm:$0xff]
      %v3489 = vld [vmem:[%s3476 + $0x60] sm:$0xff]
      %v3490 = vld [vmem:[%s3476 + $0x68] sm:$0xff]
      %v3491 = vld [vmem:[%s3476 + $0x70] sm:$0xff]
      %v3492 = vld [vmem:[%s3476 + $0x78] sm:$0xff]
      %3493 = vmatprep.subr.mxu0 0.0
      %3494 = vmatpush1.msra.mxu0 %v3444
      %3495 = vmatprep.subr.mxu0 0.0
      %3496 = vmatpush1.msra.mxu0 %v3445
      %3497 = vmatprep.subr.mxu0 0.0
      %3498 = vmatpush1.msra.mxu0 %v3446
      %3499 = vmatprep.subr.mxu0 0.0
      %3500 = vmatpush1.msra.mxu0 %v3447
      %3501 = vmatprep.subr.mxu0 0.0
      %3502 = vmatpush1.msra.mxu0 %v3448
      %3503 = vmatprep.subr.mxu0 0.0
      %3504 = vmatpush1.msra.mxu0 %v3449
      %3505 = vmatprep.subr.mxu0 0.0
      %3506 = vmatpush1.msra.mxu0 %v3450
      %3507 = vmatprep.subr.mxu0 0.0
      %3508 = vmatpush1.msra.mxu0 %v3451
      %3509 = vmatprep.subr.mxu0 0.0
      %3510 = vmatpush1.msra.mxu0 %v3452
      %3511 = vmatprep.subr.mxu0 0.0
      %3512 = vmatpush1.msra.mxu0 %v3453
      %3513 = vmatprep.subr.mxu0 0.0
      %3514 = vmatpush1.msra.mxu0 %v3454
      %3515 = vmatprep.subr.mxu0 0.0
      %3516 = vmatpush1.msra.mxu0 %v3455
      %3517 = vmatprep.subr.mxu0 0.0
      %3518 = vmatpush1.msra.mxu0 %v3456
      %3519 = vmatprep.subr.mxu0 0.0
      %3520 = vmatpush1.msra.mxu0 %v3457
      %3521 = vmatprep.subr.mxu0 0.0
      %3522 = vmatpush1.msra.mxu0 %v3458
      %3523 = vmatprep.subr.mxu0 0.0
      %3524 = vmatpush1.msra.mxu0 %v3459
      %3525 = vmatprep.subr.mxu0 0.0
      %3526 = vmatpush1.msra.mxu0 %v3460
      %3527 = vmatprep.subr.mxu0 0.0
      %3528 = vmatpush1.msra.mxu0 %v3461
      %3529 = vmatprep.subr.mxu0 0.0
      %3530 = vmatpush1.msra.mxu0 %v3462
      %3531 = vmatprep.subr.mxu0 0.0
      %3532 = vmatpush1.msra.mxu0 %v3463
      %3533 = vmatprep.subr.mxu0 0.0
      %3534 = vmatpush1.msra.mxu0 %v3464
      %3535 = vmatprep.subr.mxu0 0.0
      %3536 = vmatpush1.msra.mxu0 %v3465
      %3537 = vmatprep.subr.mxu0 0.0
      %3538 = vmatpush1.msra.mxu0 %v3466
      %3539 = vmatprep.subr.mxu0 0.0
      %3540 = vmatpush1.msra.mxu0 %v3467
      %3541 = vmatprep.subr.mxu0 0.0
      %3542 = vmatpush1.msra.mxu0 %v3468
      %3543 = vmatprep.subr.mxu0 0.0
      %3544 = vmatpush1.msra.mxu0 %v3469
      %3545 = vmatprep.subr.mxu0 0.0
      %3546 = vmatpush1.msra.mxu0 %v3470
      %3547 = vmatprep.subr.mxu0 0.0
      %3548 = vmatpush1.msra.mxu0 %v3471
      %3549 = vmatprep.subr.mxu0 0.0
      %3550 = vmatpush1.msra.mxu0 %v3472
      %3551 = vmatprep.subr.mxu0 0.0
      %3552 = vmatpush1.msra.mxu0 %v3473
      %3553 = vmatprep.subr.mxu0 0.0
      %3554 = vmatpush1.msra.mxu0 %v3474
      %3555 = vmatprep.subr.mxu0 0.0
      %3556 = vmatpush1.msra.mxu0 %v3475
      %3557 = vmatprep.mubr.f32.mxu0 %v3413
      %3558 = vmatmul.mubr.f32.gmra.mrb[0].mxu0 %v3412
      %v3559 = vpop.f32.mrb[0].mxu0
      %v3560 = vadd.f32 %v3477, %v3559
      %v3561 = vpop.f32.mrb[0].mxu0
      %3562 = vmatprep.mubr.f32.mxu0 %v3415
      %3563 = vmatmul.mubr.f32.gmra.mrb[0].mxu0 %v3414
      %v3564 = vpop.f32.mrb[0].mxu0
      %v3565 = vadd.f32 %v3478, %v3564
      %v3566 = vpop.f32.mrb[0].mxu0
      %3567 = vmatprep.mubr.f32.mxu0 %v3417
      %3568 = vmatmul.mubr.f32.gmra.mrb[0].mxu0 %v3416
      %v3569 = vpop.f32.mrb[0].mxu0
      %v3570 = vadd.f32 %v3479, %v3569
      %v3571 = vpop.f32.mrb[0].mxu0
      %3572 = vmatprep.mubr.f32.mxu0 %v3419
      %3573 = vmatmul.mubr.f32.gmra.mrb[0].mxu0 %v3418
      %v3574 = vpop.f32.mrb[0].mxu0
      %v3575 = vadd.f32 %v3480, %v3574
      %v3576 = vpop.f32.mrb[0].mxu0
      %3577 = vmatprep.mubr.f32.mxu0 %v3421
      %3578 = vmatmul.mubr.f32.gmra.mrb[0].mxu0 %v3420
      %v3579 = vpop.f32.mrb[0].mxu0
      %v3580 = vadd.f32 %v3481, %v3579
      %v3581 = vpop.f32.mrb[0].mxu0
      %3582 = vmatprep.mubr.f32.mxu0 %v3423
      %3583 = vmatmul.mubr.f32.gmra.mrb[0].mxu0 %v3422
      %v3584 = vpop.f32.mrb[0].mxu0
      %v3585 = vadd.f32 %v3482, %v3584
      %v3586 = vpop.f32.mrb[0].mxu0
      %3587 = vmatprep.mubr.f32.mxu0 %v3425
      %3588 = vmatmul.mubr.f32.gmra.mrb[0].mxu0 %v3424
      %v3589 = vpop.f32.mrb[0].mxu0
      %v3590 = vadd.f32 %v3483, %v3589
      %v3591 = vpop.f32.mrb[0].mxu0
      %3592 = vmatprep.mubr.f32.mxu0 %v3427
      %3593 = vmatmul.mubr.f32.gmra.mrb[0].mxu0 %v3426
      %v3594 = vpop.f32.mrb[0].mxu0
      %v3595 = vadd.f32 %v3484, %v3594
      %v3596 = vpop.f32.mrb[0].mxu0
      %3597 = vmatprep.mubr.f32.mxu0 %v3429
      %3598 = vmatmul.mubr.f32.gmra.mrb[0].mxu0 %v3428
      %v3599 = vpop.f32.mrb[0].mxu0
      %v3600 = vadd.f32 %v3485, %v3599
      %v3601 = vpop.f32.mrb[0].mxu0
      %3602 = vmatprep.mubr.f32.mxu0 %v3431
      %3603 = vmatmul.mubr.f32.gmra.mrb[0].mxu0 %v3430
      %v3604 = vpop.f32.mrb[0].mxu0
      %v3605 = vadd.f32 %v3486, %v3604
      %v3606 = vpop.f32.mrb[0].mxu0
      %3607 = vmatprep.mubr.f32.mxu0 %v3433
      %3608 = vmatmul.mubr.f32.gmra.mrb[0].mxu0 %v3432
      %v3609 = vpop.f32.mrb[0].mxu0
      %v3610 = vadd.f32 %v3487, %v3609
      %v3611 = vpop.f32.mrb[0].mxu0
      %3612 = vmatprep.mubr.f32.mxu0 %v3435
      %3613 = vmatmul.mubr.f32.gmra.mrb[0].mxu0 %v3434
      %v3614 = vpop.f32.mrb[0].mxu0
      %v3615 = vadd.f32 %v3488, %v3614
      %v3616 = vpop.f32.mrb[0].mxu0
      %3617 = vmatprep.mubr.f32.mxu0 %v3437
      %3618 = vmatmul.mubr.f32.gmra.mrb[0].mxu0 %v3436
      %v3619 = vpop.f32.mrb[0].mxu0
      %v3620 = vadd.f32 %v3489, %v3619
      %v3621 = vpop.f32.mrb[0].mxu0
      %3622 = vmatprep.mubr.f32.mxu0 %v3439
      %3623 = vmatmul.mubr.f32.gmra.mrb[0].mxu0 %v3438
      %v3624 = vpop.f32.mrb[0].mxu0
      %v3625 = vadd.f32 %v3490, %v3624
      %v3626 = vpop.f32.mrb[0].mxu0
      %3627 = vmatprep.mubr.f32.mxu0 %v3441
      %3628 = vmatmul.mubr.f32.gmra.mrb[0].mxu0 %v3440
      %v3629 = vpop.f32.mrb[0].mxu0
      %v3630 = vadd.f32 %v3491, %v3629
      %v3631 = vpop.f32.mrb[0].mxu0
      %3632 = vmatprep.mubr.f32.mxu0 %v3443
      %3633 = vmatmul.mubr.f32.gmra.mrb[0].mxu0 %v3442
      %v3634 = vpop.f32.mrb[0].mxu0
      %v3635 = vadd.f32 %v3492, %v3634
      %v3636 = vpop.f32.mrb[0].mxu0
      %3637 = vdwg.mxu0
      %s3638 = scalar_lea.vmem [#allocation5], %s2941
      %vm3639 = vcmask 130048
      %3640 = vst.msk [vmem:[%s3638] sm:$0xff] %vm3639, %v3560
      %3641 = vst.msk [vmem:[%s3638 + $0x8] sm:$0xff] %vm3639, %v3565
      %3642 = vst.msk [vmem:[%s3638 + $0x10] sm:$0xff] %vm3639, %v3570
      %3643 = vst.msk [vmem:[%s3638 + $0x18] sm:$0xff] %vm3639, %v3575
      %3644 = vst.msk [vmem:[%s3638 + $0x20] sm:$0xff] %vm3639, %v3580
      %3645 = vst.msk [vmem:[%s3638 + $0x28] sm:$0xff] %vm3639, %v3585
      %3646 = vst.msk [vmem:[%s3638 + $0x30] sm:$0xff] %vm3639, %v3590
      %3647 = vst.msk [vmem:[%s3638 + $0x38] sm:$0xff] %vm3639, %v3595
      %3648 = vst.msk [vmem:[%s3638 + $0x40] sm:$0xff] %vm3639, %v3600
      %3649 = vst.msk [vmem:[%s3638 + $0x48] sm:$0xff] %vm3639, %v3605
      %3650 = vst.msk [vmem:[%s3638 + $0x50] sm:$0xff] %vm3639, %v3610
      %3651 = vst.msk [vmem:[%s3638 + $0x58] sm:$0xff] %vm3639, %v3615
      %3652 = vst.msk [vmem:[%s3638 + $0x60] sm:$0xff] %vm3639, %v3620
      %3653 = vst.msk [vmem:[%s3638 + $0x68] sm:$0xff] %vm3639, %v3625
      %3654 = vst.msk [vmem:[%s3638 + $0x70] sm:$0xff] %vm3639, %v3630
      %3655 = vst.msk [vmem:[%s3638 + $0x78] sm:$0xff] %vm3639, %v3635
      %v3656 = vld [vmem:[#allocation6] sm:$0xff]
      %v3657 = vld [vmem:[#allocation6 + $0x8] sm:$0xff]
      %3658 = vxpose.xlu0.b32.start [1/16] %v3560, 128
      %3659 = vxpose.xlu0.b32.cont [2/16] %v3565, 128
      %3660 = vxpose.xlu0.b32.cont [3/16] %v3570, 128
      %3661 = vxpose.xlu0.b32.cont [4/16] %v3575, 128
      %3662 = vxpose.xlu0.b32.cont [5/16] %v3580, 128
      %3663 = vxpose.xlu0.b32.cont [6/16] %v3585, 128
      %3664 = vxpose.xlu0.b32.cont [7/16] %v3590, 128
      %3665 = vxpose.xlu0.b32.cont [8/16] %v3595, 128
      %3666 = vxpose.xlu0.b32.cont [9/16] %v3600, 128
      %3667 = vxpose.xlu0.b32.cont [10/16] %v3605, 128
      %3668 = vxpose.xlu0.b32.cont [11/16] %v3610, 128
      %3669 = vxpose.xlu0.b32.cont [12/16] %v3615, 128
      %3670 = vxpose.xlu0.b32.cont [13/16] %v3620, 128
      %3671 = vxpose.xlu0.b32.cont [14/16] %v3625, 128
      %3672 = vxpose.xlu0.b32.cont [15/16] %v3630, 128
      %3673 = vxpose.xlu0.b32.end [16/16] %v3635, 128
      %v3674 = vpop.trf.xlu0
      %v3675 = vpop.trf.xlu0
      %v3676 = vpop.trf.xlu0
      %v3677 = vpop.trf.xlu0
      %v3678 = vpop.trf.xlu0
      %v3679 = vpop.trf.xlu0
      %v3680 = vpop.trf.xlu0
      %v3681 = vpop.trf.xlu0
      %v3682 = vpop.trf.xlu0
      %v3683 = vpop.trf.xlu0
      %v3684 = vpop.trf.xlu0
      %v3685 = vpop.trf.xlu0
      %v3686 = vpop.trf.xlu0
      %v3687 = vpop.trf.xlu0
      %v3688 = vpop.trf.xlu0
      %v3689 = vpop.trf.xlu0
      %3690 = vmatprep.subr.mxu0 0.0
      %3691 = vmatpush1.msra.mxu0 %v3560
      %3692 = vmatprep.subr.mxu0 0.0
      %3693 = vmatpush1.msra.mxu0 %v3565
      %3694 = vmatprep.subr.mxu0 0.0
      %3695 = vmatpush1.msra.mxu0 %v3570
      %3696 = vmatprep.subr.mxu0 0.0
      %3697 = vmatpush1.msra.mxu0 %v3575
      %3698 = vmatprep.subr.mxu0 0.0
      %3699 = vmatpush1.msra.mxu0 %v3580
      %3700 = vmatprep.subr.mxu0 0.0
      %3701 = vmatpush1.msra.mxu0 %v3585
      %3702 = vmatprep.subr.mxu0 0.0
      %3703 = vmatpush1.msra.mxu0 %v3590
      %3704 = vmatprep.subr.mxu0 0.0
      %3705 = vmatpush1.msra.mxu0 %v3595
      %3706 = vmatprep.subr.mxu0 0.0
      %3707 = vmatpush1.msra.mxu0 %v3600
      %3708 = vmatprep.subr.mxu0 0.0
      %3709 = vmatpush1.msra.mxu0 %v3605
      %3710 = vmatprep.subr.mxu0 0.0
      %3711 = vmatpush1.msra.mxu0 %v3610
      %3712 = vmatprep.subr.mxu0 0.0
      %3713 = vmatpush1.msra.mxu0 %v3615
      %3714 = vmatprep.subr.mxu0 0.0
      %3715 = vmatpush1.msra.mxu0 %v3620
      %3716 = vmatprep.subr.mxu0 0.0
      %3717 = vmatpush1.msra.mxu0 %v3625
      %3718 = vmatprep.subr.mxu0 0.0
      %3719 = vmatpush1.msra.mxu0 %v3630
      %3720 = vmatprep.subr.mxu0 0.0
      %3721 = vmatpush1.msra.mxu0 %v3635
      %3722 = vmatprep.subr.mxu0 0.0
      %3723 = vmatpush1.msra.mxu0 0.0
      %3724 = vmatprep.subr.mxu0 0.0
      %3725 = vmatpush1.msra.mxu0 0.0
      %3726 = vmatprep.subr.mxu0 0.0
      %3727 = vmatpush1.msra.mxu0 0.0
      %3728 = vmatprep.subr.mxu0 0.0
      %3729 = vmatpush1.msra.mxu0 0.0
      %3730 = vmatprep.subr.mxu0 0.0
      %3731 = vmatpush1.msra.mxu0 0.0
      %3732 = vmatprep.subr.mxu0 0.0
      %3733 = vmatpush1.msra.mxu0 0.0
      %3734 = vmatprep.subr.mxu0 0.0
      %3735 = vmatpush1.msra.mxu0 0.0
      %3736 = vmatprep.subr.mxu0 0.0
      %3737 = vmatpush1.msra.mxu0 0.0
      %3738 = vmatprep.subr.mxu0 0.0
      %3739 = vmatpush1.msra.mxu0 0.0
      %3740 = vmatprep.subr.mxu0 0.0
      %3741 = vmatpush1.msra.mxu0 0.0
      %3742 = vmatprep.subr.mxu0 0.0
      %3743 = vmatpush1.msra.mxu0 0.0
      %3744 = vmatprep.subr.mxu0 0.0
      %3745 = vmatpush1.msra.mxu0 0.0
      %3746 = vmatprep.subr.mxu0 0.0
      %3747 = vmatpush1.msra.mxu0 0.0
      %3748 = vmatprep.subr.mxu0 0.0
      %3749 = vmatpush1.msra.mxu0 0.0
      %3750 = vmatprep.subr.mxu0 0.0
      %3751 = vmatpush1.msra.mxu0 0.0
      %3752 = vmatprep.subr.mxu0 0.0
      %3753 = vmatpush1.msra.mxu0 0.0
      %3754 = vmatprep.mubr.f32.mxu0 0.0
      %3755 = vmatmul.mubr.f32.gmra.mrb[0].mxu0 %v3674
      %v3756 = vpop.f32.mrb[0].mxu0
      %v3757 = vadd.f32 0.0, %v3756
      %v3758 = vpop.f32.mrb[0].mxu0
      %3759 = vmatprep.mubr.f32.mxu0 0.0
      %3760 = vmatmul.mubr.f32.gmra.mrb[0].mxu0 %v3675
      %v3761 = vpop.f32.mrb[0].mxu0
      %v3762 = vadd.f32 0.0, %v3761
      %v3763 = vpop.f32.mrb[0].mxu0
      %3764 = vdwg.mxu0
      %v3765 = vadd.f32 %v3656, %v3757
      %v3766 = vadd.f32 %v3657, %v3762
      %3767 = vst.msk [vmem:[#allocation6] sm:$0xff] %vm3639, %v3765
      %3768 = vst.msk [vmem:[#allocation6 + $0x8] sm:$0xff] %vm3639, %v3766
      %p3769 = scmp.eq.s32.totalorder %s25, 1
      // Predicated region
      $region57: #{affinity_attention2.1} parent=51 // pred_check
        %p3770 = pneg %p3769
      $region58: #{affinity_attention2.1} parent=51 // pred_check_branch
        %3772 = sbr.rel (%p3770) target = $region60
      $region59: #{affinity_attention2.1} parent=51 // pred_region
        %v3773 = vld [vmem:[#allocation5] sm:$0xff]
        %v3774 = vld [vmem:[#allocation5 + $0x8] sm:$0xff]
        %v3775 = vld [vmem:[#allocation5 + $0x10] sm:$0xff]
        %v3776 = vld [vmem:[#allocation5 + $0x18] sm:$0xff]
        %v3777 = vld [vmem:[#allocation5 + $0x20] sm:$0xff]
        %v3778 = vld [vmem:[#allocation5 + $0x28] sm:$0xff]
        %v3779 = vld [vmem:[#allocation5 + $0x30] sm:$0xff]
        %v3780 = vld [vmem:[#allocation5 + $0x38] sm:$0xff]
        %v3781 = vld [vmem:[#allocation5 + $0x40] sm:$0xff]
        %v3782 = vld [vmem:[#allocation5 + $0x48] sm:$0xff]
        %v3783 = vld [vmem:[#allocation5 + $0x50] sm:$0xff]
        %v3784 = vld [vmem:[#allocation5 + $0x58] sm:$0xff]
        %v3785 = vld [vmem:[#allocation5 + $0x60] sm:$0xff]
        %v3786 = vld [vmem:[#allocation5 + $0x68] sm:$0xff]
        %v3787 = vld [vmem:[#allocation5 + $0x70] sm:$0xff]
        %v3788 = vld [vmem:[#allocation5 + $0x78] sm:$0xff]
        %v3789 = vld [vmem:[#allocation5 + $0x80] sm:$0xff]
        %v3790 = vld [vmem:[#allocation5 + $0x88] sm:$0xff]
        %v3791 = vld [vmem:[#allocation5 + $0x90] sm:$0xff]
        %v3792 = vld [vmem:[#allocation5 + $0x98] sm:$0xff]
        %v3793 = vld [vmem:[#allocation5 + $0xa0] sm:$0xff]
        %v3794 = vld [vmem:[#allocation5 + $0xa8] sm:$0xff]
        %v3795 = vld [vmem:[#allocation5 + $0xb0] sm:$0xff]
        %v3796 = vld [vmem:[#allocation5 + $0xb8] sm:$0xff]
        %v3797 = vld [vmem:[#allocation5 + $0xc0] sm:$0xff]
        %v3798 = vld [vmem:[#allocation5 + $0xc8] sm:$0xff]
        %v3799 = vld [vmem:[#allocation5 + $0xd0] sm:$0xff]
        %v3800 = vld [vmem:[#allocation5 + $0xd8] sm:$0xff]
        %v3801 = vld [vmem:[#allocation5 + $0xe0] sm:$0xff]
        %v3802 = vld [vmem:[#allocation5 + $0xe8] sm:$0xff]
        %v3803 = vld [vmem:[#allocation5 + $0xf0] sm:$0xff]
        %v3804 = vld [vmem:[#allocation5 + $0xf8] sm:$0xff]
        %v3805 = vld [vmem:[#allocation6] sm:$0xff]
        %v3806 = vld [vmem:[#allocation6 + $0x8] sm:$0xff]
        %v3807 = vsel %vm3639, %v3805, -inf
        %3808 = vmax.xlane.f32.xlu0 %v3807
        %v3809 = vpop.xlane.xlu0 %3808
        %v3810 = vsel %vm3639, %v3806, -inf
        %3811 = vmax.xlane.f32.xlu0 %v3810
        %v3812 = vpop.xlane.xlu0 %3811
        %v3813 = vsub.f32 %v3809, %v3805
        %v3814 = vsub.f32 %v3812, %v3806
        %v3815 = vsel %vm3639, %v3813, -inf
        %3816 = vmax.xlane.f32.xlu0 %v3815
        %v3817 = vpop.xlane.xlu0 %3816
        %v3818 = vsel %vm3639, %v3814, -inf
        %3819 = vmax.xlane.f32.xlu0 %v3818
        %v3820 = vpop.xlane.xlu0 %3819
        %v3821 = vsub.f32 %v3813, %v3817
        %v3822 = vsub.f32 %v3814, %v3820
        %v3823 = vmul.f32 %v3821, 1.442695
        %v3824 = vpow.pop %v3823
        %v3825 = vmul.f32 %v3822, 1.442695
        %v3826 = vpow.pop %v3825
        %v3827 = vsel %vm3639, %v3824, 0.0
        %3828 = vadd.xlane.f32.xlu0 %v3827
        %v3829 = vpop.xlane.xlu0 %3828
        %v3830 = vsel %vm3639, %v3826, 0.0
        %3831 = vadd.xlane.f32.xlu0 %v3830
        %v3832 = vpop.xlane.xlu0 %3831
        %v3833 = vrcp.pop %v3829
        %v3834 = vmul.f32 %v3824, %v3833
        %v3835 = vrcp.pop %v3832
        %v3836 = vmul.f32 %v3826, %v3835
        %v3838 = vsel %vm3639, %v3773, 0
        %v3841 = vsel %vm3639, %v3774, 0
        %v3844 = vsel %vm3639, %v3775, 0
        %v3847 = vsel %vm3639, %v3776, 0
        %v3850 = vsel %vm3639, %v3777, 0
        %v3853 = vsel %vm3639, %v3778, 0
        %v3856 = vsel %vm3639, %v3779, 0
        %v3859 = vsel %vm3639, %v3780, 0
        %v3862 = vsel %vm3639, %v3781, 0
        %v3865 = vsel %vm3639, %v3782, 0
        %v3868 = vsel %vm3639, %v3783, 0
        %v3871 = vsel %vm3639, %v3784, 0
        %v3874 = vsel %vm3639, %v3785, 0
        %v3877 = vsel %vm3639, %v3786, 0
        %v3880 = vsel %vm3639, %v3787, 0
        %v3883 = vsel %vm3639, %v3788, 0
        %v3886 = vsel %vm3639, %v3789, 0
        %v3889 = vsel %vm3639, %v3790, 0
        %v3892 = vsel %vm3639, %v3791, 0
        %v3895 = vsel %vm3639, %v3792, 0
        %v3898 = vsel %vm3639, %v3793, 0
        %v3901 = vsel %vm3639, %v3794, 0
        %v3904 = vsel %vm3639, %v3795, 0
        %v3907 = vsel %vm3639, %v3796, 0
        %v3910 = vsel %vm3639, %v3797, 0
        %v3913 = vsel %vm3639, %v3798, 0
        %v3916 = vsel %vm3639, %v3799, 0
        %v3919 = vsel %vm3639, %v3800, 0
        %v3922 = vsel %vm3639, %v3801, 0
        %v3925 = vsel %vm3639, %v3802, 0
        %v3928 = vsel %vm3639, %v3803, 0
        %v3931 = vsel %vm3639, %v3804, 0
        %v3934 = vsel %vm3639, %v3834, 0
        %v3937 = vsel %vm3639, %v3836, 0
        %3939 = vmatprep.subr.mxu0 0.0
        %3940 = vmatpush1.xpose.msra.mxu0 %v3934
        %3941 = vmatprep.subr.mxu0 0.0
        %3942 = vmatpush1.xpose.msra.mxu0 %v3937
        %3943 = vmatprep.subr.mxu0 0.0
        %3944 = vmatpush1.xpose.msra.mxu0 0.0
        %3945 = vmatprep.subr.mxu0 0.0
        %3946 = vmatpush1.xpose.msra.mxu0 0.0
        %3947 = vmatprep.subr.mxu0 0.0
        %3948 = vmatpush1.xpose.msra.mxu0 0.0
        %3949 = vmatprep.subr.mxu0 0.0
        %3950 = vmatpush1.xpose.msra.mxu0 0.0
        %3951 = vmatprep.subr.mxu0 0.0
        %3952 = vmatpush1.xpose.msra.mxu0 0.0
        %3953 = vmatprep.subr.mxu0 0.0
        %3954 = vmatpush1.xpose.msra.mxu0 0.0
        %3955 = vmatprep.subr.mxu0 0.0
        %3956 = vmatpush1.xpose.msra.mxu0 0.0
        %3957 = vmatprep.subr.mxu0 0.0
        %3958 = vmatpush1.xpose.msra.mxu0 0.0
        %3959 = vmatprep.subr.mxu0 0.0
        %3960 = vmatpush1.xpose.msra.mxu0 0.0
        %3961 = vmatprep.subr.mxu0 0.0
        %3962 = vmatpush1.xpose.msra.mxu0 0.0
        %3963 = vmatprep.subr.mxu0 0.0
        %3964 = vmatpush1.xpose.msra.mxu0 0.0
        %3965 = vmatprep.subr.mxu0 0.0
        %3966 = vmatpush1.xpose.msra.mxu0 0.0
        %3967 = vmatprep.subr.mxu0 0.0
        %3968 = vmatpush1.xpose.msra.mxu0 0.0
        %3969 = vmatprep.subr.mxu0 0.0
        %3970 = vmatpush1.xpose.msra.mxu0 0.0
        %3971 = vmatprep.subr.mxu0 0.0
        %3972 = vmatpush1.xpose.msra.mxu0 0.0
        %3973 = vmatprep.subr.mxu0 0.0
        %3974 = vmatpush1.xpose.msra.mxu0 0.0
        %3975 = vmatprep.subr.mxu0 0.0
        %3976 = vmatpush1.xpose.msra.mxu0 0.0
        %3977 = vmatprep.subr.mxu0 0.0
        %3978 = vmatpush1.xpose.msra.mxu0 0.0
        %3979 = vmatprep.subr.mxu0 0.0
        %3980 = vmatpush1.xpose.msra.mxu0 0.0
        %3981 = vmatprep.subr.mxu0 0.0
        %3982 = vmatpush1.xpose.msra.mxu0 0.0
        %3983 = vmatprep.subr.mxu0 0.0
        %3984 = vmatpush1.xpose.msra.mxu0 0.0
        %3985 = vmatprep.subr.mxu0 0.0
        %3986 = vmatpush1.xpose.msra.mxu0 0.0
        %3987 = vmatprep.subr.mxu0 0.0
        %3988 = vmatpush1.xpose.msra.mxu0 0.0
        %3989 = vmatprep.subr.mxu0 0.0
        %3990 = vmatpush1.xpose.msra.mxu0 0.0
        %3991 = vmatprep.subr.mxu0 0.0
        %3992 = vmatpush1.xpose.msra.mxu0 0.0
        %3993 = vmatprep.subr.mxu0 0.0
        %3994 = vmatpush1.xpose.msra.mxu0 0.0
        %3995 = vmatprep.subr.mxu0 0.0
        %3996 = vmatpush1.xpose.msra.mxu0 0.0
        %3997 = vmatprep.subr.mxu0 0.0
        %3998 = vmatpush1.xpose.msra.mxu0 0.0
        %3999 = vmatprep.subr.mxu0 0.0
        %4000 = vmatpush1.xpose.msra.mxu0 0.0
        %4001 = vmatprep.subr.mxu0 0.0
        %4002 = vmatpush1.xpose.msra.mxu0 0.0
        %4003 = vmatprep.mubr.f32.mxu0 0.0
        %4004 = vmatmul.mubr.f32.gmra.mrb[0].mxu0 %v3838
        %v4005 = vpop.f32.mrb[0].mxu0
        %v4006 = vadd.f32 0.0, %v4005
        %v4007 = vpop.f32.mrb[0].mxu0
        %4008 = vmatprep.mubr.f32.mxu0 0.0
        %4009 = vmatmul.mubr.f32.gmra.mrb[0].mxu0 %v3841
        %v4010 = vpop.f32.mrb[0].mxu0
        %v4011 = vadd.f32 0.0, %v4010
        %v4012 = vpop.f32.mrb[0].mxu0
        %4013 = vmatprep.mubr.f32.mxu0 0.0
        %4014 = vmatmul.mubr.f32.gmra.mrb[0].mxu0 %v3844
        %v4015 = vpop.f32.mrb[0].mxu0
        %v4016 = vadd.f32 0.0, %v4015
        %v4017 = vpop.f32.mrb[0].mxu0
        %4018 = vmatprep.mubr.f32.mxu0 0.0
        %4019 = vmatmul.mubr.f32.gmra.mrb[0].mxu0 %v3847
        %v4020 = vpop.f32.mrb[0].mxu0
        %v4021 = vadd.f32 0.0, %v4020
        %v4022 = vpop.f32.mrb[0].mxu0
        %4023 = vmatprep.mubr.f32.mxu0 0.0
        %4024 = vmatmul.mubr.f32.gmra.mrb[0].mxu0 %v3850
        %v4025 = vpop.f32.mrb[0].mxu0
        %v4026 = vadd.f32 0.0, %v4025
        %v4027 = vpop.f32.mrb[0].mxu0
        %4028 = vmatprep.mubr.f32.mxu0 0.0
        %4029 = vmatmul.mubr.f32.gmra.mrb[0].mxu0 %v3853
        %v4030 = vpop.f32.mrb[0].mxu0
        %v4031 = vadd.f32 0.0, %v4030
        %v4032 = vpop.f32.mrb[0].mxu0
        %4033 = vmatprep.mubr.f32.mxu0 0.0
        %4034 = vmatmul.mubr.f32.gmra.mrb[0].mxu0 %v3856
        %v4035 = vpop.f32.mrb[0].mxu0
        %v4036 = vadd.f32 0.0, %v4035
        %v4037 = vpop.f32.mrb[0].mxu0
        %4038 = vmatprep.mubr.f32.mxu0 0.0
        %4039 = vmatmul.mubr.f32.gmra.mrb[0].mxu0 %v3859
        %v4040 = vpop.f32.mrb[0].mxu0
        %v4041 = vadd.f32 0.0, %v4040
        %v4042 = vpop.f32.mrb[0].mxu0
        %4043 = vmatprep.mubr.f32.mxu0 0.0
        %4044 = vmatmul.mubr.f32.gmra.mrb[0].mxu0 %v3862
        %v4045 = vpop.f32.mrb[0].mxu0
        %v4046 = vadd.f32 0.0, %v4045
        %v4047 = vpop.f32.mrb[0].mxu0
        %4048 = vmatprep.mubr.f32.mxu0 0.0
        %4049 = vmatmul.mubr.f32.gmra.mrb[0].mxu0 %v3865
        %v4050 = vpop.f32.mrb[0].mxu0
        %v4051 = vadd.f32 0.0, %v4050
        %v4052 = vpop.f32.mrb[0].mxu0
        %4053 = vmatprep.mubr.f32.mxu0 0.0
        %4054 = vmatmul.mubr.f32.gmra.mrb[0].mxu0 %v3868
        %v4055 = vpop.f32.mrb[0].mxu0
        %v4056 = vadd.f32 0.0, %v4055
        %v4057 = vpop.f32.mrb[0].mxu0
        %4058 = vmatprep.mubr.f32.mxu0 0.0
        %4059 = vmatmul.mubr.f32.gmra.mrb[0].mxu0 %v3871
        %v4060 = vpop.f32.mrb[0].mxu0
        %v4061 = vadd.f32 0.0, %v4060
        %v4062 = vpop.f32.mrb[0].mxu0
        %4063 = vmatprep.mubr.f32.mxu0 0.0
        %4064 = vmatmul.mubr.f32.gmra.mrb[0].mxu0 %v3874
        %v4065 = vpop.f32.mrb[0].mxu0
        %v4066 = vadd.f32 0.0, %v4065
        %v4067 = vpop.f32.mrb[0].mxu0
        %4068 = vmatprep.mubr.f32.mxu0 0.0
        %4069 = vmatmul.mubr.f32.gmra.mrb[0].mxu0 %v3877
        %v4070 = vpop.f32.mrb[0].mxu0
        %v4071 = vadd.f32 0.0, %v4070
        %v4072 = vpop.f32.mrb[0].mxu0
        %4073 = vmatprep.mubr.f32.mxu0 0.0
        %4074 = vmatmul.mubr.f32.gmra.mrb[0].mxu0 %v3880
        %v4075 = vpop.f32.mrb[0].mxu0
        %v4076 = vadd.f32 0.0, %v4075
        %v4077 = vpop.f32.mrb[0].mxu0
        %4078 = vmatprep.mubr.f32.mxu0 0.0
        %4079 = vmatmul.mubr.f32.gmra.mrb[0].mxu0 %v3883
        %v4080 = vpop.f32.mrb[0].mxu0
        %v4081 = vadd.f32 0.0, %v4080
        %v4082 = vpop.f32.mrb[0].mxu0
        %4083 = vmatprep.mubr.f32.mxu0 0.0
        %4084 = vmatmul.mubr.f32.gmra.mrb[0].mxu0 %v3886
        %v4085 = vpop.f32.mrb[0].mxu0
        %v4086 = vadd.f32 0.0, %v4085
        %v4087 = vpop.f32.mrb[0].mxu0
        %4088 = vmatprep.mubr.f32.mxu0 0.0
        %4089 = vmatmul.mubr.f32.gmra.mrb[0].mxu0 %v3889
        %v4090 = vpop.f32.mrb[0].mxu0
        %v4091 = vadd.f32 0.0, %v4090
        %v4092 = vpop.f32.mrb[0].mxu0
        %4093 = vmatprep.mubr.f32.mxu0 0.0
        %4094 = vmatmul.mubr.f32.gmra.mrb[0].mxu0 %v3892
        %v4095 = vpop.f32.mrb[0].mxu0
        %v4096 = vadd.f32 0.0, %v4095
        %v4097 = vpop.f32.mrb[0].mxu0
        %4098 = vmatprep.mubr.f32.mxu0 0.0
        %4099 = vmatmul.mubr.f32.gmra.mrb[0].mxu0 %v3895
        %v4100 = vpop.f32.mrb[0].mxu0
        %v4101 = vadd.f32 0.0, %v4100
        %v4102 = vpop.f32.mrb[0].mxu0
        %4103 = vmatprep.mubr.f32.mxu0 0.0
        %4104 = vmatmul.mubr.f32.gmra.mrb[0].mxu0 %v3898
        %v4105 = vpop.f32.mrb[0].mxu0
        %v4106 = vadd.f32 0.0, %v4105
        %v4107 = vpop.f32.mrb[0].mxu0
        %4108 = vmatprep.mubr.f32.mxu0 0.0
        %4109 = vmatmul.mubr.f32.gmra.mrb[0].mxu0 %v3901
        %v4110 = vpop.f32.mrb[0].mxu0
        %v4111 = vadd.f32 0.0, %v4110
        %v4112 = vpop.f32.mrb[0].mxu0
        %4113 = vmatprep.mubr.f32.mxu0 0.0
        %4114 = vmatmul.mubr.f32.gmra.mrb[0].mxu0 %v3904
        %v4115 = vpop.f32.mrb[0].mxu0
        %v4116 = vadd.f32 0.0, %v4115
        %v4117 = vpop.f32.mrb[0].mxu0
        %4118 = vmatprep.mubr.f32.mxu0 0.0
        %4119 = vmatmul.mubr.f32.gmra.mrb[0].mxu0 %v3907
        %v4120 = vpop.f32.mrb[0].mxu0
        %v4121 = vadd.f32 0.0, %v4120
        %v4122 = vpop.f32.mrb[0].mxu0
        %4123 = vmatprep.mubr.f32.mxu0 0.0
        %4124 = vmatmul.mubr.f32.gmra.mrb[0].mxu0 %v3910
        %v4125 = vpop.f32.mrb[0].mxu0
        %v4126 = vadd.f32 0.0, %v4125
        %v4127 = vpop.f32.mrb[0].mxu0
        %4128 = vmatprep.mubr.f32.mxu0 0.0
        %4129 = vmatmul.mubr.f32.gmra.mrb[0].mxu0 %v3913
        %v4130 = vpop.f32.mrb[0].mxu0
        %v4131 = vadd.f32 0.0, %v4130
        %v4132 = vpop.f32.mrb[0].mxu0
        %4133 = vmatprep.mubr.f32.mxu0 0.0
        %4134 = vmatmul.mubr.f32.gmra.mrb[0].mxu0 %v3916
        %v4135 = vpop.f32.mrb[0].mxu0
        %v4136 = vadd.f32 0.0, %v4135
        %v4137 = vpop.f32.mrb[0].mxu0
        %4138 = vmatprep.mubr.f32.mxu0 0.0
        %4139 = vmatmul.mubr.f32.gmra.mrb[0].mxu0 %v3919
        %v4140 = vpop.f32.mrb[0].mxu0
        %v4141 = vadd.f32 0.0, %v4140
        %v4142 = vpop.f32.mrb[0].mxu0
        %4143 = vmatprep.mubr.f32.mxu0 0.0
        %4144 = vmatmul.mubr.f32.gmra.mrb[0].mxu0 %v3922
        %v4145 = vpop.f32.mrb[0].mxu0
        %v4146 = vadd.f32 0.0, %v4145
        %v4147 = vpop.f32.mrb[0].mxu0
        %4148 = vmatprep.mubr.f32.mxu0 0.0
        %4149 = vmatmul.mubr.f32.gmra.mrb[0].mxu0 %v3925
        %v4150 = vpop.f32.mrb[0].mxu0
        %v4151 = vadd.f32 0.0, %v4150
        %v4152 = vpop.f32.mrb[0].mxu0
        %4153 = vmatprep.mubr.f32.mxu0 0.0
        %4154 = vmatmul.mubr.f32.gmra.mrb[0].mxu0 %v3928
        %v4155 = vpop.f32.mrb[0].mxu0
        %v4156 = vadd.f32 0.0, %v4155
        %v4157 = vpop.f32.mrb[0].mxu0
        %4158 = vmatprep.mubr.f32.mxu0 0.0
        %4159 = vmatmul.mubr.f32.gmra.mrb[0].mxu0 %v3931
        %v4160 = vpop.f32.mrb[0].mxu0
        %v4161 = vadd.f32 0.0, %v4160
        %v4162 = vpop.f32.mrb[0].mxu0
        %4163 = vdwg.mxu0
        %v4164 = vmul.f32 %v3773, 2.0
        %v4165 = vmul.f32 %v3774, 2.0
        %v4166 = vmul.f32 %v3775, 2.0
        %v4167 = vmul.f32 %v3776, 2.0
        %v4168 = vmul.f32 %v3777, 2.0
        %v4169 = vmul.f32 %v3778, 2.0
        %v4170 = vmul.f32 %v3779, 2.0
        %v4171 = vmul.f32 %v3780, 2.0
        %v4172 = vmul.f32 %v3781, 2.0
        %v4173 = vmul.f32 %v3782, 2.0
        %v4174 = vmul.f32 %v3783, 2.0
        %v4175 = vmul.f32 %v3784, 2.0
        %v4176 = vmul.f32 %v3785, 2.0
        %v4177 = vmul.f32 %v3786, 2.0
        %v4178 = vmul.f32 %v3787, 2.0
        %v4179 = vmul.f32 %v3788, 2.0
        %v4180 = vmul.f32 %v3789, 2.0
        %v4181 = vmul.f32 %v3790, 2.0
        %v4182 = vmul.f32 %v3791, 2.0
        %v4183 = vmul.f32 %v3792, 2.0
        %v4184 = vmul.f32 %v3793, 2.0
        %v4185 = vmul.f32 %v3794, 2.0
        %v4186 = vmul.f32 %v3795, 2.0
        %v4187 = vmul.f32 %v3796, 2.0
        %v4188 = vmul.f32 %v3797, 2.0
        %v4189 = vmul.f32 %v3798, 2.0
        %v4190 = vmul.f32 %v3799, 2.0
        %v4191 = vmul.f32 %v3800, 2.0
        %v4192 = vmul.f32 %v3801, 2.0
        %v4193 = vmul.f32 %v3802, 2.0
        %v4194 = vmul.f32 %v3803, 2.0
        %v4195 = vmul.f32 %v3804, 2.0
        %s4196 = sld [smem:[#allocation7]]
        %v4197 = vstv %s4196
        %v4198 = vmul.f32 %v4197, %v4006
        %v4199 = vmul.f32 %v4197, %v4011
        %v4200 = vmul.f32 %v4197, %v4016
        %v4201 = vmul.f32 %v4197, %v4021
        %v4202 = vmul.f32 %v4197, %v4026
        %v4203 = vmul.f32 %v4197, %v4031
        %v4204 = vmul.f32 %v4197, %v4036
        %v4205 = vmul.f32 %v4197, %v4041
        %v4206 = vmul.f32 %v4197, %v4046
        %v4207 = vmul.f32 %v4197, %v4051
        %v4208 = vmul.f32 %v4197, %v4056
        %v4209 = vmul.f32 %v4197, %v4061
        %v4210 = vmul.f32 %v4197, %v4066
        %v4211 = vmul.f32 %v4197, %v4071
        %v4212 = vmul.f32 %v4197, %v4076
        %v4213 = vmul.f32 %v4197, %v4081
        %v4214 = vmul.f32 %v4197, %v4086
        %v4215 = vmul.f32 %v4197, %v4091
        %v4216 = vmul.f32 %v4197, %v4096
        %v4217 = vmul.f32 %v4197, %v4101
        %v4218 = vmul.f32 %v4197, %v4106
        %v4219 = vmul.f32 %v4197, %v4111
        %v4220 = vmul.f32 %v4197, %v4116
        %v4221 = vmul.f32 %v4197, %v4121
        %v4222 = vmul.f32 %v4197, %v4126
        %v4223 = vmul.f32 %v4197, %v4131
        %v4224 = vmul.f32 %v4197, %v4136
        %v4225 = vmul.f32 %v4197, %v4141
        %v4226 = vmul.f32 %v4197, %v4146
        %v4227 = vmul.f32 %v4197, %v4151
        %v4228 = vmul.f32 %v4197, %v4156
        %v4229 = vmul.f32 %v4197, %v4161
        %v4230 = vadd.f32 %v4164, %v4198
        %v4231 = vadd.f32 %v4165, %v4199
        %v4232 = vadd.f32 %v4166, %v4200
        %v4233 = vadd.f32 %v4167, %v4201
        %v4234 = vadd.f32 %v4168, %v4202
        %v4235 = vadd.f32 %v4169, %v4203
        %v4236 = vadd.f32 %v4170, %v4204
        %v4237 = vadd.f32 %v4171, %v4205
        %v4238 = vadd.f32 %v4172, %v4206
        %v4239 = vadd.f32 %v4173, %v4207
        %v4240 = vadd.f32 %v4174, %v4208
        %v4241 = vadd.f32 %v4175, %v4209
        %v4242 = vadd.f32 %v4176, %v4210
        %v4243 = vadd.f32 %v4177, %v4211
        %v4244 = vadd.f32 %v4178, %v4212
        %v4245 = vadd.f32 %v4179, %v4213
        %v4246 = vadd.f32 %v4180, %v4214
        %v4247 = vadd.f32 %v4181, %v4215
        %v4248 = vadd.f32 %v4182, %v4216
        %v4249 = vadd.f32 %v4183, %v4217
        %v4250 = vadd.f32 %v4184, %v4218
        %v4251 = vadd.f32 %v4185, %v4219
        %v4252 = vadd.f32 %v4186, %v4220
        %v4253 = vadd.f32 %v4187, %v4221
        %v4254 = vadd.f32 %v4188, %v4222
        %v4255 = vadd.f32 %v4189, %v4223
        %v4256 = vadd.f32 %v4190, %v4224
        %v4257 = vadd.f32 %v4191, %v4225
        %v4258 = vadd.f32 %v4192, %v4226
        %v4259 = vadd.f32 %v4193, %v4227
        %v4260 = vadd.f32 %v4194, %v4228
        %v4261 = vadd.f32 %v4195, %v4229
        %4262 = vst.msk [vmem:[%s318] sm:$0xff] %vm3639, %v4230
        %4263 = vst.msk [vmem:[%s318 + $0x8] sm:$0xff] %vm3639, %v4231
        %4264 = vst.msk [vmem:[%s318 + $0x10] sm:$0xff] %vm3639, %v4232
        %4265 = vst.msk [vmem:[%s318 + $0x18] sm:$0xff] %vm3639, %v4233
        %4266 = vst.msk [vmem:[%s318 + $0x20] sm:$0xff] %vm3639, %v4234
        %4267 = vst.msk [vmem:[%s318 + $0x28] sm:$0xff] %vm3639, %v4235
        %4268 = vst.msk [vmem:[%s318 + $0x30] sm:$0xff] %vm3639, %v4236
        %4269 = vst.msk [vmem:[%s318 + $0x38] sm:$0xff] %vm3639, %v4237
        %4270 = vst.msk [vmem:[%s318 + $0x40] sm:$0xff] %vm3639, %v4238
        %4271 = vst.msk [vmem:[%s318 + $0x48] sm:$0xff] %vm3639, %v4239
        %4272 = vst.msk [vmem:[%s318 + $0x50] sm:$0xff] %vm3639, %v4240
        %4273 = vst.msk [vmem:[%s318 + $0x58] sm:$0xff] %vm3639, %v4241
        %4274 = vst.msk [vmem:[%s318 + $0x60] sm:$0xff] %vm3639, %v4242
        %4275 = vst.msk [vmem:[%s318 + $0x68] sm:$0xff] %vm3639, %v4243
        %4276 = vst.msk [vmem:[%s318 + $0x70] sm:$0xff] %vm3639, %v4244
        %4277 = vst.msk [vmem:[%s318 + $0x78] sm:$0xff] %vm3639, %v4245
        %4278 = vst.msk [vmem:[%s318 + $0x80] sm:$0xff] %vm3639, %v4246
        %4279 = vst.msk [vmem:[%s318 + $0x88] sm:$0xff] %vm3639, %v4247
        %4280 = vst.msk [vmem:[%s318 + $0x90] sm:$0xff] %vm3639, %v4248
        %4281 = vst.msk [vmem:[%s318 + $0x98] sm:$0xff] %vm3639, %v4249
        %4282 = vst.msk [vmem:[%s318 + $0xa0] sm:$0xff] %vm3639, %v4250
        %4283 = vst.msk [vmem:[%s318 + $0xa8] sm:$0xff] %vm3639, %v4251
        %4284 = vst.msk [vmem:[%s318 + $0xb0] sm:$0xff] %vm3639, %v4252
        %4285 = vst.msk [vmem:[%s318 + $0xb8] sm:$0xff] %vm3639, %v4253
        %4286 = vst.msk [vmem:[%s318 + $0xc0] sm:$0xff] %vm3639, %v4254
        %4287 = vst.msk [vmem:[%s318 + $0xc8] sm:$0xff] %vm3639, %v4255
        %4288 = vst.msk [vmem:[%s318 + $0xd0] sm:$0xff] %vm3639, %v4256
        %4289 = vst.msk [vmem:[%s318 + $0xd8] sm:$0xff] %vm3639, %v4257
        %4290 = vst.msk [vmem:[%s318 + $0xe0] sm:$0xff] %vm3639, %v4258
        %4291 = vst.msk [vmem:[%s318 + $0xe8] sm:$0xff] %vm3639, %v4259
        %4292 = vst.msk [vmem:[%s318 + $0xf0] sm:$0xff] %vm3639, %v4260
        %4293 = vst.msk [vmem:[%s318 + $0xf8] sm:$0xff] %vm3639, %v4261
      $region60: #{affinity_attention2.1} parent=51 // pred_fallthru
        _
      %p4294 = scmp.lt.s32.totalorder %s24, 1
      %s4295 = scalar_select %p4294, %s24, 1
      %s4296 = smul.addr %s4295, 32
      %s4297 = smul.addr %s4296, 8
      %s4298 = scalar_lea.vmem %s8, %s4297
      // Predicated region
      $region61: #{affinity_attention2.1} parent=51 // pred_check
        %p4299 = pneg %p223
      $region62: #{affinity_attention2.1} parent=51 // pred_check_branch
        %4301 = sbr.rel (%p4299) target = $region64
      $region63: #{affinity_attention2.1} parent=51 // pred_region
        _
      $region64: #{affinity_attention2.1} parent=51 // pred_fallthru
        _
    $region52: #{affinity_attention2.1} parent=5 // pred_fallthru
      _
    %p4302 = scmp.le.s32.totalorder 2, %s15
    // Predicated region
    $region65: #{affinity_attention2.1} parent=5 // pred_check
      %p4303 = pneg %p4302
    $region66: #{affinity_attention2.1} parent=5 // pred_check_branch
      %4305 = sbr.rel (%p4303) target = $region68
    $region67: #{affinity_attention2.1} parent=5 // pred_region
      %s4306 = ssub.s32 %s15, 2
      // Predicated region
      $region69: #{affinity_attention2.1} parent=67 // pred_check
        %p4307 = pneg %p229
      $region70: #{affinity_attention2.1} parent=67 // pred_check_branch
        %4309 = sbr.rel (%p4307) target = $region72
      $region71: #{affinity_attention2.1} parent=67 // pred_region
        %p4310 = scmp.lt.s32.totalorder %s26, 1
        %s4311 = scalar_select %p4310, %s26, 1
        %s4312 = smul.addr %s4311, 32
        %s4313 = smul.addr %s4312, 8
        %s4314 = scalar_lea.vmem %s8, %s4313
      $region72: #{affinity_attention2.1} parent=67 // pred_fallthru
        _
    $region68: #{affinity_attention2.1} parent=5 // pred_fallthru
      _
  $region6: #{affinity_attention2.1} parent=0 // loop_footer
    %s19 = sadd.s32 1, %s15
  $region7: #{affinity_attention2.1} parent=0 // loop_footer_branch
    %14 = sbr.rel target = $region3
  $region8: #{affinity_attention2.1} parent=0 // loop_exit
    _

</llo_original>
